<compile_context>
chip_gen: v5e
topology: v5e:2x2
jax: 0.10.0
libtpu: 0.0.40
codegen_flags: <defaults>
</compile_context>

<pallas_src>
import functools
import math

import jax
import jax.numpy as jnp
from jax.experimental import pallas as pl


# ----------------------------------------------------------------------------
# Fully fused forward kernel (grid=(), everything VMEM-resident)
# ----------------------------------------------------------------------------
def _embd_mhsa_kernel(oh_ref, emb_ref, selp1_ref, sel2_ref, sel3_ref,
                      w1_ref, s1_ref, b1_ref,        # stage 1 packed (7, 128, 192)
                      w2_ref, s2_ref, b2_ref,        # stage 2 packed block-diag (7, 192, 96)
                      w3_ref, s3_ref, b3_ref,        # stage 3 packed block-diag (7, 96, 48)
                      wih_ref, whh_ref, bih_ref, bhh_ref, gmask_ref,   # fused bidir GRU
                      fw1_ref, fs1_ref, fb1_ref, fw2_ref, fb2_ref,     # FC head
                      o_ref, *, B, L):
    K, PAD, H = 7, 3, 24
    L2 = (L - 3) // 2 + 1                    # length after first MaxPool(3,2)
    L3 = (L2 - 3) // 2 + 1                   # length after second MaxPool(3,2)
    f32, bf16 = jnp.float32, jnp.bfloat16

    def conv(xpad, w_ref):
        # xpad: (rows, Cin) f32, batch-folded padded slab; 7 tap matmuls cover all batches
        n = xpad.shape[0] - (K - 1)
        acc = jnp.zeros((n, w_ref.shape[-1]), f32)
        for d in range(K):
            acc = acc + jnp.dot(xpad[d:d + n, :].astype(bf16), w_ref[d],
                                preferred_element_type=f32)
        return acc

    def winmax3(y):
        n = y.shape[0]
        return jnp.maximum(jnp.maximum(y[0:n - 2, :], y[1:n - 1, :]), y[2:n, :])

    # ---- embedding lookup: padded one-hot x table, all batches in one matmul ----------
    xpad = jnp.dot(oh_ref[...], emb_ref[...], preferred_element_type=f32)   # (B*(L+6),128)

    # ---- stage 1: Conv -> BN -> ReLU (channels [64|64|64] = branches k=3/5/7) ---------
    y1 = jnp.maximum(conv(xpad, w1_ref) * s1_ref[...] + b1_ref[...], 0.0)
    # re-pad by PAD and zero the inter-batch garbage rows in one 0/1 matmul
    h1pad = jnp.dot(selp1_ref[...], y1.astype(bf16), preferred_element_type=f32)

    # ---- stage 2: Conv -> BN -> MaxPool(3,2) -> ReLU (block-diagonal 192 -> 96) -------
    y2 = conv(h1pad, w2_ref) * s2_ref[...] + b2_ref[...]
    m2 = winmax3(y2)
    # stride-2 pick + re-pad + garbage zeroing in one 0/1 matmul, then ReLU
    h2pad = jnp.maximum(jnp.dot(sel2_ref[...], m2.astype(bf16),
                                preferred_element_type=f32), 0.0)

    # ---- stage 3: Conv -> BN -> MaxPool(3,2) -> ReLU (block-diagonal 96 -> 48) --------
    y3 = conv(h2pad, w3_ref) * s3_ref[...] + b3_ref[...]
    m3 = winmax3(y3)
    x = jnp.maximum(jnp.dot(sel3_ref[...], m3.astype(bf16),
                            preferred_element_type=f32), 0.0)               # (B*L3, 48)

    # ---- 2-layer bidirectional GRU (PyTorch gate order r, z, n) -----------------------
    # Reproduces the original missing batch_first=True: time axis = batch axis (T=B),
    # GRU batch = L3 positions.  Columns of the packed gates are ordered
    # [r_f, r_b, z_f, z_b, n_f, n_b] so both directions share 48-wide elementwise math.
    T, N = B, L3
    fmask = gmask_ref[...] > 0.5                     # (1, 144) True for forward columns
    for layer in range(2):
        # input projections for all time steps + both directions: ONE dot per layer
        gi_all = jnp.dot(x.astype(bf16), wih_ref[layer],
                         preferred_element_type=f32) + bih_ref[layer]       # (T*N, 144)
        bhh = bhh_ref[layer]
        hcat = jnp.zeros((N, 2 * H), f32)            # [h_f | h_b]
        out_f = [None] * T
        out_b = [None] * T
        for s in range(T):                           # fwd & bwd chains share the loop
            tf, tb = s, T - 1 - s
            gi = jnp.where(fmask,
                           gi_all[tf * N:(tf + 1) * N, :],
                           gi_all[tb * N:(tb + 1) * N, :])
            gh = jnp.dot(hcat.astype(bf16), whh_ref[layer],
                         preferred_element_type=f32) + bhh                  # 1 push/step
            r = jax.nn.sigmoid(gi[:, 0:2 * H] + gh[:, 0:2 * H])
            z = jax.nn.sigmoid(gi[:, 2 * H:4 * H] + gh[:, 2 * H:4 * H])
            n = jnp.tanh(gi[:, 4 * H:6 * H] + r * gh[:, 4 * H:6 * H])
            hcat = (1.0 - z) * n + z * hcat
            out_f[tf] = hcat[:, 0:H]
            out_b[tb] = hcat[:, H:2 * H]
        x = jnp.concatenate(
            [jnp.concatenate([out_f[t], out_b[t]], axis=1) for t in range(T)], axis=0)

    # ---- Flattening + Linear(336,32) + BN + ReLU + Linear(32,1) (two dots total) ------
    # TODO(synk): `Flattening` class not provided; assumed contiguous view(batch, -1).
    a = jnp.concatenate(
        [jnp.concatenate([x[t * N + j:t * N + j + 1, :] for t in range(T)], axis=0)
         for j in range(N)], axis=1)                                        # (B, 336)
    h = jnp.maximum(jnp.dot(a.astype(bf16), fw1_ref[...],
                            preferred_element_type=f32) * fs1_ref[...] + fb1_ref[...], 0.0)
    o_ref[...] = jnp.dot(h.astype(bf16), fw2_ref[...],
                         preferred_element_type=f32) + fb2_ref[...]         # (B, 1)


def embd_mhsa_forward(tokens, p):
    # tokens: (B, L) int32 in [0, 4)
    B, L = tokens.shape
    PAD = 3
    S1 = L + 2 * PAD
    L2 = (L - 3) // 2 + 1
    S2 = L2 + 2 * PAD
    L3 = (L2 - 3) // 2 + 1
    R1, R2 = B * S1, B * S2
    bf16 = jnp.bfloat16

    # Padded one-hot tokens (rows b*S1+PAD+i hot at tokens[b,i], zero elsewhere).
    oh = jax.nn.one_hot(tokens, 4, dtype=jnp.float32)
    oh = jnp.pad(oh, ((0, 0), (PAD, PAD), (0, 0))).reshape(R1, 4)

    # 0/1 selection matrices (host constants): re-pad after stage 1, and
    # stride-2 max-pool picks (+ re-pad) after stages 2 and 3.
    r1 = jnp.arange(R1)
    v1 = (r1 % S1 >= PAD) & (r1 % S1 < PAD + L)
    selp1 = ((r1 - PAD)[:, None] == jnp.arange(R1 - 6)[None, :]) & v1[:, None]

    r2 = jnp.arange(R2)
    p2 = r2 % S2 - PAD
    v2 = (p2 >= 0) & (p2 < L2)
    t2 = (r2 // S2) * S1 + 2 * p2
    sel2 = (t2[:, None] == jnp.arange(R1 - 8)[None, :]) & v2[:, None]

    r3 = jnp.arange(B * L3)
    t3 = (r3 // L3) * S2 + 2 * (r3 % L3)
    sel3 = t3[:, None] == jnp.arange(R2 - 8)[None, :]

    kernel = functools.partial(_embd_mhsa_kernel, B=B, L=L)
    out = pl.pallas_call(
        kernel,
        out_shape=jax.ShapeDtypeStruct((B, 1), jnp.float32),
    )(oh.astype(bf16), p["emb"],
      selp1.astype(bf16), sel2.astype(bf16), sel3.astype(bf16),
      p["w1"], p["s1"], p["b1"],
      p["w2"], p["s2"], p["b2"],
      p["w3"], p["s3"], p["b3"],
      p["wih"], p["whh"], p["bih"], p["bhh"], p["gmask"],
      p["fw1"], p["fs1"], p["fb1"], p["fw2"], p["fb2"])
    return jnp.squeeze(out)                                                  # (B,)


# ----------------------------------------------------------------------------
# Parameter construction (deterministic, synthetic) + packing for the fused kernel
# ----------------------------------------------------------------------------
def make_params(key):
    eps = 1e-5
    ks = jax.random.split(key, 8)

    # Embedding(4, 128, max_norm=True -> 1.0): renorm rows at init.
    # (PyTorch renorms at lookup time; equivalent here for frozen eval weights.)
    emb = jax.random.normal(ks[0], (4, 128), jnp.float32) * 0.3
    norms = jnp.linalg.norm(emb, axis=1, keepdims=True)
    emb = emb * jnp.minimum(1.0, 1.0 / jnp.maximum(norms, 1e-7))

    def conv_branch(key, k):
        kk = jax.random.split(key, 9)

        def one(i, cin, cout):
            w = jax.random.normal(kk[3 * i], (k, cin, cout), jnp.float32) / math.sqrt(cin * k)
            bias = jax.random.normal(kk[3 * i + 1], (cout,), jnp.float32) * 0.05
            gb = jax.random.normal(kk[3 * i + 2], (2, cout), jnp.float32) * 0.1
            gamma, beta = 1.0 + gb[0], gb[1]
            # BN eval fold (running_mean=0, running_var=1): y = scale*conv + shift
            scale = gamma / jnp.sqrt(1.0 + eps)
            shift = scale * bias + beta
            return w, scale.reshape(1, cout), shift.reshape(1, cout)

        w1, s1, sh1 = one(0, 128, 64)
        w2, s2, sh2 = one(1, 64, 32)
        w3, s3, sh3 = one(2, 32, 16)
        return dict(w1=w1, s1=s1, sh1=sh1, w2=w2, s2=s2, sh2=sh2, w3=w3, s3=s3, sh3=sh3)

    params = {
        "embedding": emb,
        "conv3": conv_branch(ks[1], 3),
        "conv5": conv_branch(ks[2], 5),
        "conv7": conv_branch(ks[3], 7),
    }

    # GRU(48, 24, num_layers=2, bidirectional=True); weights stored transposed.
    H = 24
    bound = 1.0 / math.sqrt(H)
    kg = jax.random.split(ks[4], 4)
    params["gru"] = dict(
        wih=jax.random.uniform(kg[0], (2, 2, 48, 3 * H), jnp.float32, -bound, bound),
        whh=jax.random.uniform(kg[1], (2, 2, H, 3 * H), jnp.float32, -bound, bound),
        bih=jax.random.uniform(kg[2], (2, 2, 1, 3 * H), jnp.float32, -bound, bound),
        bhh=jax.random.uniform(kg[3], (2, 2, 1, 3 * H), jnp.float32, -bound, bound),
    )

    # fclayer: Linear(336,32) -> BN(32, eval) -> ReLU -> Dropout -> Linear(32,1)
    kf = jax.random.split(ks[5], 5)
    b1 = 1.0 / math.sqrt(336.0)
    w1 = jax.random.uniform(kf[0], (336, 32), jnp.float32, -b1, b1)
    bias1 = jax.random.uniform(kf[1], (32,), jnp.float32, -b1, b1)
    gb = jax.random.normal(kf[2], (2, 32), jnp.float32) * 0.1
    gamma, beta = 1.0 + gb[0], gb[1]
    scale1 = gamma / jnp.sqrt(1.0 + 1e-5)
    shift1 = scale1 * bias1 + beta
    b2b = 1.0 / math.sqrt(32.0)
    w2 = jax.random.uniform(kf[3], (32, 1), jnp.float32, -b2b, b2b)
    bias2 = jax.random.uniform(kf[4], (1,), jnp.float32, -b2b, b2b)
    params["fc"] = dict(w1=w1, s1=scale1.reshape(1, 32), sh1=shift1.reshape(1, 32),
                        w2=w2, b2=bias2.reshape(1, 1))
    return params


def pack_params(p):
    """Pack conv branches (k=7 frame, block-diag channels), fuse GRU directions,
    and store every matmul weight in bf16 (BN/bias terms stay f32)."""
    K, branch_ks, H = 7, (3, 5, 7), 24
    bf16 = jnp.bfloat16

    def packed(stage, cin_blk, cout_blk, shared_cin):
        nb = len(branch_ks)
        cin = cin_blk if shared_cin else cin_blk * nb
        w = jnp.zeros((K, cin, cout_blk * nb), jnp.float32)
        ss, bb = [], []
        for bi, k in enumerate(branch_ks):
            br = p[f"conv{k}"]
            off = (K - k) // 2
            if shared_cin:
                w = w.at[off:off + k, :, bi * cout_blk:(bi + 1) * cout_blk].set(br[f"w{stage}"])
            else:
                w = w.at[off:off + k,
                         bi * cin_blk:(bi + 1) * cin_blk,
                         bi * cout_blk:(bi + 1) * cout_blk].set(br[f"w{stage}"])
            ss.append(br[f"s{stage}"])
            bb.append(br[f"sh{stage}"])
        return w.astype(bf16), jnp.concatenate(ss, axis=1), jnp.concatenate(bb, axis=1)

    w1, s1, b1 = packed(1, 128, 64, True)     # (7, 128, 192) bf16
    w2, s2, b2 = packed(2, 64, 32, False)     # (7, 192, 96)  bf16
    w3, s3, b3 = packed(3, 32, 16, False)     # (7, 96, 48)   bf16

    # GRU: fuse fwd/bwd with gate-column order [r_f, r_b, z_f, z_b, n_f, n_b].
    g = p["gru"]

    def interleave(wf, wb):
        return jnp.concatenate(
            [jnp.concatenate([wf[..., gi * H:(gi + 1) * H], wb[..., gi * H:(gi + 1) * H]],
                             axis=-1) for gi in range(3)], axis=-1)

    def blockdiag(wf, wb):                    # (24,72)x2 -> (48,144) block-diagonal
        out = jnp.zeros((2 * H, 6 * H), jnp.float32)
        for gi in range(3):
            out = out.at[0:H, gi * 2 * H:gi * 2 * H + H].set(wf[:, gi * H:(gi + 1) * H])
            out = out.at[H:2 * H, gi * 2 * H + H:(gi + 1) * 2 * H].set(wb[:, gi * H:(gi + 1) * H])
        return out

    wih = jnp.stack([interleave(g["wih"][l, 0], g["wih"][l, 1]) for l in range(2)]).astype(bf16)
    whh = jnp.stack([blockdiag(g["whh"][l, 0], g["whh"][l, 1]) for l in range(2)]).astype(bf16)
    bih = jnp.stack([interleave(g["bih"][l, 0], g["bih"][l, 1]) for l in range(2)])
    bhh = jnp.stack([interleave(g["bhh"][l, 0], g["bhh"][l, 1]) for l in range(2)])
    gmask = jnp.zeros((1, 6 * H), jnp.float32)
    for gi in range(3):
        gmask = gmask.at[:, gi * 2 * H:gi * 2 * H + H].set(1.0)   # forward-direction cols

    f = p["fc"]
    return dict(emb=p["embedding"].astype(bf16),
                w1=w1, s1=s1, b1=b1, w2=w2, s2=s2, b2=b2, w3=w3, s3=s3, b3=b3,
                wih=wih, whh=whh, bih=bih, bhh=bhh, gmask=gmask,
                fw1=f["w1"].astype(bf16), fs1=f["s1"], fb1=f["sh1"],
                fw2=f["w2"].astype(bf16), fb2=f["b2"])


if __name__ == "__main__":
    key = jax.random.PRNGKey(0)
    k_tok, k_par = jax.random.split(key)
    B, L = 2, 33   # seq_len=33 -> lengths 33 -> 16 -> 7 -> fc in_features 336
    tokens = jax.random.randint(k_tok, (B, L), 0, 4, dtype=jnp.int32)
    params = pack_params(make_params(k_par))

    out = jax.jit(embd_mhsa_forward)(tokens, params)
    out = jax.block_until_ready(out)
    assert out.shape == (B,), out.shape
    assert bool(jnp.all(jnp.isfinite(out)))
    print("KERNEL_OK")
</pallas_src>

<mosaic_0001>
module attributes {stable_mosaic.version = 11 : i64} {
  func.func @_embd_mhsa_kernel(%arg0: memref<78x4xbf16, #tpu.memory_space<vmem>>, %arg1: memref<4x128xbf16, #tpu.memory_space<vmem>>, %arg2: memref<78x72xbf16, #tpu.memory_space<vmem>>, %arg3: memref<44x70xbf16, #tpu.memory_space<vmem>>, %arg4: memref<14x36xbf16, #tpu.memory_space<vmem>>, %arg5: memref<7x128x192xbf16, #tpu.memory_space<vmem>>, %arg6: memref<1x192xf32, #tpu.memory_space<vmem>>, %arg7: memref<1x192xf32, #tpu.memory_space<vmem>>, %arg8: memref<7x192x96xbf16, #tpu.memory_space<vmem>>, %arg9: memref<1x96xf32, #tpu.memory_space<vmem>>, %arg10: memref<1x96xf32, #tpu.memory_space<vmem>>, %arg11: memref<7x96x48xbf16, #tpu.memory_space<vmem>>, %arg12: memref<1x48xf32, #tpu.memory_space<vmem>>, %arg13: memref<1x48xf32, #tpu.memory_space<vmem>>, %arg14: memref<2x48x144xbf16, #tpu.memory_space<vmem>>, %arg15: memref<2x48x144xbf16, #tpu.memory_space<vmem>>, %arg16: memref<2x1x144xf32, #tpu.memory_space<vmem>>, %arg17: memref<2x1x144xf32, #tpu.memory_space<vmem>>, %arg18: memref<1x144xf32, #tpu.memory_space<vmem>>, %arg19: memref<336x32xbf16, #tpu.memory_space<vmem>>, %arg20: memref<1x32xf32, #tpu.memory_space<vmem>>, %arg21: memref<1x32xf32, #tpu.memory_space<vmem>>, %arg22: memref<32x1xbf16, #tpu.memory_space<vmem>>, %arg23: memref<1x1xf32, #tpu.memory_space<vmem>>, %arg24: memref<2x1xf32, #tpu.memory_space<vmem>>) attributes {dimension_semantics = [], scalar_prefetch = 0 : i64, scratch_operands = 0 : i64, tpu.core_type = #tpu.core_type<tc>} {
    %c0 = arith.constant 0 : index
    %c0_0 = arith.constant 0 : index
    %0 = vector.load %arg0[%c0, %c0_0] : memref<78x4xbf16, #tpu.memory_space<vmem>>, vector<78x4xbf16>
    %c0_1 = arith.constant 0 : index
    %c0_2 = arith.constant 0 : index
    %1 = vector.load %arg1[%c0_1, %c0_2] : memref<4x128xbf16, #tpu.memory_space<vmem>>, vector<4x128xbf16>
    %cst = arith.constant dense<0.000000e+00> : vector<78x128xf32>
    %2 = tpu.matmul %0, %1, %cst {dimension_numbers = #tpu.dot_dimension_numbers<[1], [0], [0], [1], [0, 0, 1, 1], [], []>} : vector<78x4xbf16>, vector<4x128xbf16>, vector<78x128xf32> -> vector<78x128xf32>
    %cst_3 = arith.constant 0.000000e+00 : f32
    %3 = vector.broadcast %cst_3 : f32 to vector<72x192xf32>
    %4 = vector.extract_strided_slice %2 {offsets = [0, 0], sizes = [72, 128], strides = [1, 1]} : vector<78x128xf32> to vector<72x128xf32>
    %5 = arith.truncf %4 : vector<72x128xf32> to vector<72x128xbf16>
    %c0_4 = arith.constant 0 : index
    %c0_5 = arith.constant 0 : index
    %c0_6 = arith.constant 0 : index
    %6 = vector.load %arg5[%c0_4, %c0_5, %c0_6] : memref<7x128x192xbf16, #tpu.memory_space<vmem>>, vector<1x128x192xbf16>
    %7 = vector.shape_cast %6 : vector<1x128x192xbf16> to vector<128x192xbf16>
    %cst_7 = arith.constant dense<0.000000e+00> : vector<72x192xf32>
    %8 = tpu.matmul %5, %7, %cst_7 {dimension_numbers = #tpu.dot_dimension_numbers<[1], [0], [0], [1], [0, 0, 1, 1], [], []>} : vector<72x128xbf16>, vector<128x192xbf16>, vector<72x192xf32> -> vector<72x192xf32>
    %9 = arith.addf %3, %8 : vector<72x192xf32>
    %10 = vector.extract_strided_slice %2 {offsets = [1, 0], sizes = [72, 128], strides = [1, 1]} : vector<78x128xf32> to vector<72x128xf32>
    %11 = arith.truncf %10 : vector<72x128xf32> to vector<72x128xbf16>
    %c1 = arith.constant 1 : index
    %c0_8 = arith.constant 0 : index
    %c0_9 = arith.constant 0 : index
    %12 = vector.load %arg5[%c1, %c0_8, %c0_9] : memref<7x128x192xbf16, #tpu.memory_space<vmem>>, vector<1x128x192xbf16>
    %13 = vector.shape_cast %12 : vector<1x128x192xbf16> to vector<128x192xbf16>
    %cst_10 = arith.constant dense<0.000000e+00> : vector<72x192xf32>
    %14 = tpu.matmul %11, %13, %cst_10 {dimension_numbers = #tpu.dot_dimension_numbers<[1], [0], [0], [1], [0, 0, 1, 1], [], []>} : vector<72x128xbf16>, vector<128x192xbf16>, vector<72x192xf32> -> vector<72x192xf32>
    %15 = arith.addf %9, %14 : vector<72x192xf32>
    %16 = vector.extract_strided_slice %2 {offsets = [2, 0], sizes = [72, 128], strides = [1, 1]} : vector<78x128xf32> to vector<72x128xf32>
    %17 = arith.truncf %16 : vector<72x128xf32> to vector<72x128xbf16>
    %c2 = arith.constant 2 : index
    %c0_11 = arith.constant 0 : index
    %c0_12 = arith.constant 0 : index
    %18 = vector.load %arg5[%c2, %c0_11, %c0_12] : memref<7x128x192xbf16, #tpu.memory_space<vmem>>, vector<1x128x192xbf16>
    %19 = vector.shape_cast %18 : vector<1x128x192xbf16> to vector<128x192xbf16>
    %cst_13 = arith.constant dense<0.000000e+00> : vector<72x192xf32>
    %20 = tpu.matmul %17, %19, %cst_13 {dimension_numbers = #tpu.dot_dimension_numbers<[1], [0], [0], [1], [0, 0, 1, 1], [], []>} : vector<72x128xbf16>, vector<128x192xbf16>, vector<72x192xf32> -> vector<72x192xf32>
    %21 = arith.addf %15, %20 : vector<72x192xf32>
    %22 = vector.extract_strided_slice %2 {offsets = [3, 0], sizes = [72, 128], strides = [1, 1]} : vector<78x128xf32> to vector<72x128xf32>
    %23 = arith.truncf %22 : vector<72x128xf32> to vector<72x128xbf16>
    %c3 = arith.constant 3 : index
    %c0_14 = arith.constant 0 : index
    %c0_15 = arith.constant 0 : index
    %24 = vector.load %arg5[%c3, %c0_14, %c0_15] : memref<7x128x192xbf16, #tpu.memory_space<vmem>>, vector<1x128x192xbf16>
    %25 = vector.shape_cast %24 : vector<1x128x192xbf16> to vector<128x192xbf16>
    %cst_16 = arith.constant dense<0.000000e+00> : vector<72x192xf32>
    %26 = tpu.matmul %23, %25, %cst_16 {dimension_numbers = #tpu.dot_dimension_numbers<[1], [0], [0], [1], [0, 0, 1, 1], [], []>} : vector<72x128xbf16>, vector<128x192xbf16>, vector<72x192xf32> -> vector<72x192xf32>
    %27 = arith.addf %21, %26 : vector<72x192xf32>
    %28 = vector.extract_strided_slice %2 {offsets = [4, 0], sizes = [72, 128], strides = [1, 1]} : vector<78x128xf32> to vector<72x128xf32>
    %29 = arith.truncf %28 : vector<72x128xf32> to vector<72x128xbf16>
    %c4 = arith.constant 4 : index
    %c0_17 = arith.constant 0 : index
    %c0_18 = arith.constant 0 : index
    %30 = vector.load %arg5[%c4, %c0_17, %c0_18] : memref<7x128x192xbf16, #tpu.memory_space<vmem>>, vector<1x128x192xbf16>
    %31 = vector.shape_cast %30 : vector<1x128x192xbf16> to vector<128x192xbf16>
    %cst_19 = arith.constant dense<0.000000e+00> : vector<72x192xf32>
    %32 = tpu.matmul %29, %31, %cst_19 {dimension_numbers = #tpu.dot_dimension_numbers<[1], [0], [0], [1], [0, 0, 1, 1], [], []>} : vector<72x128xbf16>, vector<128x192xbf16>, vector<72x192xf32> -> vector<72x192xf32>
    %33 = arith.addf %27, %32 : vector<72x192xf32>
    %34 = vector.extract_strided_slice %2 {offsets = [5, 0], sizes = [72, 128], strides = [1, 1]} : vector<78x128xf32> to vector<72x128xf32>
    %35 = arith.truncf %34 : vector<72x128xf32> to vector<72x128xbf16>
    %c5 = arith.constant 5 : index
    %c0_20 = arith.constant 0 : index
    %c0_21 = arith.constant 0 : index
    %36 = vector.load %arg5[%c5, %c0_20, %c0_21] : memref<7x128x192xbf16, #tpu.memory_space<vmem>>, vector<1x128x192xbf16>
    %37 = vector.shape_cast %36 : vector<1x128x192xbf16> to vector<128x192xbf16>
    %cst_22 = arith.constant dense<0.000000e+00> : vector<72x192xf32>
    %38 = tpu.matmul %35, %37, %cst_22 {dimension_numbers = #tpu.dot_dimension_numbers<[1], [0], [0], [1], [0, 0, 1, 1], [], []>} : vector<72x128xbf16>, vector<128x192xbf16>, vector<72x192xf32> -> vector<72x192xf32>
    %39 = arith.addf %33, %38 : vector<72x192xf32>
    %40 = vector.extract_strided_slice %2 {offsets = [6, 0], sizes = [72, 128], strides = [1, 1]} : vector<78x128xf32> to vector<72x128xf32>
    %41 = arith.truncf %40 : vector<72x128xf32> to vector<72x128xbf16>
    %c6 = arith.constant 6 : index
    %c0_23 = arith.constant 0 : index
    %c0_24 = arith.constant 0 : index
    %42 = vector.load %arg5[%c6, %c0_23, %c0_24] : memref<7x128x192xbf16, #tpu.memory_space<vmem>>, vector<1x128x192xbf16>
    %43 = vector.shape_cast %42 : vector<1x128x192xbf16> to vector<128x192xbf16>
    %cst_25 = arith.constant dense<0.000000e+00> : vector<72x192xf32>
    %44 = tpu.matmul %41, %43, %cst_25 {dimension_numbers = #tpu.dot_dimension_numbers<[1], [0], [0], [1], [0, 0, 1, 1], [], []>} : vector<72x128xbf16>, vector<128x192xbf16>, vector<72x192xf32> -> vector<72x192xf32>
    %45 = arith.addf %39, %44 : vector<72x192xf32>
    %c0_26 = arith.constant 0 : index
    %c0_27 = arith.constant 0 : index
    %46 = vector.load %arg6[%c0_26, %c0_27] : memref<1x192xf32, #tpu.memory_space<vmem>>, vector<1x192xf32>
    %47 = vector.broadcast %46 : vector<1x192xf32> to vector<72x192xf32>
    %48 = arith.mulf %45, %47 : vector<72x192xf32>
    %c0_28 = arith.constant 0 : index
    %c0_29 = arith.constant 0 : index
    %49 = vector.load %arg7[%c0_28, %c0_29] : memref<1x192xf32, #tpu.memory_space<vmem>>, vector<1x192xf32>
    %50 = vector.broadcast %49 : vector<1x192xf32> to vector<72x192xf32>
    %51 = arith.addf %48, %50 : vector<72x192xf32>
    %cst_30 = arith.constant 0.000000e+00 : f32
    %52 = vector.broadcast %cst_30 : f32 to vector<72x192xf32>
    %53 = arith.maximumf %51, %52 : vector<72x192xf32>
    %c0_31 = arith.constant 0 : index
    %c0_32 = arith.constant 0 : index
    %54 = vector.load %arg2[%c0_31, %c0_32] : memref<78x72xbf16, #tpu.memory_space<vmem>>, vector<78x72xbf16>
    %55 = arith.truncf %53 : vector<72x192xf32> to vector<72x192xbf16>
    %cst_33 = arith.constant dense<0.000000e+00> : vector<78x192xf32>
    %56 = tpu.matmul %54, %55, %cst_33 {dimension_numbers = #tpu.dot_dimension_numbers<[1], [0], [0], [1], [0, 0, 1, 1], [], []>} : vector<78x72xbf16>, vector<72x192xbf16>, vector<78x192xf32> -> vector<78x192xf32>
    %cst_34 = arith.constant 0.000000e+00 : f32
    %57 = vector.broadcast %cst_34 : f32 to vector<72x96xf32>
    %58 = vector.extract_strided_slice %56 {offsets = [0, 0], sizes = [72, 192], strides = [1, 1]} : vector<78x192xf32> to vector<72x192xf32>
    %59 = arith.truncf %58 : vector<72x192xf32> to vector<72x192xbf16>
    %c0_35 = arith.constant 0 : index
    %c0_36 = arith.constant 0 : index
    %c0_37 = arith.constant 0 : index
    %60 = vector.load %arg8[%c0_35, %c0_36, %c0_37] : memref<7x192x96xbf16, #tpu.memory_space<vmem>>, vector<1x192x96xbf16>
    %61 = vector.shape_cast %60 : vector<1x192x96xbf16> to vector<192x96xbf16>
    %cst_38 = arith.constant dense<0.000000e+00> : vector<72x96xf32>
    %62 = tpu.matmul %59, %61, %cst_38 {dimension_numbers = #tpu.dot_dimension_numbers<[1], [0], [0], [1], [0, 0, 1, 1], [], []>} : vector<72x192xbf16>, vector<192x96xbf16>, vector<72x96xf32> -> vector<72x96xf32>
    %63 = arith.addf %57, %62 : vector<72x96xf32>
    %64 = vector.extract_strided_slice %56 {offsets = [1, 0], sizes = [72, 192], strides = [1, 1]} : vector<78x192xf32> to vector<72x192xf32>
    %65 = arith.truncf %64 : vector<72x192xf32> to vector<72x192xbf16>
    %c1_39 = arith.constant 1 : index
    %c0_40 = arith.constant 0 : index
    %c0_41 = arith.constant 0 : index
    %66 = vector.load %arg8[%c1_39, %c0_40, %c0_41] : memref<7x192x96xbf16, #tpu.memory_space<vmem>>, vector<1x192x96xbf16>
    %67 = vector.shape_cast %66 : vector<1x192x96xbf16> to vector<192x96xbf16>
    %cst_42 = arith.constant dense<0.000000e+00> : vector<72x96xf32>
    %68 = tpu.matmul %65, %67, %cst_42 {dimension_numbers = #tpu.dot_dimension_numbers<[1], [0], [0], [1], [0, 0, 1, 1], [], []>} : vector<72x192xbf16>, vector<192x96xbf16>, vector<72x96xf32> -> vector<72x96xf32>
    %69 = arith.addf %63, %68 : vector<72x96xf32>
    %70 = vector.extract_strided_slice %56 {offsets = [2, 0], sizes = [72, 192], strides = [1, 1]} : vector<78x192xf32> to vector<72x192xf32>
    %71 = arith.truncf %70 : vector<72x192xf32> to vector<72x192xbf16>
    %c2_43 = arith.constant 2 : index
    %c0_44 = arith.constant 0 : index
    %c0_45 = arith.constant 0 : index
    %72 = vector.load %arg8[%c2_43, %c0_44, %c0_45] : memref<7x192x96xbf16, #tpu.memory_space<vmem>>, vector<1x192x96xbf16>
    %73 = vector.shape_cast %72 : vector<1x192x96xbf16> to vector<192x96xbf16>
    %cst_46 = arith.constant dense<0.000000e+00> : vector<72x96xf32>
    %74 = tpu.matmul %71, %73, %cst_46 {dimension_numbers = #tpu.dot_dimension_numbers<[1], [0], [0], [1], [0, 0, 1, 1], [], []>} : vector<72x192xbf16>, vector<192x96xbf16>, vector<72x96xf32> -> vector<72x96xf32>
    %75 = arith.addf %69, %74 : vector<72x96xf32>
    %76 = vector.extract_strided_slice %56 {offsets = [3, 0], sizes = [72, 192], strides = [1, 1]} : vector<78x192xf32> to vector<72x192xf32>
    %77 = arith.truncf %76 : vector<72x192xf32> to vector<72x192xbf16>
    %c3_47 = arith.constant 3 : index
    %c0_48 = arith.constant 0 : index
    %c0_49 = arith.constant 0 : index
    %78 = vector.load %arg8[%c3_47, %c0_48, %c0_49] : memref<7x192x96xbf16, #tpu.memory_space<vmem>>, vector<1x192x96xbf16>
    %79 = vector.shape_cast %78 : vector<1x192x96xbf16> to vector<192x96xbf16>
    %cst_50 = arith.constant dense<0.000000e+00> : vector<72x96xf32>
    %80 = tpu.matmul %77, %79, %cst_50 {dimension_numbers = #tpu.dot_dimension_numbers<[1], [0], [0], [1], [0, 0, 1, 1], [], []>} : vector<72x192xbf16>, vector<192x96xbf16>, vector<72x96xf32> -> vector<72x96xf32>
    %81 = arith.addf %75, %80 : vector<72x96xf32>
    %82 = vector.extract_strided_slice %56 {offsets = [4, 0], sizes = [72, 192], strides = [1, 1]} : vector<78x192xf32> to vector<72x192xf32>
    %83 = arith.truncf %82 : vector<72x192xf32> to vector<72x192xbf16>
    %c4_51 = arith.constant 4 : index
    %c0_52 = arith.constant 0 : index
    %c0_53 = arith.constant 0 : index
    %84 = vector.load %arg8[%c4_51, %c0_52, %c0_53] : memref<7x192x96xbf16, #tpu.memory_space<vmem>>, vector<1x192x96xbf16>
    %85 = vector.shape_cast %84 : vector<1x192x96xbf16> to vector<192x96xbf16>
    %cst_54 = arith.constant dense<0.000000e+00> : vector<72x96xf32>
    %86 = tpu.matmul %83, %85, %cst_54 {dimension_numbers = #tpu.dot_dimension_numbers<[1], [0], [0], [1], [0, 0, 1, 1], [], []>} : vector<72x192xbf16>, vector<192x96xbf16>, vector<72x96xf32> -> vector<72x96xf32>
    %87 = arith.addf %81, %86 : vector<72x96xf32>
    %88 = vector.extract_strided_slice %56 {offsets = [5, 0], sizes = [72, 192], strides = [1, 1]} : vector<78x192xf32> to vector<72x192xf32>
    %89 = arith.truncf %88 : vector<72x192xf32> to vector<72x192xbf16>
    %c5_55 = arith.constant 5 : index
    %c0_56 = arith.constant 0 : index
    %c0_57 = arith.constant 0 : index
    %90 = vector.load %arg8[%c5_55, %c0_56, %c0_57] : memref<7x192x96xbf16, #tpu.memory_space<vmem>>, vector<1x192x96xbf16>
    %91 = vector.shape_cast %90 : vector<1x192x96xbf16> to vector<192x96xbf16>
    %cst_58 = arith.constant dense<0.000000e+00> : vector<72x96xf32>
    %92 = tpu.matmul %89, %91, %cst_58 {dimension_numbers = #tpu.dot_dimension_numbers<[1], [0], [0], [1], [0, 0, 1, 1], [], []>} : vector<72x192xbf16>, vector<192x96xbf16>, vector<72x96xf32> -> vector<72x96xf32>
    %93 = arith.addf %87, %92 : vector<72x96xf32>
    %94 = vector.extract_strided_slice %56 {offsets = [6, 0], sizes = [72, 192], strides = [1, 1]} : vector<78x192xf32> to vector<72x192xf32>
    %95 = arith.truncf %94 : vector<72x192xf32> to vector<72x192xbf16>
    %c6_59 = arith.constant 6 : index
    %c0_60 = arith.constant 0 : index
    %c0_61 = arith.constant 0 : index
    %96 = vector.load %arg8[%c6_59, %c0_60, %c0_61] : memref<7x192x96xbf16, #tpu.memory_space<vmem>>, vector<1x192x96xbf16>
    %97 = vector.shape_cast %96 : vector<1x192x96xbf16> to vector<192x96xbf16>
    %cst_62 = arith.constant dense<0.000000e+00> : vector<72x96xf32>
    %98 = tpu.matmul %95, %97, %cst_62 {dimension_numbers = #tpu.dot_dimension_numbers<[1], [0], [0], [1], [0, 0, 1, 1], [], []>} : vector<72x192xbf16>, vector<192x96xbf16>, vector<72x96xf32> -> vector<72x96xf32>
    %99 = arith.addf %93, %98 : vector<72x96xf32>
    %c0_63 = arith.constant 0 : index
    %c0_64 = arith.constant 0 : index
    %100 = vector.load %arg9[%c0_63, %c0_64] : memref<1x96xf32, #tpu.memory_space<vmem>>, vector<1x96xf32>
    %101 = vector.broadcast %100 : vector<1x96xf32> to vector<72x96xf32>
    %102 = arith.mulf %99, %101 : vector<72x96xf32>
    %c0_65 = arith.constant 0 : index
    %c0_66 = arith.constant 0 : index
    %103 = vector.load %arg10[%c0_65, %c0_66] : memref<1x96xf32, #tpu.memory_space<vmem>>, vector<1x96xf32>
    %104 = vector.broadcast %103 : vector<1x96xf32> to vector<72x96xf32>
    %105 = arith.addf %102, %104 : vector<72x96xf32>
    %106 = vector.extract_strided_slice %105 {offsets = [0, 0], sizes = [70, 96], strides = [1, 1]} : vector<72x96xf32> to vector<70x96xf32>
    %107 = vector.extract_strided_slice %105 {offsets = [1, 0], sizes = [70, 96], strides = [1, 1]} : vector<72x96xf32> to vector<70x96xf32>
    %108 = arith.maximumf %106, %107 : vector<70x96xf32>
    %109 = vector.extract_strided_slice %105 {offsets = [2, 0], sizes = [70, 96], strides = [1, 1]} : vector<72x96xf32> to vector<70x96xf32>
    %110 = arith.maximumf %108, %109 : vector<70x96xf32>
    %c0_67 = arith.constant 0 : index
    %c0_68 = arith.constant 0 : index
    %111 = vector.load %arg3[%c0_67, %c0_68] : memref<44x70xbf16, #tpu.memory_space<vmem>>, vector<44x70xbf16>
    %112 = arith.truncf %110 : vector<70x96xf32> to vector<70x96xbf16>
    %cst_69 = arith.constant dense<0.000000e+00> : vector<44x96xf32>
    %113 = tpu.matmul %111, %112, %cst_69 {dimension_numbers = #tpu.dot_dimension_numbers<[1], [0], [0], [1], [0, 0, 1, 1], [], []>} : vector<44x70xbf16>, vector<70x96xbf16>, vector<44x96xf32> -> vector<44x96xf32>
    %cst_70 = arith.constant 0.000000e+00 : f32
    %114 = vector.broadcast %cst_70 : f32 to vector<44x96xf32>
    %115 = arith.maximumf %113, %114 : vector<44x96xf32>
    %cst_71 = arith.constant 0.000000e+00 : f32
    %116 = vector.broadcast %cst_71 : f32 to vector<38x48xf32>
    %117 = vector.extract_strided_slice %115 {offsets = [0, 0], sizes = [38, 96], strides = [1, 1]} : vector<44x96xf32> to vector<38x96xf32>
    %118 = arith.truncf %117 : vector<38x96xf32> to vector<38x96xbf16>
    %c0_72 = arith.constant 0 : index
    %c0_73 = arith.constant 0 : index
    %c0_74 = arith.constant 0 : index
    %119 = vector.load %arg11[%c0_72, %c0_73, %c0_74] : memref<7x96x48xbf16, #tpu.memory_space<vmem>>, vector<1x96x48xbf16>
    %120 = vector.shape_cast %119 : vector<1x96x48xbf16> to vector<96x48xbf16>
    %cst_75 = arith.constant dense<0.000000e+00> : vector<38x48xf32>
    %121 = tpu.matmul %118, %120, %cst_75 {dimension_numbers = #tpu.dot_dimension_numbers<[1], [0], [0], [1], [0, 0, 1, 1], [], []>} : vector<38x96xbf16>, vector<96x48xbf16>, vector<38x48xf32> -> vector<38x48xf32>
    %122 = arith.addf %116, %121 : vector<38x48xf32>
    %123 = vector.extract_strided_slice %115 {offsets = [1, 0], sizes = [38, 96], strides = [1, 1]} : vector<44x96xf32> to vector<38x96xf32>
    %124 = arith.truncf %123 : vector<38x96xf32> to vector<38x96xbf16>
    %c1_76 = arith.constant 1 : index
    %c0_77 = arith.constant 0 : index
    %c0_78 = arith.constant 0 : index
    %125 = vector.load %arg11[%c1_76, %c0_77, %c0_78] : memref<7x96x48xbf16, #tpu.memory_space<vmem>>, vector<1x96x48xbf16>
    %126 = vector.shape_cast %125 : vector<1x96x48xbf16> to vector<96x48xbf16>
    %cst_79 = arith.constant dense<0.000000e+00> : vector<38x48xf32>
    %127 = tpu.matmul %124, %126, %cst_79 {dimension_numbers = #tpu.dot_dimension_numbers<[1], [0], [0], [1], [0, 0, 1, 1], [], []>} : vector<38x96xbf16>, vector<96x48xbf16>, vector<38x48xf32> -> vector<38x48xf32>
    %128 = arith.addf %122, %127 : vector<38x48xf32>
    %129 = vector.extract_strided_slice %115 {offsets = [2, 0], sizes = [38, 96], strides = [1, 1]} : vector<44x96xf32> to vector<38x96xf32>
    %130 = arith.truncf %129 : vector<38x96xf32> to vector<38x96xbf16>
    %c2_80 = arith.constant 2 : index
    %c0_81 = arith.constant 0 : index
    %c0_82 = arith.constant 0 : index
    %131 = vector.load %arg11[%c2_80, %c0_81, %c0_82] : memref<7x96x48xbf16, #tpu.memory_space<vmem>>, vector<1x96x48xbf16>
    %132 = vector.shape_cast %131 : vector<1x96x48xbf16> to vector<96x48xbf16>
    %cst_83 = arith.constant dense<0.000000e+00> : vector<38x48xf32>
    %133 = tpu.matmul %130, %132, %cst_83 {dimension_numbers = #tpu.dot_dimension_numbers<[1], [0], [0], [1], [0, 0, 1, 1], [], []>} : vector<38x96xbf16>, vector<96x48xbf16>, vector<38x48xf32> -> vector<38x48xf32>
    %134 = arith.addf %128, %133 : vector<38x48xf32>
    %135 = vector.extract_strided_slice %115 {offsets = [3, 0], sizes = [38, 96], strides = [1, 1]} : vector<44x96xf32> to vector<38x96xf32>
    %136 = arith.truncf %135 : vector<38x96xf32> to vector<38x96xbf16>
    %c3_84 = arith.constant 3 : index
    %c0_85 = arith.constant 0 : index
    %c0_86 = arith.constant 0 : index
    %137 = vector.load %arg11[%c3_84, %c0_85, %c0_86] : memref<7x96x48xbf16, #tpu.memory_space<vmem>>, vector<1x96x48xbf16>
    %138 = vector.shape_cast %137 : vector<1x96x48xbf16> to vector<96x48xbf16>
    %cst_87 = arith.constant dense<0.000000e+00> : vector<38x48xf32>
    %139 = tpu.matmul %136, %138, %cst_87 {dimension_numbers = #tpu.dot_dimension_numbers<[1], [0], [0], [1], [0, 0, 1, 1], [], []>} : vector<38x96xbf16>, vector<96x48xbf16>, vector<38x48xf32> -> vector<38x48xf32>
    %140 = arith.addf %134, %139 : vector<38x48xf32>
    %141 = vector.extract_strided_slice %115 {offsets = [4, 0], sizes = [38, 96], strides = [1, 1]} : vector<44x96xf32> to vector<38x96xf32>
    %142 = arith.truncf %141 : vector<38x96xf32> to vector<38x96xbf16>
    %c4_88 = arith.constant 4 : index
    %c0_89 = arith.constant 0 : index
    %c0_90 = arith.constant 0 : index
    %143 = vector.load %arg11[%c4_88, %c0_89, %c0_90] : memref<7x96x48xbf16, #tpu.memory_space<vmem>>, vector<1x96x48xbf16>
    %144 = vector.shape_cast %143 : vector<1x96x48xbf16> to vector<96x48xbf16>
    %cst_91 = arith.constant dense<0.000000e+00> : vector<38x48xf32>
    %145 = tpu.matmul %142, %144, %cst_91 {dimension_numbers = #tpu.dot_dimension_numbers<[1], [0], [0], [1], [0, 0, 1, 1], [], []>} : vector<38x96xbf16>, vector<96x48xbf16>, vector<38x48xf32> -> vector<38x48xf32>
    %146 = arith.addf %140, %145 : vector<38x48xf32>
    %147 = vector.extract_strided_slice %115 {offsets = [5, 0], sizes = [38, 96], strides = [1, 1]} : vector<44x96xf32> to vector<38x96xf32>
    %148 = arith.truncf %147 : vector<38x96xf32> to vector<38x96xbf16>
    %c5_92 = arith.constant 5 : index
    %c0_93 = arith.constant 0 : index
    %c0_94 = arith.constant 0 : index
    %149 = vector.load %arg11[%c5_92, %c0_93, %c0_94] : memref<7x96x48xbf16, #tpu.memory_space<vmem>>, vector<1x96x48xbf16>
    %150 = vector.shape_cast %149 : vector<1x96x48xbf16> to vector<96x48xbf16>
    %cst_95 = arith.constant dense<0.000000e+00> : vector<38x48xf32>
    %151 = tpu.matmul %148, %150, %cst_95 {dimension_numbers = #tpu.dot_dimension_numbers<[1], [0], [0], [1], [0, 0, 1, 1], [], []>} : vector<38x96xbf16>, vector<96x48xbf16>, vector<38x48xf32> -> vector<38x48xf32>
    %152 = arith.addf %146, %151 : vector<38x48xf32>
    %153 = vector.extract_strided_slice %115 {offsets = [6, 0], sizes = [38, 96], strides = [1, 1]} : vector<44x96xf32> to vector<38x96xf32>
    %154 = arith.truncf %153 : vector<38x96xf32> to vector<38x96xbf16>
    %c6_96 = arith.constant 6 : index
    %c0_97 = arith.constant 0 : index
    %c0_98 = arith.constant 0 : index
    %155 = vector.load %arg11[%c6_96, %c0_97, %c0_98] : memref<7x96x48xbf16, #tpu.memory_space<vmem>>, vector<1x96x48xbf16>
    %156 = vector.shape_cast %155 : vector<1x96x48xbf16> to vector<96x48xbf16>
    %cst_99 = arith.constant dense<0.000000e+00> : vector<38x48xf32>
    %157 = tpu.matmul %154, %156, %cst_99 {dimension_numbers = #tpu.dot_dimension_numbers<[1], [0], [0], [1], [0, 0, 1, 1], [], []>} : vector<38x96xbf16>, vector<96x48xbf16>, vector<38x48xf32> -> vector<38x48xf32>
    %158 = arith.addf %152, %157 : vector<38x48xf32>
    %c0_100 = arith.constant 0 : index
    %c0_101 = arith.constant 0 : index
    %159 = vector.load %arg12[%c0_100, %c0_101] : memref<1x48xf32, #tpu.memory_space<vmem>>, vector<1x48xf32>
    %160 = vector.broadcast %159 : vector<1x48xf32> to vector<38x48xf32>
    %161 = arith.mulf %158, %160 : vector<38x48xf32>
    %c0_102 = arith.constant 0 : index
    %c0_103 = arith.constant 0 : index
    %162 = vector.load %arg13[%c0_102, %c0_103] : memref<1x48xf32, #tpu.memory_space<vmem>>, vector<1x48xf32>
    %163 = vector.broadcast %162 : vector<1x48xf32> to vector<38x48xf32>
    %164 = arith.addf %161, %163 : vector<38x48xf32>
    %165 = vector.extract_strided_slice %164 {offsets = [0, 0], sizes = [36, 48], strides = [1, 1]} : vector<38x48xf32> to vector<36x48xf32>
    %166 = vector.extract_strided_slice %164 {offsets = [1, 0], sizes = [36, 48], strides = [1, 1]} : vector<38x48xf32> to vector<36x48xf32>
    %167 = arith.maximumf %165, %166 : vector<36x48xf32>
    %168 = vector.extract_strided_slice %164 {offsets = [2, 0], sizes = [36, 48], strides = [1, 1]} : vector<38x48xf32> to vector<36x48xf32>
    %169 = arith.maximumf %167, %168 : vector<36x48xf32>
    %c0_104 = arith.constant 0 : index
    %c0_105 = arith.constant 0 : index
    %170 = vector.load %arg4[%c0_104, %c0_105] : memref<14x36xbf16, #tpu.memory_space<vmem>>, vector<14x36xbf16>
    %171 = arith.truncf %169 : vector<36x48xf32> to vector<36x48xbf16>
    %cst_106 = arith.constant dense<0.000000e+00> : vector<14x48xf32>
    %172 = tpu.matmul %170, %171, %cst_106 {dimension_numbers = #tpu.dot_dimension_numbers<[1], [0], [0], [1], [0, 0, 1, 1], [], []>} : vector<14x36xbf16>, vector<36x48xbf16>, vector<14x48xf32> -> vector<14x48xf32>
    %cst_107 = arith.constant 0.000000e+00 : f32
    %173 = vector.broadcast %cst_107 : f32 to vector<14x48xf32>
    %174 = arith.maximumf %172, %173 : vector<14x48xf32>
    %c0_108 = arith.constant 0 : index
    %c0_109 = arith.constant 0 : index
    %175 = vector.load %arg18[%c0_108, %c0_109] : memref<1x144xf32, #tpu.memory_space<vmem>>, vector<1x144xf32>
    %cst_110 = arith.constant 5.000000e-01 : f32
    %176 = vector.broadcast %cst_110 : f32 to vector<1x144xf32>
    %177 = arith.cmpf ogt, %175, %176 : vector<1x144xf32>
    %178 = arith.truncf %174 : vector<14x48xf32> to vector<14x48xbf16>
    %c0_111 = arith.constant 0 : index
    %c0_112 = arith.constant 0 : index
    %c0_113 = arith.constant 0 : index
    %179 = vector.load %arg14[%c0_111, %c0_112, %c0_113] : memref<2x48x144xbf16, #tpu.memory_space<vmem>>, vector<1x48x144xbf16>
    %180 = vector.shape_cast %179 : vector<1x48x144xbf16> to vector<48x144xbf16>
    %cst_114 = arith.constant dense<0.000000e+00> : vector<14x144xf32>
    %181 = tpu.matmul %178, %180, %cst_114 {dimension_numbers = #tpu.dot_dimension_numbers<[1], [0], [0], [1], [0, 0, 1, 1], [], []>} : vector<14x48xbf16>, vector<48x144xbf16>, vector<14x144xf32> -> vector<14x144xf32>
    %c0_115 = arith.constant 0 : index
    %c0_116 = arith.constant 0 : index
    %c0_117 = arith.constant 0 : index
    %182 = vector.load %arg16[%c0_115, %c0_116, %c0_117] : memref<2x1x144xf32, #tpu.memory_space<vmem>>, vector<1x1x144xf32>
    %183 = vector.shape_cast %182 : vector<1x1x144xf32> to vector<1x144xf32>
    %184 = vector.broadcast %183 : vector<1x144xf32> to vector<14x144xf32>
    %185 = arith.addf %181, %184 : vector<14x144xf32>
    %c0_118 = arith.constant 0 : index
    %c0_119 = arith.constant 0 : index
    %c0_120 = arith.constant 0 : index
    %186 = vector.load %arg17[%c0_118, %c0_119, %c0_120] : memref<2x1x144xf32, #tpu.memory_space<vmem>>, vector<1x1x144xf32>
    %187 = vector.shape_cast %186 : vector<1x1x144xf32> to vector<1x144xf32>
    %cst_121 = arith.constant 0.000000e+00 : f32
    %188 = vector.broadcast %cst_121 : f32 to vector<7x48xf32>
    %189 = vector.extract_strided_slice %185 {offsets = [0, 0], sizes = [7, 144], strides = [1, 1]} : vector<14x144xf32> to vector<7x144xf32>
    %190 = vector.extract_strided_slice %185 {offsets = [7, 0], sizes = [7, 144], strides = [1, 1]} : vector<14x144xf32> to vector<7x144xf32>
    %191 = vector.shape_cast %177 : vector<1x144xi1> to vector<1x144xi1>
    %192 = vector.broadcast %191 : vector<1x144xi1> to vector<7x144xi1>
    %193 = arith.select %192, %189, %190 : vector<7x144xi1>, vector<7x144xf32>
    %194 = arith.truncf %188 : vector<7x48xf32> to vector<7x48xbf16>
    %c0_122 = arith.constant 0 : index
    %c0_123 = arith.constant 0 : index
    %c0_124 = arith.constant 0 : index
    %195 = vector.load %arg15[%c0_122, %c0_123, %c0_124] : memref<2x48x144xbf16, #tpu.memory_space<vmem>>, vector<1x48x144xbf16>
    %196 = vector.shape_cast %195 : vector<1x48x144xbf16> to vector<48x144xbf16>
    %cst_125 = arith.constant dense<0.000000e+00> : vector<7x144xf32>
    %197 = tpu.matmul %194, %196, %cst_125 {dimension_numbers = #tpu.dot_dimension_numbers<[1], [0], [0], [1], [0, 0, 1, 1], [], []>} : vector<7x48xbf16>, vector<48x144xbf16>, vector<7x144xf32> -> vector<7x144xf32>
    %198 = vector.broadcast %187 : vector<1x144xf32> to vector<7x144xf32>
    %199 = arith.addf %197, %198 : vector<7x144xf32>
    %200 = vector.extract_strided_slice %193 {offsets = [0, 0], sizes = [7, 48], strides = [1, 1]} : vector<7x144xf32> to vector<7x48xf32>
    %201 = vector.extract_strided_slice %199 {offsets = [0, 0], sizes = [7, 48], strides = [1, 1]} : vector<7x144xf32> to vector<7x48xf32>
    %202 = arith.addf %200, %201 : vector<7x48xf32>
    %203 = arith.negf %202 : vector<7x48xf32>
    %204 = math.exp %203 : vector<7x48xf32>
    %cst_126 = arith.constant 1.000000e+00 : f32
    %205 = vector.broadcast %cst_126 : f32 to vector<7x48xf32>
    %206 = arith.addf %205, %204 : vector<7x48xf32>
    %207 = arith.divf %205, %206 : vector<7x48xf32>
    %208 = vector.extract_strided_slice %193 {offsets = [0, 48], sizes = [7, 48], strides = [1, 1]} : vector<7x144xf32> to vector<7x48xf32>
    %209 = vector.extract_strided_slice %199 {offsets = [0, 48], sizes = [7, 48], strides = [1, 1]} : vector<7x144xf32> to vector<7x48xf32>
    %210 = arith.addf %208, %209 : vector<7x48xf32>
    %211 = arith.negf %210 : vector<7x48xf32>
    %212 = math.exp %211 : vector<7x48xf32>
    %cst_127 = arith.constant 1.000000e+00 : f32
    %213 = vector.broadcast %cst_127 : f32 to vector<7x48xf32>
    %214 = arith.addf %213, %212 : vector<7x48xf32>
    %215 = arith.divf %213, %214 : vector<7x48xf32>
    %216 = vector.extract_strided_slice %193 {offsets = [0, 96], sizes = [7, 48], strides = [1, 1]} : vector<7x144xf32> to vector<7x48xf32>
    %217 = vector.extract_strided_slice %199 {offsets = [0, 96], sizes = [7, 48], strides = [1, 1]} : vector<7x144xf32> to vector<7x48xf32>
    %218 = arith.mulf %207, %217 : vector<7x48xf32>
    %219 = arith.addf %216, %218 : vector<7x48xf32>
    %220 = math.tanh %219 : vector<7x48xf32>
    %cst_128 = arith.constant 1.000000e+00 : f32
    %221 = vector.broadcast %cst_128 : f32 to vector<7x48xf32>
    %222 = arith.subf %221, %215 : vector<7x48xf32>
    %223 = arith.mulf %222, %220 : vector<7x48xf32>
    %224 = arith.mulf %215, %188 : vector<7x48xf32>
    %225 = arith.addf %223, %224 : vector<7x48xf32>
    %226 = vector.extract_strided_slice %225 {offsets = [0, 0], sizes = [7, 24], strides = [1, 1]} : vector<7x48xf32> to vector<7x24xf32>
    %227 = vector.extract_strided_slice %225 {offsets = [0, 24], sizes = [7, 24], strides = [1, 1]} : vector<7x48xf32> to vector<7x24xf32>
    %228 = vector.extract_strided_slice %185 {offsets = [7, 0], sizes = [7, 144], strides = [1, 1]} : vector<14x144xf32> to vector<7x144xf32>
    %229 = vector.extract_strided_slice %185 {offsets = [0, 0], sizes = [7, 144], strides = [1, 1]} : vector<14x144xf32> to vector<7x144xf32>
    %230 = vector.shape_cast %177 : vector<1x144xi1> to vector<1x144xi1>
    %231 = vector.broadcast %230 : vector<1x144xi1> to vector<7x144xi1>
    %232 = arith.select %231, %228, %229 : vector<7x144xi1>, vector<7x144xf32>
    %233 = arith.truncf %225 : vector<7x48xf32> to vector<7x48xbf16>
    %c0_129 = arith.constant 0 : index
    %c0_130 = arith.constant 0 : index
    %c0_131 = arith.constant 0 : index
    %234 = vector.load %arg15[%c0_129, %c0_130, %c0_131] : memref<2x48x144xbf16, #tpu.memory_space<vmem>>, vector<1x48x144xbf16>
    %235 = vector.shape_cast %234 : vector<1x48x144xbf16> to vector<48x144xbf16>
    %cst_132 = arith.constant dense<0.000000e+00> : vector<7x144xf32>
    %236 = tpu.matmul %233, %235, %cst_132 {dimension_numbers = #tpu.dot_dimension_numbers<[1], [0], [0], [1], [0, 0, 1, 1], [], []>} : vector<7x48xbf16>, vector<48x144xbf16>, vector<7x144xf32> -> vector<7x144xf32>
    %237 = vector.broadcast %187 : vector<1x144xf32> to vector<7x144xf32>
    %238 = arith.addf %236, %237 : vector<7x144xf32>
    %239 = vector.extract_strided_slice %232 {offsets = [0, 0], sizes = [7, 48], strides = [1, 1]} : vector<7x144xf32> to vector<7x48xf32>
    %240 = vector.extract_strided_slice %238 {offsets = [0, 0], sizes = [7, 48], strides = [1, 1]} : vector<7x144xf32> to vector<7x48xf32>
    %241 = arith.addf %239, %240 : vector<7x48xf32>
    %242 = arith.negf %241 : vector<7x48xf32>
    %243 = math.exp %242 : vector<7x48xf32>
    %cst_133 = arith.constant 1.000000e+00 : f32
    %244 = vector.broadcast %cst_133 : f32 to vector<7x48xf32>
    %245 = arith.addf %244, %243 : vector<7x48xf32>
    %246 = arith.divf %244, %245 : vector<7x48xf32>
    %247 = vector.extract_strided_slice %232 {offsets = [0, 48], sizes = [7, 48], strides = [1, 1]} : vector<7x144xf32> to vector<7x48xf32>
    %248 = vector.extract_strided_slice %238 {offsets = [0, 48], sizes = [7, 48], strides = [1, 1]} : vector<7x144xf32> to vector<7x48xf32>
    %249 = arith.addf %247, %248 : vector<7x48xf32>
    %250 = arith.negf %249 : vector<7x48xf32>
    %251 = math.exp %250 : vector<7x48xf32>
    %cst_134 = arith.constant 1.000000e+00 : f32
    %252 = vector.broadcast %cst_134 : f32 to vector<7x48xf32>
    %253 = arith.addf %252, %251 : vector<7x48xf32>
    %254 = arith.divf %252, %253 : vector<7x48xf32>
    %255 = vector.extract_strided_slice %232 {offsets = [0, 96], sizes = [7, 48], strides = [1, 1]} : vector<7x144xf32> to vector<7x48xf32>
    %256 = vector.extract_strided_slice %238 {offsets = [0, 96], sizes = [7, 48], strides = [1, 1]} : vector<7x144xf32> to vector<7x48xf32>
    %257 = arith.mulf %246, %256 : vector<7x48xf32>
    %258 = arith.addf %255, %257 : vector<7x48xf32>
    %259 = math.tanh %258 : vector<7x48xf32>
    %cst_135 = arith.constant 1.000000e+00 : f32
    %260 = vector.broadcast %cst_135 : f32 to vector<7x48xf32>
    %261 = arith.subf %260, %254 : vector<7x48xf32>
    %262 = arith.mulf %261, %259 : vector<7x48xf32>
    %263 = arith.mulf %254, %225 : vector<7x48xf32>
    %264 = arith.addf %262, %263 : vector<7x48xf32>
    %265 = vector.extract_strided_slice %264 {offsets = [0, 0], sizes = [7, 24], strides = [1, 1]} : vector<7x48xf32> to vector<7x24xf32>
    %266 = vector.extract_strided_slice %264 {offsets = [0, 24], sizes = [7, 24], strides = [1, 1]} : vector<7x48xf32> to vector<7x24xf32>
    %267 = tpu.concatenate %226, %266 in 1 : vector<7x24xf32>, vector<7x24xf32> -> vector<7x48xf32>
    %268 = tpu.concatenate %265, %227 in 1 : vector<7x24xf32>, vector<7x24xf32> -> vector<7x48xf32>
    %269 = tpu.concatenate %267, %268 in 0 : vector<7x48xf32>, vector<7x48xf32> -> vector<14x48xf32>
    %270 = arith.truncf %269 : vector<14x48xf32> to vector<14x48xbf16>
    %c1_136 = arith.constant 1 : index
    %c0_137 = arith.constant 0 : index
    %c0_138 = arith.constant 0 : index
    %271 = vector.load %arg14[%c1_136, %c0_137, %c0_138] : memref<2x48x144xbf16, #tpu.memory_space<vmem>>, vector<1x48x144xbf16>
    %272 = vector.shape_cast %271 : vector<1x48x144xbf16> to vector<48x144xbf16>
    %cst_139 = arith.constant dense<0.000000e+00> : vector<14x144xf32>
    %273 = tpu.matmul %270, %272, %cst_139 {dimension_numbers = #tpu.dot_dimension_numbers<[1], [0], [0], [1], [0, 0, 1, 1], [], []>} : vector<14x48xbf16>, vector<48x144xbf16>, vector<14x144xf32> -> vector<14x144xf32>
    %c1_140 = arith.constant 1 : index
    %c0_141 = arith.constant 0 : index
    %c0_142 = arith.constant 0 : index
    %274 = vector.load %arg16[%c1_140, %c0_141, %c0_142] : memref<2x1x144xf32, #tpu.memory_space<vmem>>, vector<1x1x144xf32>
    %275 = vector.shape_cast %274 : vector<1x1x144xf32> to vector<1x144xf32>
    %276 = vector.broadcast %275 : vector<1x144xf32> to vector<14x144xf32>
    %277 = arith.addf %273, %276 : vector<14x144xf32>
    %c1_143 = arith.constant 1 : index
    %c0_144 = arith.constant 0 : index
    %c0_145 = arith.constant 0 : index
    %278 = vector.load %arg17[%c1_143, %c0_144, %c0_145] : memref<2x1x144xf32, #tpu.memory_space<vmem>>, vector<1x1x144xf32>
    %279 = vector.shape_cast %278 : vector<1x1x144xf32> to vector<1x144xf32>
    %cst_146 = arith.constant 0.000000e+00 : f32
    %280 = vector.broadcast %cst_146 : f32 to vector<7x48xf32>
    %281 = vector.extract_strided_slice %277 {offsets = [0, 0], sizes = [7, 144], strides = [1, 1]} : vector<14x144xf32> to vector<7x144xf32>
    %282 = vector.extract_strided_slice %277 {offsets = [7, 0], sizes = [7, 144], strides = [1, 1]} : vector<14x144xf32> to vector<7x144xf32>
    %283 = vector.shape_cast %177 : vector<1x144xi1> to vector<1x144xi1>
    %284 = vector.broadcast %283 : vector<1x144xi1> to vector<7x144xi1>
    %285 = arith.select %284, %281, %282 : vector<7x144xi1>, vector<7x144xf32>
    %286 = arith.truncf %280 : vector<7x48xf32> to vector<7x48xbf16>
    %c1_147 = arith.constant 1 : index
    %c0_148 = arith.constant 0 : index
    %c0_149 = arith.constant 0 : index
    %287 = vector.load %arg15[%c1_147, %c0_148, %c0_149] : memref<2x48x144xbf16, #tpu.memory_space<vmem>>, vector<1x48x144xbf16>
    %288 = vector.shape_cast %287 : vector<1x48x144xbf16> to vector<48x144xbf16>
    %cst_150 = arith.constant dense<0.000000e+00> : vector<7x144xf32>
    %289 = tpu.matmul %286, %288, %cst_150 {dimension_numbers = #tpu.dot_dimension_numbers<[1], [0], [0], [1], [0, 0, 1, 1], [], []>} : vector<7x48xbf16>, vector<48x144xbf16>, vector<7x144xf32> -> vector<7x144xf32>
    %290 = vector.broadcast %279 : vector<1x144xf32> to vector<7x144xf32>
    %291 = arith.addf %289, %290 : vector<7x144xf32>
    %292 = vector.extract_strided_slice %285 {offsets = [0, 0], sizes = [7, 48], strides = [1, 1]} : vector<7x144xf32> to vector<7x48xf32>
    %293 = vector.extract_strided_slice %291 {offsets = [0, 0], sizes = [7, 48], strides = [1, 1]} : vector<7x144xf32> to vector<7x48xf32>
    %294 = arith.addf %292, %293 : vector<7x48xf32>
    %295 = arith.negf %294 : vector<7x48xf32>
    %296 = math.exp %295 : vector<7x48xf32>
    %cst_151 = arith.constant 1.000000e+00 : f32
    %297 = vector.broadcast %cst_151 : f32 to vector<7x48xf32>
    %298 = arith.addf %297, %296 : vector<7x48xf32>
    %299 = arith.divf %297, %298 : vector<7x48xf32>
    %300 = vector.extract_strided_slice %285 {offsets = [0, 48], sizes = [7, 48], strides = [1, 1]} : vector<7x144xf32> to vector<7x48xf32>
    %301 = vector.extract_strided_slice %291 {offsets = [0, 48], sizes = [7, 48], strides = [1, 1]} : vector<7x144xf32> to vector<7x48xf32>
    %302 = arith.addf %300, %301 : vector<7x48xf32>
    %303 = arith.negf %302 : vector<7x48xf32>
    %304 = math.exp %303 : vector<7x48xf32>
    %cst_152 = arith.constant 1.000000e+00 : f32
    %305 = vector.broadcast %cst_152 : f32 to vector<7x48xf32>
    %306 = arith.addf %305, %304 : vector<7x48xf32>
    %307 = arith.divf %305, %306 : vector<7x48xf32>
    %308 = vector.extract_strided_slice %285 {offsets = [0, 96], sizes = [7, 48], strides = [1, 1]} : vector<7x144xf32> to vector<7x48xf32>
    %309 = vector.extract_strided_slice %291 {offsets = [0, 96], sizes = [7, 48], strides = [1, 1]} : vector<7x144xf32> to vector<7x48xf32>
    %310 = arith.mulf %299, %309 : vector<7x48xf32>
    %311 = arith.addf %308, %310 : vector<7x48xf32>
    %312 = math.tanh %311 : vector<7x48xf32>
    %cst_153 = arith.constant 1.000000e+00 : f32
    %313 = vector.broadcast %cst_153 : f32 to vector<7x48xf32>
    %314 = arith.subf %313, %307 : vector<7x48xf32>
    %315 = arith.mulf %314, %312 : vector<7x48xf32>
    %316 = arith.mulf %307, %280 : vector<7x48xf32>
    %317 = arith.addf %315, %316 : vector<7x48xf32>
    %318 = vector.extract_strided_slice %317 {offsets = [0, 0], sizes = [7, 24], strides = [1, 1]} : vector<7x48xf32> to vector<7x24xf32>
    %319 = vector.extract_strided_slice %317 {offsets = [0, 24], sizes = [7, 24], strides = [1, 1]} : vector<7x48xf32> to vector<7x24xf32>
    %320 = vector.extract_strided_slice %277 {offsets = [7, 0], sizes = [7, 144], strides = [1, 1]} : vector<14x144xf32> to vector<7x144xf32>
    %321 = vector.extract_strided_slice %277 {offsets = [0, 0], sizes = [7, 144], strides = [1, 1]} : vector<14x144xf32> to vector<7x144xf32>
    %322 = vector.shape_cast %177 : vector<1x144xi1> to vector<1x144xi1>
    %323 = vector.broadcast %322 : vector<1x144xi1> to vector<7x144xi1>
    %324 = arith.select %323, %320, %321 : vector<7x144xi1>, vector<7x144xf32>
    %325 = arith.truncf %317 : vector<7x48xf32> to vector<7x48xbf16>
    %c1_154 = arith.constant 1 : index
    %c0_155 = arith.constant 0 : index
    %c0_156 = arith.constant 0 : index
    %326 = vector.load %arg15[%c1_154, %c0_155, %c0_156] : memref<2x48x144xbf16, #tpu.memory_space<vmem>>, vector<1x48x144xbf16>
    %327 = vector.shape_cast %326 : vector<1x48x144xbf16> to vector<48x144xbf16>
    %cst_157 = arith.constant dense<0.000000e+00> : vector<7x144xf32>
    %328 = tpu.matmul %325, %327, %cst_157 {dimension_numbers = #tpu.dot_dimension_numbers<[1], [0], [0], [1], [0, 0, 1, 1], [], []>} : vector<7x48xbf16>, vector<48x144xbf16>, vector<7x144xf32> -> vector<7x144xf32>
    %329 = vector.broadcast %279 : vector<1x144xf32> to vector<7x144xf32>
    %330 = arith.addf %328, %329 : vector<7x144xf32>
    %331 = vector.extract_strided_slice %324 {offsets = [0, 0], sizes = [7, 48], strides = [1, 1]} : vector<7x144xf32> to vector<7x48xf32>
    %332 = vector.extract_strided_slice %330 {offsets = [0, 0], sizes = [7, 48], strides = [1, 1]} : vector<7x144xf32> to vector<7x48xf32>
    %333 = arith.addf %331, %332 : vector<7x48xf32>
    %334 = arith.negf %333 : vector<7x48xf32>
    %335 = math.exp %334 : vector<7x48xf32>
    %cst_158 = arith.constant 1.000000e+00 : f32
    %336 = vector.broadcast %cst_158 : f32 to vector<7x48xf32>
    %337 = arith.addf %336, %335 : vector<7x48xf32>
    %338 = arith.divf %336, %337 : vector<7x48xf32>
    %339 = vector.extract_strided_slice %324 {offsets = [0, 48], sizes = [7, 48], strides = [1, 1]} : vector<7x144xf32> to vector<7x48xf32>
    %340 = vector.extract_strided_slice %330 {offsets = [0, 48], sizes = [7, 48], strides = [1, 1]} : vector<7x144xf32> to vector<7x48xf32>
    %341 = arith.addf %339, %340 : vector<7x48xf32>
    %342 = arith.negf %341 : vector<7x48xf32>
    %343 = math.exp %342 : vector<7x48xf32>
    %cst_159 = arith.constant 1.000000e+00 : f32
    %344 = vector.broadcast %cst_159 : f32 to vector<7x48xf32>
    %345 = arith.addf %344, %343 : vector<7x48xf32>
    %346 = arith.divf %344, %345 : vector<7x48xf32>
    %347 = vector.extract_strided_slice %324 {offsets = [0, 96], sizes = [7, 48], strides = [1, 1]} : vector<7x144xf32> to vector<7x48xf32>
    %348 = vector.extract_strided_slice %330 {offsets = [0, 96], sizes = [7, 48], strides = [1, 1]} : vector<7x144xf32> to vector<7x48xf32>
    %349 = arith.mulf %338, %348 : vector<7x48xf32>
    %350 = arith.addf %347, %349 : vector<7x48xf32>
    %351 = math.tanh %350 : vector<7x48xf32>
    %cst_160 = arith.constant 1.000000e+00 : f32
    %352 = vector.broadcast %cst_160 : f32 to vector<7x48xf32>
    %353 = arith.subf %352, %346 : vector<7x48xf32>
    %354 = arith.mulf %353, %351 : vector<7x48xf32>
    %355 = arith.mulf %346, %317 : vector<7x48xf32>
    %356 = arith.addf %354, %355 : vector<7x48xf32>
    %357 = vector.extract_strided_slice %356 {offsets = [0, 0], sizes = [7, 24], strides = [1, 1]} : vector<7x48xf32> to vector<7x24xf32>
    %358 = vector.extract_strided_slice %356 {offsets = [0, 24], sizes = [7, 24], strides = [1, 1]} : vector<7x48xf32> to vector<7x24xf32>
    %359 = tpu.concatenate %318, %358 in 1 : vector<7x24xf32>, vector<7x24xf32> -> vector<7x48xf32>
    %360 = tpu.concatenate %357, %319 in 1 : vector<7x24xf32>, vector<7x24xf32> -> vector<7x48xf32>
    %361 = tpu.concatenate %359, %360 in 0 : vector<7x48xf32>, vector<7x48xf32> -> vector<14x48xf32>
    %362 = vector.extract_strided_slice %361 {offsets = [0, 0], sizes = [1, 48], strides = [1, 1]} : vector<14x48xf32> to vector<1x48xf32>
    %363 = vector.extract_strided_slice %361 {offsets = [7, 0], sizes = [1, 48], strides = [1, 1]} : vector<14x48xf32> to vector<1x48xf32>
    %364 = tpu.concatenate %362, %363 in 0 : vector<1x48xf32>, vector<1x48xf32> -> vector<2x48xf32>
    %365 = vector.extract_strided_slice %361 {offsets = [1, 0], sizes = [1, 48], strides = [1, 1]} : vector<14x48xf32> to vector<1x48xf32>
    %366 = vector.extract_strided_slice %361 {offsets = [8, 0], sizes = [1, 48], strides = [1, 1]} : vector<14x48xf32> to vector<1x48xf32>
    %367 = tpu.concatenate %365, %366 in 0 : vector<1x48xf32>, vector<1x48xf32> -> vector<2x48xf32>
    %368 = vector.extract_strided_slice %361 {offsets = [2, 0], sizes = [1, 48], strides = [1, 1]} : vector<14x48xf32> to vector<1x48xf32>
    %369 = vector.extract_strided_slice %361 {offsets = [9, 0], sizes = [1, 48], strides = [1, 1]} : vector<14x48xf32> to vector<1x48xf32>
    %370 = tpu.concatenate %368, %369 in 0 : vector<1x48xf32>, vector<1x48xf32> -> vector<2x48xf32>
    %371 = vector.extract_strided_slice %361 {offsets = [3, 0], sizes = [1, 48], strides = [1, 1]} : vector<14x48xf32> to vector<1x48xf32>
    %372 = vector.extract_strided_slice %361 {offsets = [10, 0], sizes = [1, 48], strides = [1, 1]} : vector<14x48xf32> to vector<1x48xf32>
    %373 = tpu.concatenate %371, %372 in 0 : vector<1x48xf32>, vector<1x48xf32> -> vector<2x48xf32>
    %374 = vector.extract_strided_slice %361 {offsets = [4, 0], sizes = [1, 48], strides = [1, 1]} : vector<14x48xf32> to vector<1x48xf32>
    %375 = vector.extract_strided_slice %361 {offsets = [11, 0], sizes = [1, 48], strides = [1, 1]} : vector<14x48xf32> to vector<1x48xf32>
    %376 = tpu.concatenate %374, %375 in 0 : vector<1x48xf32>, vector<1x48xf32> -> vector<2x48xf32>
    %377 = vector.extract_strided_slice %361 {offsets = [5, 0], sizes = [1, 48], strides = [1, 1]} : vector<14x48xf32> to vector<1x48xf32>
    %378 = vector.extract_strided_slice %361 {offsets = [12, 0], sizes = [1, 48], strides = [1, 1]} : vector<14x48xf32> to vector<1x48xf32>
    %379 = tpu.concatenate %377, %378 in 0 : vector<1x48xf32>, vector<1x48xf32> -> vector<2x48xf32>
    %380 = vector.extract_strided_slice %361 {offsets = [6, 0], sizes = [1, 48], strides = [1, 1]} : vector<14x48xf32> to vector<1x48xf32>
    %381 = vector.extract_strided_slice %361 {offsets = [13, 0], sizes = [1, 48], strides = [1, 1]} : vector<14x48xf32> to vector<1x48xf32>
    %382 = tpu.concatenate %380, %381 in 0 : vector<1x48xf32>, vector<1x48xf32> -> vector<2x48xf32>
    %383 = tpu.concatenate %364, %367, %370, %373, %376, %379, %382 in 1 : vector<2x48xf32>, vector<2x48xf32>, vector<2x48xf32>, vector<2x48xf32>, vector<2x48xf32>, vector<2x48xf32>, vector<2x48xf32> -> vector<2x336xf32>
    %384 = arith.truncf %383 : vector<2x336xf32> to vector<2x336xbf16>
    %c0_161 = arith.constant 0 : index
    %c0_162 = arith.constant 0 : index
    %385 = vector.load %arg19[%c0_161, %c0_162] : memref<336x32xbf16, #tpu.memory_space<vmem>>, vector<336x32xbf16>
    %cst_163 = arith.constant dense<0.000000e+00> : vector<2x32xf32>
    %386 = tpu.matmul %384, %385, %cst_163 {dimension_numbers = #tpu.dot_dimension_numbers<[1], [0], [0], [1], [0, 0, 1, 1], [], []>} : vector<2x336xbf16>, vector<336x32xbf16>, vector<2x32xf32> -> vector<2x32xf32>
    %c0_164 = arith.constant 0 : index
    %c0_165 = arith.constant 0 : index
    %387 = vector.load %arg20[%c0_164, %c0_165] : memref<1x32xf32, #tpu.memory_space<vmem>>, vector<1x32xf32>
    %388 = vector.broadcast %387 : vector<1x32xf32> to vector<2x32xf32>
    %389 = arith.mulf %386, %388 : vector<2x32xf32>
    %c0_166 = arith.constant 0 : index
    %c0_167 = arith.constant 0 : index
    %390 = vector.load %arg21[%c0_166, %c0_167] : memref<1x32xf32, #tpu.memory_space<vmem>>, vector<1x32xf32>
    %391 = vector.broadcast %390 : vector<1x32xf32> to vector<2x32xf32>
    %392 = arith.addf %389, %391 : vector<2x32xf32>
    %cst_168 = arith.constant 0.000000e+00 : f32
    %393 = vector.broadcast %cst_168 : f32 to vector<2x32xf32>
    %394 = arith.maximumf %392, %393 : vector<2x32xf32>
    %395 = arith.truncf %394 : vector<2x32xf32> to vector<2x32xbf16>
    %c0_169 = arith.constant 0 : index
    %c0_170 = arith.constant 0 : index
    %396 = vector.load %arg22[%c0_169, %c0_170] : memref<32x1xbf16, #tpu.memory_space<vmem>>, vector<32x1xbf16>
    %cst_171 = arith.constant dense<0.000000e+00> : vector<2x1xf32>
    %397 = tpu.matmul %395, %396, %cst_171 {dimension_numbers = #tpu.dot_dimension_numbers<[1], [0], [0], [1], [0, 0, 1, 1], [], []>} : vector<2x32xbf16>, vector<32x1xbf16>, vector<2x1xf32> -> vector<2x1xf32>
    %c0_172 = arith.constant 0 : index
    %c0_173 = arith.constant 0 : index
    %398 = vector.load %arg23[%c0_172, %c0_173] : memref<1x1xf32, #tpu.memory_space<vmem>>, vector<1x1xf32>
    %399 = vector.broadcast %398 : vector<1x1xf32> to vector<2x1xf32>
    %400 = arith.addf %397, %399 : vector<2x1xf32>
    %c0_174 = arith.constant 0 : index
    %c0_175 = arith.constant 0 : index
    %401 = vector.load %arg24[%c0_174, %c0_175] : memref<2x1xf32, #tpu.memory_space<vmem>>, vector<2x1xf32>
    tpu.vector_store %arg24[%c0_174, %c0_175], %400 {strides = array<i32>} : memref<2x1xf32, #tpu.memory_space<vmem>>, vector<2x1xf32>,
    return
  }
}

</mosaic_0001>

<llo_original>
// kernel: embd_mhsa_forward.1
$region0: #{embd_mhsa_forward.1}
  #allocation0 [shape = 'u32[]', space=smem, size = 0x4, offset = 0x4, fixed_abs, tag = 'smem constant byte address 0x4 - core index']
  #allocation1 [shape = 'u32[72,128]{1,0:T(1,128)}', space=vmem, size = 0x9000, scoped, tag = 'internal scratch']
  #allocation2 [shape = 'f32[1,1]{1,0:T(1,128)S(1)}', space=vmem, size = 0x200, scoped, tag = 'scoped memory for embd_mhsa_forward.1']
  %s0 = inlined_call_operand.vmem [shape: bf16[78,4], index: 0, kind: input, shape index: {}]
  %s1 = inlined_call_operand.vmem [shape: bf16[4,128], index: 1, kind: input, shape index: {}]
  %s2 = inlined_call_operand.vmem [shape: bf16[78,72], index: 2, kind: input, shape index: {}]
  %s3 = inlined_call_operand.vmem [shape: bf16[44,70], index: 3, kind: input, shape index: {}]
  %s4 = inlined_call_operand.vmem [shape: bf16[14,36], index: 4, kind: input, shape index: {}]
  %s5 = inlined_call_operand.vmem [shape: bf16[7,128,192], index: 5, kind: input, shape index: {}]
  %s6 = inlined_call_operand.vmem [shape: f32[1,192], index: 6, kind: input, shape index: {}]
  %s7 = inlined_call_operand.vmem [shape: f32[1,192], index: 7, kind: input, shape index: {}]
  %s8 = inlined_call_operand.vmem [shape: bf16[7,192,96], index: 8, kind: input, shape index: {}]
  %s9 = inlined_call_operand.vmem [shape: f32[1,96], index: 9, kind: input, shape index: {}]
  %s10 = inlined_call_operand.vmem [shape: f32[1,96], index: 10, kind: input, shape index: {}]
  %s11 = inlined_call_operand.vmem [shape: bf16[7,96,48], index: 11, kind: input, shape index: {}]
  %s12 = inlined_call_operand.vmem [shape: f32[1,48], index: 12, kind: input, shape index: {}]
  %s13 = inlined_call_operand.vmem [shape: f32[1,48], index: 13, kind: input, shape index: {}]
  %s14 = inlined_call_operand.vmem [shape: bf16[2,48,144], index: 14, kind: input, shape index: {}]
  %s15 = inlined_call_operand.vmem [shape: bf16[2,48,144], index: 15, kind: input, shape index: {}]
  %s16 = inlined_call_operand.vmem [shape: f32[2,1,144], index: 16, kind: input, shape index: {}]
  %s17 = inlined_call_operand.vmem [shape: f32[2,1,144], index: 17, kind: input, shape index: {}]
  %s18 = inlined_call_operand.vmem [shape: f32[1,144], index: 18, kind: input, shape index: {}]
  %s19 = inlined_call_operand.vmem [shape: bf16[336,32], index: 19, kind: input, shape index: {}]
  %s20 = inlined_call_operand.vmem [shape: f32[1,32], index: 20, kind: input, shape index: {}]
  %s21 = inlined_call_operand.vmem [shape: f32[1,32], index: 21, kind: input, shape index: {}]
  %s22 = inlined_call_operand.vmem [shape: bf16[32,1], index: 22, kind: input, shape index: {}]
  %s23 = inlined_call_operand.<no memory space> [shape: f32[1,1], index: 23, kind: input, shape index: {}]
  %s24 = inlined_call_operand.vmem [shape: f32[2,1], index: 24, kind: output, shape index: {}]
  %s25 = sld [smem:[#allocation0]]
  $region106: #{embd_mhsa_forward.1} parent=0
    _
  %s27 = ssub.s32 1, %s25
  %s28 = scalar_select 0, %s27, %s25
  %v29 = vstv %s23
  %30 = vst [vmem:[#allocation2] sm:$0x1] %v29
  // Predicated region
  $region2: #{embd_mhsa_forward.1} parent=0 // pred_check
    _
  $region3: #{embd_mhsa_forward.1} parent=0 // pred_check_branch
    %32 = sbr.rel (0) target = $region5
  $region4: #{embd_mhsa_forward.1} parent=0 // pred_region
    _
  $region5: #{embd_mhsa_forward.1} parent=0 // pred_fallthru
    _
  // Predicated region
  $region6: #{embd_mhsa_forward.1} parent=0 // pred_check
    _
  $region7: #{embd_mhsa_forward.1} parent=0 // pred_check_branch
    %34 = sbr.rel (0) target = $region9
  $region8: #{embd_mhsa_forward.1} parent=0 // pred_region
    _
  $region9: #{embd_mhsa_forward.1} parent=0 // pred_fallthru
    _
  // Predicated region
  $region10: #{embd_mhsa_forward.1} parent=0 // pred_check
    _
  $region11: #{embd_mhsa_forward.1} parent=0 // pred_check_branch
    %36 = sbr.rel (0) target = $region13
  $region12: #{embd_mhsa_forward.1} parent=0 // pred_region
    _
  $region13: #{embd_mhsa_forward.1} parent=0 // pred_fallthru
    _
  // Predicated region
  $region14: #{embd_mhsa_forward.1} parent=0 // pred_check
    _
  $region15: #{embd_mhsa_forward.1} parent=0 // pred_check_branch
    %38 = sbr.rel (0) target = $region17
  $region16: #{embd_mhsa_forward.1} parent=0 // pred_region
    _
  $region17: #{embd_mhsa_forward.1} parent=0 // pred_fallthru
    _
  // Predicated region
  $region18: #{embd_mhsa_forward.1} parent=0 // pred_check
    _
  $region19: #{embd_mhsa_forward.1} parent=0 // pred_check_branch
    %40 = sbr.rel (0) target = $region21
  $region20: #{embd_mhsa_forward.1} parent=0 // pred_region
    _
  $region21: #{embd_mhsa_forward.1} parent=0 // pred_fallthru
    _
  // Predicated region
  $region22: #{embd_mhsa_forward.1} parent=0 // pred_check
    _
  $region23: #{embd_mhsa_forward.1} parent=0 // pred_check_branch
    %42 = sbr.rel (0) target = $region25
  $region24: #{embd_mhsa_forward.1} parent=0 // pred_region
    _
  $region25: #{embd_mhsa_forward.1} parent=0 // pred_fallthru
    _
  // Predicated region
  $region26: #{embd_mhsa_forward.1} parent=0 // pred_check
    _
  $region27: #{embd_mhsa_forward.1} parent=0 // pred_check_branch
    %44 = sbr.rel (0) target = $region29
  $region28: #{embd_mhsa_forward.1} parent=0 // pred_region
    _
  $region29: #{embd_mhsa_forward.1} parent=0 // pred_fallthru
    _
  // Predicated region
  $region30: #{embd_mhsa_forward.1} parent=0 // pred_check
    _
  $region31: #{embd_mhsa_forward.1} parent=0 // pred_check_branch
    %46 = sbr.rel (0) target = $region33
  $region32: #{embd_mhsa_forward.1} parent=0 // pred_region
    _
  $region33: #{embd_mhsa_forward.1} parent=0 // pred_fallthru
    _
  // Predicated region
  $region34: #{embd_mhsa_forward.1} parent=0 // pred_check
    _
  $region35: #{embd_mhsa_forward.1} parent=0 // pred_check_branch
    %48 = sbr.rel (0) target = $region37
  $region36: #{embd_mhsa_forward.1} parent=0 // pred_region
    _
  $region37: #{embd_mhsa_forward.1} parent=0 // pred_fallthru
    _
  // Predicated region
  $region38: #{embd_mhsa_forward.1} parent=0 // pred_check
    _
  $region39: #{embd_mhsa_forward.1} parent=0 // pred_check_branch
    %50 = sbr.rel (0) target = $region41
  $region40: #{embd_mhsa_forward.1} parent=0 // pred_region
    _
  $region41: #{embd_mhsa_forward.1} parent=0 // pred_fallthru
    _
  // Predicated region
  $region42: #{embd_mhsa_forward.1} parent=0 // pred_check
    _
  $region43: #{embd_mhsa_forward.1} parent=0 // pred_check_branch
    %52 = sbr.rel (0) target = $region45
  $region44: #{embd_mhsa_forward.1} parent=0 // pred_region
    _
  $region45: #{embd_mhsa_forward.1} parent=0 // pred_fallthru
    _
  // Predicated region
  $region46: #{embd_mhsa_forward.1} parent=0 // pred_check
    _
  $region47: #{embd_mhsa_forward.1} parent=0 // pred_check_branch
    %54 = sbr.rel (0) target = $region49
  $region48: #{embd_mhsa_forward.1} parent=0 // pred_region
    _
  $region49: #{embd_mhsa_forward.1} parent=0 // pred_fallthru
    _
  // Predicated region
  $region50: #{embd_mhsa_forward.1} parent=0 // pred_check
    _
  $region51: #{embd_mhsa_forward.1} parent=0 // pred_check_branch
    %56 = sbr.rel (0) target = $region53
  $region52: #{embd_mhsa_forward.1} parent=0 // pred_region
    _
  $region53: #{embd_mhsa_forward.1} parent=0 // pred_fallthru
    _
  // Predicated region
  $region54: #{embd_mhsa_forward.1} parent=0 // pred_check
    _
  $region55: #{embd_mhsa_forward.1} parent=0 // pred_check_branch
    %58 = sbr.rel (0) target = $region57
  $region56: #{embd_mhsa_forward.1} parent=0 // pred_region
    _
  $region57: #{embd_mhsa_forward.1} parent=0 // pred_fallthru
    _
  // Predicated region
  $region58: #{embd_mhsa_forward.1} parent=0 // pred_check
    _
  $region59: #{embd_mhsa_forward.1} parent=0 // pred_check_branch
    %60 = sbr.rel (0) target = $region61
  $region60: #{embd_mhsa_forward.1} parent=0 // pred_region
    _
  $region61: #{embd_mhsa_forward.1} parent=0 // pred_fallthru
    _
  // Predicated region
  $region62: #{embd_mhsa_forward.1} parent=0 // pred_check
    _
  $region63: #{embd_mhsa_forward.1} parent=0 // pred_check_branch
    %62 = sbr.rel (0) target = $region65
  $region64: #{embd_mhsa_forward.1} parent=0 // pred_region
    _
  $region65: #{embd_mhsa_forward.1} parent=0 // pred_fallthru
    _
  // Predicated region
  $region66: #{embd_mhsa_forward.1} parent=0 // pred_check
    _
  $region67: #{embd_mhsa_forward.1} parent=0 // pred_check_branch
    %64 = sbr.rel (0) target = $region69
  $region68: #{embd_mhsa_forward.1} parent=0 // pred_region
    _
  $region69: #{embd_mhsa_forward.1} parent=0 // pred_fallthru
    _
  // Predicated region
  $region70: #{embd_mhsa_forward.1} parent=0 // pred_check
    _
  $region71: #{embd_mhsa_forward.1} parent=0 // pred_check_branch
    %66 = sbr.rel (0) target = $region73
  $region72: #{embd_mhsa_forward.1} parent=0 // pred_region
    _
  $region73: #{embd_mhsa_forward.1} parent=0 // pred_fallthru
    _
  // Predicated region
  $region74: #{embd_mhsa_forward.1} parent=0 // pred_check
    _
  $region75: #{embd_mhsa_forward.1} parent=0 // pred_check_branch
    %68 = sbr.rel (0) target = $region77
  $region76: #{embd_mhsa_forward.1} parent=0 // pred_region
    _
  $region77: #{embd_mhsa_forward.1} parent=0 // pred_fallthru
    _
  // Predicated region
  $region78: #{embd_mhsa_forward.1} parent=0 // pred_check
    _
  $region79: #{embd_mhsa_forward.1} parent=0 // pred_check_branch
    %70 = sbr.rel (0) target = $region81
  $region80: #{embd_mhsa_forward.1} parent=0 // pred_region
    _
  $region81: #{embd_mhsa_forward.1} parent=0 // pred_fallthru
    _
  // Predicated region
  $region82: #{embd_mhsa_forward.1} parent=0 // pred_check
    _
  $region83: #{embd_mhsa_forward.1} parent=0 // pred_check_branch
    %72 = sbr.rel (0) target = $region85
  $region84: #{embd_mhsa_forward.1} parent=0 // pred_region
    _
  $region85: #{embd_mhsa_forward.1} parent=0 // pred_fallthru
    _
  // Predicated region
  $region86: #{embd_mhsa_forward.1} parent=0 // pred_check
    _
  $region87: #{embd_mhsa_forward.1} parent=0 // pred_check_branch
    %74 = sbr.rel (0) target = $region89
  $region88: #{embd_mhsa_forward.1} parent=0 // pred_region
    _
  $region89: #{embd_mhsa_forward.1} parent=0 // pred_fallthru
    _
  // Predicated region
  $region90: #{embd_mhsa_forward.1} parent=0 // pred_check
    _
  $region91: #{embd_mhsa_forward.1} parent=0 // pred_check_branch
    %76 = sbr.rel (0) target = $region93
  $region92: #{embd_mhsa_forward.1} parent=0 // pred_region
    _
  $region93: #{embd_mhsa_forward.1} parent=0 // pred_fallthru
    _
  // Predicated region
  $region94: #{embd_mhsa_forward.1} parent=0 // pred_check
    _
  $region95: #{embd_mhsa_forward.1} parent=0 // pred_check_branch
    %78 = sbr.rel (0) target = $region97
  $region96: #{embd_mhsa_forward.1} parent=0 // pred_region
    _
  $region97: #{embd_mhsa_forward.1} parent=0 // pred_fallthru
    _
  %v80 = vld [vmem:[%s0] sm:$0xf]
  %v81 = vld [vmem:[%s0 + $0x4] sm:$0xf]
  %v82 = vld [vmem:[%s0 + $0x8] sm:$0xf]
  %v83 = vld [vmem:[%s0 + $0xc] sm:$0xf]
  %v84 = vld [vmem:[%s0 + $0x10] sm:$0xf]
  %v85 = vld [vmem:[%s0 + $0x14] sm:$0xf]
  %v86 = vld [vmem:[%s0 + $0x18] sm:$0xf]
  %v87 = vld [vmem:[%s0 + $0x1c] sm:$0xf]
  %v88 = vld [vmem:[%s0 + $0x20] sm:$0xf]
  %v89 = vld [vmem:[%s0 + $0x24] sm:$0x7]
  %v90 = vld [vmem:[%s1] sm:$0x3]
  %v101 = vunpack.c.l.b16 %v80
  %v102 = vunpack.c.l.b16 %v81
  %v103 = vunpack.c.l.b16 %v82
  %v104 = vunpack.c.l.b16 %v83
  %v105 = vunpack.c.l.b16 %v84
  %v106 = vunpack.c.l.b16 %v85
  %v107 = vunpack.c.l.b16 %v86
  %v108 = vunpack.c.l.b16 %v87
  %v109 = vunpack.c.l.b16 %v88
  %v110 = vunpack.c.l.b16 %v89
  %v111 = vpack.c.b16 %v102, %v101
  %v112 = vpack.c.b16 %v104, %v103
  %v113 = vpack.c.b16 %v106, %v105
  %v114 = vpack.c.b16 %v108, %v107
  %v115 = vpack.c.b16 %v110, %v109
  %vm116 = vcmask 31744
  %v118 = vsel %vm116, %v111, 0
  %v121 = vsel %vm116, %v112, 0
  %v124 = vsel %vm116, %v113, 0
  %v127 = vsel %vm116, %v114, 0
  %v130 = vsel %vm116, %v115, 0
  %vm132 = vcmask 1041408
  %v134 = vsel %vm132, %v90, 0
  %136 = vmatpush.bf16.msra.mxu0 0
  %137 = vmatpush.bf16.msra.mxu0 0
  %138 = vmatpush.bf16.msra.mxu0 0
  %139 = vmatpush.bf16.msra.mxu0 0
  %140 = vmatpush.bf16.msra.mxu0 0
  %141 = vmatpush.bf16.msra.mxu0 0
  %142 = vmatpush.bf16.msra.mxu0 0
  %143 = vmatpush.bf16.msra.mxu0 %v134
  %144 = vmatmul.bf16.gmra.mxu0 %v118
  %v145 = vpop.f32.mrf.mxu0
  %v146 = vadd.f32 0.0, %v145
  %v147 = vpop.f32.mrf.mxu0
  %v148 = vadd.f32 0.0, %v147
  %149 = vmatmul.bf16.gmra.mxu0 %v121
  %v150 = vpop.f32.mrf.mxu0
  %v151 = vadd.f32 0.0, %v150
  %v152 = vpop.f32.mrf.mxu0
  %v153 = vadd.f32 0.0, %v152
  %154 = vmatmul.bf16.gmra.mxu0 %v124
  %v155 = vpop.f32.mrf.mxu0
  %v156 = vadd.f32 0.0, %v155
  %v157 = vpop.f32.mrf.mxu0
  %v158 = vadd.f32 0.0, %v157
  %159 = vmatmul.bf16.gmra.mxu0 %v127
  %v160 = vpop.f32.mrf.mxu0
  %v161 = vadd.f32 0.0, %v160
  %v162 = vpop.f32.mrf.mxu0
  %v163 = vadd.f32 0.0, %v162
  %164 = vmatmul.bf16.gmra.mxu0 %v130
  %v165 = vpop.f32.mrf.mxu0
  %v166 = vadd.f32 0.0, %v165
  %v167 = vpop.f32.mrf.mxu0
  %v168 = vadd.f32 0.0, %v167
  %169 = vdwg.mxu0
  %v170 = vpack.c.bf16 %v148, %v146
  %v171 = vpack.c.bf16 %v153, %v151
  %v172 = vpack.c.bf16 %v158, %v156
  %v173 = vpack.c.bf16 %v163, %v161
  %v174 = vpack.c.bf16 %v166, %v166
  %v175 = vld [vmem:[%s5] sm:$0xff]
  %v176 = vld [vmem:[%s5 + $0x8] sm:$0xff]
  %v177 = vld [vmem:[%s5 + $0x10] sm:$0xff]
  %v178 = vld [vmem:[%s5 + $0x18] sm:$0xff]
  %v179 = vld [vmem:[%s5 + $0x20] sm:$0xff]
  %v180 = vld [vmem:[%s5 + $0x28] sm:$0xff]
  %v181 = vld [vmem:[%s5 + $0x30] sm:$0xff]
  %v182 = vld [vmem:[%s5 + $0x38] sm:$0xff]
  %v183 = vld [vmem:[%s5 + $0x40] sm:$0xff]
  %v184 = vld [vmem:[%s5 + $0x48] sm:$0xff]
  %v185 = vld [vmem:[%s5 + $0x50] sm:$0xff]
  %v186 = vld [vmem:[%s5 + $0x58] sm:$0xff]
  %v187 = vld [vmem:[%s5 + $0x60] sm:$0xff]
  %v188 = vld [vmem:[%s5 + $0x68] sm:$0xff]
  %v189 = vld [vmem:[%s5 + $0x70] sm:$0xff]
  %v190 = vld [vmem:[%s5 + $0x78] sm:$0xff]
  %v191 = vpack.c.bf16 %v168, %v166
  %s192 = scalar_lea.vmem %s5, 128
  %v193 = vld [vmem:[%s192] sm:$0xff]
  %v194 = vld [vmem:[%s192 + $0x8] sm:$0xff]
  %v195 = vld [vmem:[%s192 + $0x10] sm:$0xff]
  %v196 = vld [vmem:[%s192 + $0x18] sm:$0xff]
  %v197 = vld [vmem:[%s192 + $0x20] sm:$0xff]
  %v198 = vld [vmem:[%s192 + $0x28] sm:$0xff]
  %v199 = vld [vmem:[%s192 + $0x30] sm:$0xff]
  %v200 = vld [vmem:[%s192 + $0x38] sm:$0xff]
  %v201 = vld [vmem:[%s192 + $0x40] sm:$0xff]
  %v202 = vld [vmem:[%s192 + $0x48] sm:$0xff]
  %v203 = vld [vmem:[%s192 + $0x50] sm:$0xff]
  %v204 = vld [vmem:[%s192 + $0x58] sm:$0xff]
  %v205 = vld [vmem:[%s192 + $0x60] sm:$0xff]
  %v206 = vld [vmem:[%s192 + $0x68] sm:$0xff]
  %v207 = vld [vmem:[%s192 + $0x70] sm:$0xff]
  %v208 = vld [vmem:[%s192 + $0x78] sm:$0xff]
  %vm209 = vsmask.f32 7424
  %v211 = vshrl.u32 %v170, 16
  %v213 = vshll.u32 %v170, 16
  %v215 = vrot.slane %v213, 1
  %v216 = vor.u32 %v211, %v215
  %v218 = vshll.u32 %v171, 16
  %v220 = vrot.slane %v218, 1
  %v221 = vsel %vm209, %v216, %v220
  %v222 = vshrl.u32 %v171, 16
  %v224 = vor.u32 %v222, %v220
  %v226 = vshll.u32 %v172, 16
  %v228 = vrot.slane %v226, 1
  %v229 = vsel %vm209, %v224, %v228
  %v230 = vshrl.u32 %v172, 16
  %v232 = vor.u32 %v230, %v228
  %v234 = vshll.u32 %v173, 16
  %v236 = vrot.slane %v234, 1
  %v237 = vsel %vm209, %v232, %v236
  %v238 = vshrl.u32 %v173, 16
  %v240 = vor.u32 %v238, %v236
  %v242 = vshll.u32 %v191, 16
  %v244 = vrot.slane %v242, 1
  %v245 = vsel %vm209, %v240, %v244
  %v246 = vshrl.u32 %v191, 16
  %v248 = vor.u32 %v246, %v244
  %v270 = vunpack.c.l.b16 %v193
  %v271 = vunpack.c.h.b16 %v193
  %v272 = vunpack.c.l.b16 %v194
  %v273 = vunpack.c.h.b16 %v194
  %v274 = vunpack.c.l.b16 %v195
  %v275 = vunpack.c.h.b16 %v195
  %v276 = vunpack.c.l.b16 %v196
  %v277 = vunpack.c.h.b16 %v196
  %v278 = vunpack.c.l.b16 %v197
  %v279 = vunpack.c.h.b16 %v197
  %v280 = vunpack.c.l.b16 %v198
  %v281 = vunpack.c.h.b16 %v198
  %v282 = vunpack.c.l.b16 %v199
  %v283 = vunpack.c.h.b16 %v199
  %v284 = vunpack.c.l.b16 %v200
  %v285 = vunpack.c.h.b16 %v200
  %v286 = vunpack.c.l.b16 %v201
  %v287 = vunpack.c.h.b16 %v201
  %v288 = vunpack.c.l.b16 %v202
  %v289 = vunpack.c.h.b16 %v202
  %v290 = vunpack.c.l.b16 %v203
  %v291 = vunpack.c.h.b16 %v203
  %v292 = vunpack.c.l.b16 %v204
  %v293 = vunpack.c.h.b16 %v204
  %v294 = vunpack.c.l.b16 %v205
  %v295 = vunpack.c.h.b16 %v205
  %v296 = vunpack.c.l.b16 %v206
  %v297 = vunpack.c.h.b16 %v206
  %v298 = vunpack.c.l.b16 %v207
  %v299 = vunpack.c.h.b16 %v207
  %v300 = vunpack.c.l.b16 %v208
  %v301 = vunpack.c.h.b16 %v208
  %v302 = vpack.c.b16 %v272, %v270
  %v303 = vpack.c.b16 %v273, %v271
  %v304 = vpack.c.b16 %v276, %v274
  %v305 = vpack.c.b16 %v277, %v275
  %v306 = vpack.c.b16 %v280, %v278
  %v307 = vpack.c.b16 %v281, %v279
  %v308 = vpack.c.b16 %v284, %v282
  %v309 = vpack.c.b16 %v285, %v283
  %v310 = vpack.c.b16 %v288, %v286
  %v311 = vpack.c.b16 %v289, %v287
  %v312 = vpack.c.b16 %v292, %v290
  %v313 = vpack.c.b16 %v293, %v291
  %v314 = vpack.c.b16 %v296, %v294
  %v315 = vpack.c.b16 %v297, %v295
  %v316 = vpack.c.b16 %v300, %v298
  %v317 = vpack.c.b16 %v301, %v299
  %334 = vmatpush.bf16.msra.mxu0 %v316
  %335 = vmatpush.bf16.msra.mxu0 %v314
  %336 = vmatpush.bf16.msra.mxu0 %v312
  %337 = vmatpush.bf16.msra.mxu0 %v310
  %338 = vmatpush.bf16.msra.mxu0 %v308
  %339 = vmatpush.bf16.msra.mxu0 %v306
  %340 = vmatpush.bf16.msra.mxu0 %v304
  %341 = vmatpush.bf16.msra.mxu0 %v302
  %342 = vmatmul.bf16.gmra.mxu0 %v221
  %v343 = vpop.f32.mrf.mxu0
  %v344 = vadd.f32 0.0, %v343
  %v345 = vpop.f32.mrf.mxu0
  %v346 = vadd.f32 0.0, %v345
  %347 = vmatmul.bf16.gmra.mxu0 %v229
  %v348 = vpop.f32.mrf.mxu0
  %v349 = vadd.f32 0.0, %v348
  %v350 = vpop.f32.mrf.mxu0
  %v351 = vadd.f32 0.0, %v350
  %352 = vmatmul.bf16.gmra.mxu0 %v237
  %v353 = vpop.f32.mrf.mxu0
  %v354 = vadd.f32 0.0, %v353
  %v355 = vpop.f32.mrf.mxu0
  %v356 = vadd.f32 0.0, %v355
  %357 = vmatmul.bf16.gmra.mxu0 %v245
  %v358 = vpop.f32.mrf.mxu0
  %v359 = vadd.f32 0.0, %v358
  %v360 = vpop.f32.mrf.mxu0
  %v361 = vadd.f32 0.0, %v360
  %362 = vmatmul.bf16.gmra.mxu0 %v248
  %v363 = vpop.f32.mrf.mxu0
  %v364 = vadd.f32 0.0, %v363
  %v365 = vpop.f32.mrf.mxu0
  %366 = vdwg.mxu0
  %367 = vmatpush.bf16.msra.mxu0 %v317
  %368 = vmatpush.bf16.msra.mxu0 %v315
  %369 = vmatpush.bf16.msra.mxu0 %v313
  %370 = vmatpush.bf16.msra.mxu0 %v311
  %371 = vmatpush.bf16.msra.mxu0 %v309
  %372 = vmatpush.bf16.msra.mxu0 %v307
  %373 = vmatpush.bf16.msra.mxu0 %v305
  %374 = vmatpush.bf16.msra.mxu0 %v303
  %375 = vmatmul.bf16.gmra.mxu0 %v221
  %v376 = vpop.f32.mrf.mxu0
  %v377 = vadd.f32 0.0, %v376
  %v378 = vpop.f32.mrf.mxu0
  %v379 = vadd.f32 0.0, %v378
  %380 = vmatmul.bf16.gmra.mxu0 %v229
  %v381 = vpop.f32.mrf.mxu0
  %v382 = vadd.f32 0.0, %v381
  %v383 = vpop.f32.mrf.mxu0
  %v384 = vadd.f32 0.0, %v383
  %385 = vmatmul.bf16.gmra.mxu0 %v237
  %v386 = vpop.f32.mrf.mxu0
  %v387 = vadd.f32 0.0, %v386
  %v388 = vpop.f32.mrf.mxu0
  %v389 = vadd.f32 0.0, %v388
  %390 = vmatmul.bf16.gmra.mxu0 %v245
  %v391 = vpop.f32.mrf.mxu0
  %v392 = vadd.f32 0.0, %v391
  %v393 = vpop.f32.mrf.mxu0
  %v394 = vadd.f32 0.0, %v393
  %395 = vmatmul.bf16.gmra.mxu0 %v248
  %v396 = vpop.f32.mrf.mxu0
  %v397 = vadd.f32 0.0, %v396
  %v398 = vpop.f32.mrf.mxu0
  %399 = vdwg.mxu0
  %v416 = vunpack.c.l.b16 %v175
  %v417 = vunpack.c.h.b16 %v175
  %v418 = vunpack.c.l.b16 %v176
  %v419 = vunpack.c.h.b16 %v176
  %v420 = vunpack.c.l.b16 %v177
  %v421 = vunpack.c.h.b16 %v177
  %v422 = vunpack.c.l.b16 %v178
  %v423 = vunpack.c.h.b16 %v178
  %v424 = vunpack.c.l.b16 %v179
  %v425 = vunpack.c.h.b16 %v179
  %v426 = vunpack.c.l.b16 %v180
  %v427 = vunpack.c.h.b16 %v180
  %v428 = vunpack.c.l.b16 %v181
  %v429 = vunpack.c.h.b16 %v181
  %v430 = vunpack.c.l.b16 %v182
  %v431 = vunpack.c.h.b16 %v182
  %v432 = vunpack.c.l.b16 %v183
  %v433 = vunpack.c.h.b16 %v183
  %v434 = vunpack.c.l.b16 %v184
  %v435 = vunpack.c.h.b16 %v184
  %v436 = vunpack.c.l.b16 %v185
  %v437 = vunpack.c.h.b16 %v185
  %v438 = vunpack.c.l.b16 %v186
  %v439 = vunpack.c.h.b16 %v186
  %v440 = vunpack.c.l.b16 %v187
  %v441 = vunpack.c.h.b16 %v187
  %v442 = vunpack.c.l.b16 %v188
  %v443 = vunpack.c.h.b16 %v188
  %v444 = vunpack.c.l.b16 %v189
  %v445 = vunpack.c.h.b16 %v189
  %v446 = vunpack.c.l.b16 %v190
  %v447 = vunpack.c.h.b16 %v190
  %v448 = vpack.c.b16 %v418, %v416
  %v449 = vpack.c.b16 %v419, %v417
  %v450 = vpack.c.b16 %v422, %v420
  %v451 = vpack.c.b16 %v423, %v421
  %v452 = vpack.c.b16 %v426, %v424
  %v453 = vpack.c.b16 %v427, %v425
  %v454 = vpack.c.b16 %v430, %v428
  %v455 = vpack.c.b16 %v431, %v429
  %v456 = vpack.c.b16 %v434, %v432
  %v457 = vpack.c.b16 %v435, %v433
  %v458 = vpack.c.b16 %v438, %v436
  %v459 = vpack.c.b16 %v439, %v437
  %v460 = vpack.c.b16 %v442, %v440
  %v461 = vpack.c.b16 %v443, %v441
  %v462 = vpack.c.b16 %v446, %v444
  %v463 = vpack.c.b16 %v447, %v445
  %480 = vmatpush.bf16.msra.mxu0 %v462
  %481 = vmatpush.bf16.msra.mxu0 %v460
  %482 = vmatpush.bf16.msra.mxu0 %v458
  %483 = vmatpush.bf16.msra.mxu0 %v456
  %484 = vmatpush.bf16.msra.mxu0 %v454
  %485 = vmatpush.bf16.msra.mxu0 %v452
  %486 = vmatpush.bf16.msra.mxu0 %v450
  %487 = vmatpush.bf16.msra.mxu0 %v448
  %488 = vmatmul.bf16.gmra.mxu0 %v170
  %v489 = vpop.f32.mrf.mxu0
  %v490 = vadd.f32 %v344, %v489
  %v491 = vpop.f32.mrf.mxu0
  %v492 = vadd.f32 %v346, %v491
  %493 = vmatmul.bf16.gmra.mxu0 %v171
  %v494 = vpop.f32.mrf.mxu0
  %v495 = vadd.f32 %v349, %v494
  %v496 = vpop.f32.mrf.mxu0
  %v497 = vadd.f32 %v351, %v496
  %498 = vmatmul.bf16.gmra.mxu0 %v172
  %v499 = vpop.f32.mrf.mxu0
  %v500 = vadd.f32 %v354, %v499
  %v501 = vpop.f32.mrf.mxu0
  %v502 = vadd.f32 %v356, %v501
  %503 = vmatmul.bf16.gmra.mxu0 %v173
  %v504 = vpop.f32.mrf.mxu0
  %v505 = vadd.f32 %v359, %v504
  %v506 = vpop.f32.mrf.mxu0
  %v507 = vadd.f32 %v361, %v506
  %508 = vmatmul.bf16.gmra.mxu0 %v174
  %v509 = vpop.f32.mrf.mxu0
  %v510 = vadd.f32 %v364, %v509
  %v511 = vpop.f32.mrf.mxu0
  %512 = vdwg.mxu0
  %513 = vmatpush.bf16.msra.mxu0 %v463
  %514 = vmatpush.bf16.msra.mxu0 %v461
  %515 = vmatpush.bf16.msra.mxu0 %v459
  %516 = vmatpush.bf16.msra.mxu0 %v457
  %517 = vmatpush.bf16.msra.mxu0 %v455
  %518 = vmatpush.bf16.msra.mxu0 %v453
  %519 = vmatpush.bf16.msra.mxu0 %v451
  %520 = vmatpush.bf16.msra.mxu0 %v449
  %521 = vmatmul.bf16.gmra.mxu0 %v170
  %v522 = vpop.f32.mrf.mxu0
  %v523 = vadd.f32 %v377, %v522
  %v524 = vpop.f32.mrf.mxu0
  %v525 = vadd.f32 %v379, %v524
  %526 = vmatmul.bf16.gmra.mxu0 %v171
  %v527 = vpop.f32.mrf.mxu0
  %v528 = vadd.f32 %v382, %v527
  %v529 = vpop.f32.mrf.mxu0
  %v530 = vadd.f32 %v384, %v529
  %531 = vmatmul.bf16.gmra.mxu0 %v172
  %v532 = vpop.f32.mrf.mxu0
  %v533 = vadd.f32 %v387, %v532
  %v534 = vpop.f32.mrf.mxu0
  %v535 = vadd.f32 %v389, %v534
  %536 = vmatmul.bf16.gmra.mxu0 %v173
  %v537 = vpop.f32.mrf.mxu0
  %v538 = vadd.f32 %v392, %v537
  %v539 = vpop.f32.mrf.mxu0
  %v540 = vadd.f32 %v394, %v539
  %541 = vmatmul.bf16.gmra.mxu0 %v174
  %v542 = vpop.f32.mrf.mxu0
  %v543 = vadd.f32 %v397, %v542
  %v544 = vpop.f32.mrf.mxu0
  %545 = vdwg.mxu0
  %s546 = scalar_lea.vmem %s5, 256
  %v547 = vld [vmem:[%s546] sm:$0xff]
  %v548 = vld [vmem:[%s546 + $0x8] sm:$0xff]
  %v549 = vld [vmem:[%s546 + $0x10] sm:$0xff]
  %v550 = vld [vmem:[%s546 + $0x18] sm:$0xff]
  %v551 = vld [vmem:[%s546 + $0x20] sm:$0xff]
  %v552 = vld [vmem:[%s546 + $0x28] sm:$0xff]
  %v553 = vld [vmem:[%s546 + $0x30] sm:$0xff]
  %v554 = vld [vmem:[%s546 + $0x38] sm:$0xff]
  %v555 = vld [vmem:[%s546 + $0x40] sm:$0xff]
  %v556 = vld [vmem:[%s546 + $0x48] sm:$0xff]
  %v557 = vld [vmem:[%s546 + $0x50] sm:$0xff]
  %v558 = vld [vmem:[%s546 + $0x58] sm:$0xff]
  %v559 = vld [vmem:[%s546 + $0x60] sm:$0xff]
  %v560 = vld [vmem:[%s546 + $0x68] sm:$0xff]
  %v561 = vld [vmem:[%s546 + $0x70] sm:$0xff]
  %v562 = vld [vmem:[%s546 + $0x78] sm:$0xff]
  %vm568 = vcmask 1046528
  %v569 = vrot.slane %v170, 1
  %v570 = vrot.slane %v171, 1
  %v571 = vsel %vm568, %v569, %v570
  %v572 = vrot.slane %v172, 1
  %v573 = vsel %vm568, %v570, %v572
  %v574 = vrot.slane %v173, 1
  %v575 = vsel %vm568, %v572, %v574
  %v576 = vrot.slane %v191, 1
  %v577 = vsel %vm568, %v574, %v576
  %v599 = vunpack.c.l.b16 %v547
  %v600 = vunpack.c.h.b16 %v547
  %v601 = vunpack.c.l.b16 %v548
  %v602 = vunpack.c.h.b16 %v548
  %v603 = vunpack.c.l.b16 %v549
  %v604 = vunpack.c.h.b16 %v549
  %v605 = vunpack.c.l.b16 %v550
  %v606 = vunpack.c.h.b16 %v550
  %v607 = vunpack.c.l.b16 %v551
  %v608 = vunpack.c.h.b16 %v551
  %v609 = vunpack.c.l.b16 %v552
  %v610 = vunpack.c.h.b16 %v552
  %v611 = vunpack.c.l.b16 %v553
  %v612 = vunpack.c.h.b16 %v553
  %v613 = vunpack.c.l.b16 %v554
  %v614 = vunpack.c.h.b16 %v554
  %v615 = vunpack.c.l.b16 %v555
  %v616 = vunpack.c.h.b16 %v555
  %v617 = vunpack.c.l.b16 %v556
  %v618 = vunpack.c.h.b16 %v556
  %v619 = vunpack.c.l.b16 %v557
  %v620 = vunpack.c.h.b16 %v557
  %v621 = vunpack.c.l.b16 %v558
  %v622 = vunpack.c.h.b16 %v558
  %v623 = vunpack.c.l.b16 %v559
  %v624 = vunpack.c.h.b16 %v559
  %v625 = vunpack.c.l.b16 %v560
  %v626 = vunpack.c.h.b16 %v560
  %v627 = vunpack.c.l.b16 %v561
  %v628 = vunpack.c.h.b16 %v561
  %v629 = vunpack.c.l.b16 %v562
  %v630 = vunpack.c.h.b16 %v562
  %v631 = vpack.c.b16 %v601, %v599
  %v632 = vpack.c.b16 %v602, %v600
  %v633 = vpack.c.b16 %v605, %v603
  %v634 = vpack.c.b16 %v606, %v604
  %v635 = vpack.c.b16 %v609, %v607
  %v636 = vpack.c.b16 %v610, %v608
  %v637 = vpack.c.b16 %v613, %v611
  %v638 = vpack.c.b16 %v614, %v612
  %v639 = vpack.c.b16 %v617, %v615
  %v640 = vpack.c.b16 %v618, %v616
  %v641 = vpack.c.b16 %v621, %v619
  %v642 = vpack.c.b16 %v622, %v620
  %v643 = vpack.c.b16 %v625, %v623
  %v644 = vpack.c.b16 %v626, %v624
  %v645 = vpack.c.b16 %v629, %v627
  %v646 = vpack.c.b16 %v630, %v628
  %663 = vmatpush.bf16.msra.mxu0 %v645
  %664 = vmatpush.bf16.msra.mxu0 %v643
  %665 = vmatpush.bf16.msra.mxu0 %v641
  %666 = vmatpush.bf16.msra.mxu0 %v639
  %667 = vmatpush.bf16.msra.mxu0 %v637
  %668 = vmatpush.bf16.msra.mxu0 %v635
  %669 = vmatpush.bf16.msra.mxu0 %v633
  %670 = vmatpush.bf16.msra.mxu0 %v631
  %671 = vmatmul.bf16.gmra.mxu0 %v571
  %v672 = vpop.f32.mrf.mxu0
  %v673 = vadd.f32 0.0, %v672
  %v674 = vpop.f32.mrf.mxu0
  %v675 = vadd.f32 0.0, %v674
  %676 = vmatmul.bf16.gmra.mxu0 %v573
  %v677 = vpop.f32.mrf.mxu0
  %v678 = vadd.f32 0.0, %v677
  %v679 = vpop.f32.mrf.mxu0
  %v680 = vadd.f32 0.0, %v679
  %681 = vmatmul.bf16.gmra.mxu0 %v575
  %v682 = vpop.f32.mrf.mxu0
  %v683 = vadd.f32 0.0, %v682
  %v684 = vpop.f32.mrf.mxu0
  %v685 = vadd.f32 0.0, %v684
  %686 = vmatmul.bf16.gmra.mxu0 %v577
  %v687 = vpop.f32.mrf.mxu0
  %v688 = vadd.f32 0.0, %v687
  %v689 = vpop.f32.mrf.mxu0
  %v690 = vadd.f32 0.0, %v689
  %691 = vmatmul.bf16.gmra.mxu0 %v576
  %v692 = vpop.f32.mrf.mxu0
  %v693 = vadd.f32 0.0, %v692
  %v694 = vpop.f32.mrf.mxu0
  %695 = vdwg.mxu0
  %696 = vmatpush.bf16.msra.mxu0 %v646
  %697 = vmatpush.bf16.msra.mxu0 %v644
  %698 = vmatpush.bf16.msra.mxu0 %v642
  %699 = vmatpush.bf16.msra.mxu0 %v640
  %700 = vmatpush.bf16.msra.mxu0 %v638
  %701 = vmatpush.bf16.msra.mxu0 %v636
  %702 = vmatpush.bf16.msra.mxu0 %v634
  %703 = vmatpush.bf16.msra.mxu0 %v632
  %704 = vmatmul.bf16.gmra.mxu0 %v571
  %v705 = vpop.f32.mrf.mxu0
  %v706 = vadd.f32 0.0, %v705
  %v707 = vpop.f32.mrf.mxu0
  %v708 = vadd.f32 0.0, %v707
  %709 = vmatmul.bf16.gmra.mxu0 %v573
  %v710 = vpop.f32.mrf.mxu0
  %v711 = vadd.f32 0.0, %v710
  %v712 = vpop.f32.mrf.mxu0
  %v713 = vadd.f32 0.0, %v712
  %714 = vmatmul.bf16.gmra.mxu0 %v575
  %v715 = vpop.f32.mrf.mxu0
  %v716 = vadd.f32 0.0, %v715
  %v717 = vpop.f32.mrf.mxu0
  %v718 = vadd.f32 0.0, %v717
  %719 = vmatmul.bf16.gmra.mxu0 %v577
  %v720 = vpop.f32.mrf.mxu0
  %v721 = vadd.f32 0.0, %v720
  %v722 = vpop.f32.mrf.mxu0
  %v723 = vadd.f32 0.0, %v722
  %724 = vmatmul.bf16.gmra.mxu0 %v576
  %v725 = vpop.f32.mrf.mxu0
  %v726 = vadd.f32 0.0, %v725
  %v727 = vpop.f32.mrf.mxu0
  %728 = vdwg.mxu0
  %v729 = vadd.f32 %v490, %v673
  %v730 = vadd.f32 %v523, %v706
  %v731 = vadd.f32 %v492, %v675
  %v732 = vadd.f32 %v525, %v708
  %v733 = vadd.f32 %v495, %v678
  %v734 = vadd.f32 %v528, %v711
  %v735 = vadd.f32 %v497, %v680
  %v736 = vadd.f32 %v530, %v713
  %v737 = vadd.f32 %v500, %v683
  %v738 = vadd.f32 %v533, %v716
  %v739 = vadd.f32 %v502, %v685
  %v740 = vadd.f32 %v535, %v718
  %v741 = vadd.f32 %v505, %v688
  %v742 = vadd.f32 %v538, %v721
  %v743 = vadd.f32 %v507, %v690
  %v744 = vadd.f32 %v540, %v723
  %v745 = vadd.f32 %v510, %v693
  %v746 = vadd.f32 %v543, %v726
  %s747 = scalar_lea.vmem %s5, 384
  %v748 = vld [vmem:[%s747] sm:$0xff]
  %v749 = vld [vmem:[%s747 + $0x8] sm:$0xff]
  %v750 = vld [vmem:[%s747 + $0x10] sm:$0xff]
  %v751 = vld [vmem:[%s747 + $0x18] sm:$0xff]
  %v752 = vld [vmem:[%s747 + $0x20] sm:$0xff]
  %v753 = vld [vmem:[%s747 + $0x28] sm:$0xff]
  %v754 = vld [vmem:[%s747 + $0x30] sm:$0xff]
  %v755 = vld [vmem:[%s747 + $0x38] sm:$0xff]
  %v756 = vld [vmem:[%s747 + $0x40] sm:$0xff]
  %v757 = vld [vmem:[%s747 + $0x48] sm:$0xff]
  %v758 = vld [vmem:[%s747 + $0x50] sm:$0xff]
  %v759 = vld [vmem:[%s747 + $0x58] sm:$0xff]
  %v760 = vld [vmem:[%s747 + $0x60] sm:$0xff]
  %v761 = vld [vmem:[%s747 + $0x68] sm:$0xff]
  %v762 = vld [vmem:[%s747 + $0x70] sm:$0xff]
  %v763 = vld [vmem:[%s747 + $0x78] sm:$0xff]
  %vm764 = vsmask.f32 6400
  %v765 = vrot.slane %v211, 1
  %v766 = vrot.slane %v213, 2
  %v767 = vor.u32 %v765, %v766
  %v768 = vrot.slane %v222, 1
  %v769 = vrot.slane %v218, 2
  %v770 = vor.u32 %v768, %v769
  %v771 = vsel %vm764, %v767, %v770
  %v772 = vrot.slane %v230, 1
  %v773 = vrot.slane %v226, 2
  %v774 = vor.u32 %v772, %v773
  %v775 = vsel %vm764, %v770, %v774
  %v776 = vrot.slane %v238, 1
  %v777 = vrot.slane %v234, 2
  %v778 = vor.u32 %v776, %v777
  %v779 = vsel %vm764, %v774, %v778
  %v780 = vrot.slane %v246, 1
  %v781 = vrot.slane %v242, 2
  %v782 = vor.u32 %v780, %v781
  %v783 = vsel %vm764, %v778, %v782
  %v805 = vunpack.c.l.b16 %v748
  %v806 = vunpack.c.h.b16 %v748
  %v807 = vunpack.c.l.b16 %v749
  %v808 = vunpack.c.h.b16 %v749
  %v809 = vunpack.c.l.b16 %v750
  %v810 = vunpack.c.h.b16 %v750
  %v811 = vunpack.c.l.b16 %v751
  %v812 = vunpack.c.h.b16 %v751
  %v813 = vunpack.c.l.b16 %v752
  %v814 = vunpack.c.h.b16 %v752
  %v815 = vunpack.c.l.b16 %v753
  %v816 = vunpack.c.h.b16 %v753
  %v817 = vunpack.c.l.b16 %v754
  %v818 = vunpack.c.h.b16 %v754
  %v819 = vunpack.c.l.b16 %v755
  %v820 = vunpack.c.h.b16 %v755
  %v821 = vunpack.c.l.b16 %v756
  %v822 = vunpack.c.h.b16 %v756
  %v823 = vunpack.c.l.b16 %v757
  %v824 = vunpack.c.h.b16 %v757
  %v825 = vunpack.c.l.b16 %v758
  %v826 = vunpack.c.h.b16 %v758
  %v827 = vunpack.c.l.b16 %v759
  %v828 = vunpack.c.h.b16 %v759
  %v829 = vunpack.c.l.b16 %v760
  %v830 = vunpack.c.h.b16 %v760
  %v831 = vunpack.c.l.b16 %v761
  %v832 = vunpack.c.h.b16 %v761
  %v833 = vunpack.c.l.b16 %v762
  %v834 = vunpack.c.h.b16 %v762
  %v835 = vunpack.c.l.b16 %v763
  %v836 = vunpack.c.h.b16 %v763
  %v837 = vpack.c.b16 %v807, %v805
  %v838 = vpack.c.b16 %v808, %v806
  %v839 = vpack.c.b16 %v811, %v809
  %v840 = vpack.c.b16 %v812, %v810
  %v841 = vpack.c.b16 %v815, %v813
  %v842 = vpack.c.b16 %v816, %v814
  %v843 = vpack.c.b16 %v819, %v817
  %v844 = vpack.c.b16 %v820, %v818
  %v845 = vpack.c.b16 %v823, %v821
  %v846 = vpack.c.b16 %v824, %v822
  %v847 = vpack.c.b16 %v827, %v825
  %v848 = vpack.c.b16 %v828, %v826
  %v849 = vpack.c.b16 %v831, %v829
  %v850 = vpack.c.b16 %v832, %v830
  %v851 = vpack.c.b16 %v835, %v833
  %v852 = vpack.c.b16 %v836, %v834
  %869 = vmatpush.bf16.msra.mxu0 %v851
  %870 = vmatpush.bf16.msra.mxu0 %v849
  %871 = vmatpush.bf16.msra.mxu0 %v847
  %872 = vmatpush.bf16.msra.mxu0 %v845
  %873 = vmatpush.bf16.msra.mxu0 %v843
  %874 = vmatpush.bf16.msra.mxu0 %v841
  %875 = vmatpush.bf16.msra.mxu0 %v839
  %876 = vmatpush.bf16.msra.mxu0 %v837
  %877 = vmatmul.bf16.gmra.mxu0 %v771
  %v878 = vpop.f32.mrf.mxu0
  %v879 = vadd.f32 0.0, %v878
  %v880 = vpop.f32.mrf.mxu0
  %v881 = vadd.f32 0.0, %v880
  %882 = vmatmul.bf16.gmra.mxu0 %v775
  %v883 = vpop.f32.mrf.mxu0
  %v884 = vadd.f32 0.0, %v883
  %v885 = vpop.f32.mrf.mxu0
  %v886 = vadd.f32 0.0, %v885
  %887 = vmatmul.bf16.gmra.mxu0 %v779
  %v888 = vpop.f32.mrf.mxu0
  %v889 = vadd.f32 0.0, %v888
  %v890 = vpop.f32.mrf.mxu0
  %v891 = vadd.f32 0.0, %v890
  %892 = vmatmul.bf16.gmra.mxu0 %v783
  %v893 = vpop.f32.mrf.mxu0
  %v894 = vadd.f32 0.0, %v893
  %v895 = vpop.f32.mrf.mxu0
  %v896 = vadd.f32 0.0, %v895
  %897 = vmatmul.bf16.gmra.mxu0 %v782
  %v898 = vpop.f32.mrf.mxu0
  %v899 = vadd.f32 0.0, %v898
  %v900 = vpop.f32.mrf.mxu0
  %901 = vdwg.mxu0
  %902 = vmatpush.bf16.msra.mxu0 %v852
  %903 = vmatpush.bf16.msra.mxu0 %v850
  %904 = vmatpush.bf16.msra.mxu0 %v848
  %905 = vmatpush.bf16.msra.mxu0 %v846
  %906 = vmatpush.bf16.msra.mxu0 %v844
  %907 = vmatpush.bf16.msra.mxu0 %v842
  %908 = vmatpush.bf16.msra.mxu0 %v840
  %909 = vmatpush.bf16.msra.mxu0 %v838
  %910 = vmatmul.bf16.gmra.mxu0 %v771
  %v911 = vpop.f32.mrf.mxu0
  %v912 = vadd.f32 0.0, %v911
  %v913 = vpop.f32.mrf.mxu0
  %v914 = vadd.f32 0.0, %v913
  %915 = vmatmul.bf16.gmra.mxu0 %v775
  %v916 = vpop.f32.mrf.mxu0
  %v917 = vadd.f32 0.0, %v916
  %v918 = vpop.f32.mrf.mxu0
  %v919 = vadd.f32 0.0, %v918
  %920 = vmatmul.bf16.gmra.mxu0 %v779
  %v921 = vpop.f32.mrf.mxu0
  %v922 = vadd.f32 0.0, %v921
  %v923 = vpop.f32.mrf.mxu0
  %v924 = vadd.f32 0.0, %v923
  %925 = vmatmul.bf16.gmra.mxu0 %v783
  %v926 = vpop.f32.mrf.mxu0
  %v927 = vadd.f32 0.0, %v926
  %v928 = vpop.f32.mrf.mxu0
  %v929 = vadd.f32 0.0, %v928
  %930 = vmatmul.bf16.gmra.mxu0 %v782
  %v931 = vpop.f32.mrf.mxu0
  %v932 = vadd.f32 0.0, %v931
  %v933 = vpop.f32.mrf.mxu0
  %934 = vdwg.mxu0
  %v935 = vadd.f32 %v729, %v879
  %v936 = vadd.f32 %v730, %v912
  %v937 = vadd.f32 %v731, %v881
  %v938 = vadd.f32 %v732, %v914
  %v939 = vadd.f32 %v733, %v884
  %v940 = vadd.f32 %v734, %v917
  %v941 = vadd.f32 %v735, %v886
  %v942 = vadd.f32 %v736, %v919
  %v943 = vadd.f32 %v737, %v889
  %v944 = vadd.f32 %v738, %v922
  %v945 = vadd.f32 %v739, %v891
  %v946 = vadd.f32 %v740, %v924
  %v947 = vadd.f32 %v741, %v894
  %v948 = vadd.f32 %v742, %v927
  %v949 = vadd.f32 %v743, %v896
  %v950 = vadd.f32 %v744, %v929
  %v951 = vadd.f32 %v745, %v899
  %v952 = vadd.f32 %v746, %v932
  %s953 = scalar_lea.vmem %s5, 512
  %v954 = vld [vmem:[%s953] sm:$0xff]
  %v955 = vld [vmem:[%s953 + $0x8] sm:$0xff]
  %v956 = vld [vmem:[%s953 + $0x10] sm:$0xff]
  %v957 = vld [vmem:[%s953 + $0x18] sm:$0xff]
  %v958 = vld [vmem:[%s953 + $0x20] sm:$0xff]
  %v959 = vld [vmem:[%s953 + $0x28] sm:$0xff]
  %v960 = vld [vmem:[%s953 + $0x30] sm:$0xff]
  %v961 = vld [vmem:[%s953 + $0x38] sm:$0xff]
  %v962 = vld [vmem:[%s953 + $0x40] sm:$0xff]
  %v963 = vld [vmem:[%s953 + $0x48] sm:$0xff]
  %v964 = vld [vmem:[%s953 + $0x50] sm:$0xff]
  %v965 = vld [vmem:[%s953 + $0x58] sm:$0xff]
  %v966 = vld [vmem:[%s953 + $0x60] sm:$0xff]
  %v967 = vld [vmem:[%s953 + $0x68] sm:$0xff]
  %v968 = vld [vmem:[%s953 + $0x70] sm:$0xff]
  %v969 = vld [vmem:[%s953 + $0x78] sm:$0xff]
  %vm970 = vcmask 1045504
  %v971 = vrot.slane %v170, 2
  %v972 = vrot.slane %v171, 2
  %v973 = vsel %vm970, %v971, %v972
  %v974 = vrot.slane %v172, 2
  %v975 = vsel %vm970, %v972, %v974
  %v976 = vrot.slane %v173, 2
  %v977 = vsel %vm970, %v974, %v976
  %v978 = vrot.slane %v191, 2
  %v979 = vsel %vm970, %v976, %v978
  %v1001 = vunpack.c.l.b16 %v954
  %v1002 = vunpack.c.h.b16 %v954
  %v1003 = vunpack.c.l.b16 %v955
  %v1004 = vunpack.c.h.b16 %v955
  %v1005 = vunpack.c.l.b16 %v956
  %v1006 = vunpack.c.h.b16 %v956
  %v1007 = vunpack.c.l.b16 %v957
  %v1008 = vunpack.c.h.b16 %v957
  %v1009 = vunpack.c.l.b16 %v958
  %v1010 = vunpack.c.h.b16 %v958
  %v1011 = vunpack.c.l.b16 %v959
  %v1012 = vunpack.c.h.b16 %v959
  %v1013 = vunpack.c.l.b16 %v960
  %v1014 = vunpack.c.h.b16 %v960
  %v1015 = vunpack.c.l.b16 %v961
  %v1016 = vunpack.c.h.b16 %v961
  %v1017 = vunpack.c.l.b16 %v962
  %v1018 = vunpack.c.h.b16 %v962
  %v1019 = vunpack.c.l.b16 %v963
  %v1020 = vunpack.c.h.b16 %v963
  %v1021 = vunpack.c.l.b16 %v964
  %v1022 = vunpack.c.h.b16 %v964
  %v1023 = vunpack.c.l.b16 %v965
  %v1024 = vunpack.c.h.b16 %v965
  %v1025 = vunpack.c.l.b16 %v966
  %v1026 = vunpack.c.h.b16 %v966
  %v1027 = vunpack.c.l.b16 %v967
  %v1028 = vunpack.c.h.b16 %v967
  %v1029 = vunpack.c.l.b16 %v968
  %v1030 = vunpack.c.h.b16 %v968
  %v1031 = vunpack.c.l.b16 %v969
  %v1032 = vunpack.c.h.b16 %v969
  %v1033 = vpack.c.b16 %v1003, %v1001
  %v1034 = vpack.c.b16 %v1004, %v1002
  %v1035 = vpack.c.b16 %v1007, %v1005
  %v1036 = vpack.c.b16 %v1008, %v1006
  %v1037 = vpack.c.b16 %v1011, %v1009
  %v1038 = vpack.c.b16 %v1012, %v1010
  %v1039 = vpack.c.b16 %v1015, %v1013
  %v1040 = vpack.c.b16 %v1016, %v1014
  %v1041 = vpack.c.b16 %v1019, %v1017
  %v1042 = vpack.c.b16 %v1020, %v1018
  %v1043 = vpack.c.b16 %v1023, %v1021
  %v1044 = vpack.c.b16 %v1024, %v1022
  %v1045 = vpack.c.b16 %v1027, %v1025
  %v1046 = vpack.c.b16 %v1028, %v1026
  %v1047 = vpack.c.b16 %v1031, %v1029
  %v1048 = vpack.c.b16 %v1032, %v1030
  %1065 = vmatpush.bf16.msra.mxu0 %v1047
  %1066 = vmatpush.bf16.msra.mxu0 %v1045
  %1067 = vmatpush.bf16.msra.mxu0 %v1043
  %1068 = vmatpush.bf16.msra.mxu0 %v1041
  %1069 = vmatpush.bf16.msra.mxu0 %v1039
  %1070 = vmatpush.bf16.msra.mxu0 %v1037
  %1071 = vmatpush.bf16.msra.mxu0 %v1035
  %1072 = vmatpush.bf16.msra.mxu0 %v1033
  %1073 = vmatmul.bf16.gmra.mxu0 %v973
  %v1074 = vpop.f32.mrf.mxu0
  %v1075 = vadd.f32 0.0, %v1074
  %v1076 = vpop.f32.mrf.mxu0
  %v1077 = vadd.f32 0.0, %v1076
  %1078 = vmatmul.bf16.gmra.mxu0 %v975
  %v1079 = vpop.f32.mrf.mxu0
  %v1080 = vadd.f32 0.0, %v1079
  %v1081 = vpop.f32.mrf.mxu0
  %v1082 = vadd.f32 0.0, %v1081
  %1083 = vmatmul.bf16.gmra.mxu0 %v977
  %v1084 = vpop.f32.mrf.mxu0
  %v1085 = vadd.f32 0.0, %v1084
  %v1086 = vpop.f32.mrf.mxu0
  %v1087 = vadd.f32 0.0, %v1086
  %1088 = vmatmul.bf16.gmra.mxu0 %v979
  %v1089 = vpop.f32.mrf.mxu0
  %v1090 = vadd.f32 0.0, %v1089
  %v1091 = vpop.f32.mrf.mxu0
  %v1092 = vadd.f32 0.0, %v1091
  %1093 = vmatmul.bf16.gmra.mxu0 %v978
  %v1094 = vpop.f32.mrf.mxu0
  %v1095 = vadd.f32 0.0, %v1094
  %v1096 = vpop.f32.mrf.mxu0
  %1097 = vdwg.mxu0
  %1098 = vmatpush.bf16.msra.mxu0 %v1048
  %1099 = vmatpush.bf16.msra.mxu0 %v1046
  %1100 = vmatpush.bf16.msra.mxu0 %v1044
  %1101 = vmatpush.bf16.msra.mxu0 %v1042
  %1102 = vmatpush.bf16.msra.mxu0 %v1040
  %1103 = vmatpush.bf16.msra.mxu0 %v1038
  %1104 = vmatpush.bf16.msra.mxu0 %v1036
  %1105 = vmatpush.bf16.msra.mxu0 %v1034
  %1106 = vmatmul.bf16.gmra.mxu0 %v973
  %v1107 = vpop.f32.mrf.mxu0
  %v1108 = vadd.f32 0.0, %v1107
  %v1109 = vpop.f32.mrf.mxu0
  %v1110 = vadd.f32 0.0, %v1109
  %1111 = vmatmul.bf16.gmra.mxu0 %v975
  %v1112 = vpop.f32.mrf.mxu0
  %v1113 = vadd.f32 0.0, %v1112
  %v1114 = vpop.f32.mrf.mxu0
  %v1115 = vadd.f32 0.0, %v1114
  %1116 = vmatmul.bf16.gmra.mxu0 %v977
  %v1117 = vpop.f32.mrf.mxu0
  %v1118 = vadd.f32 0.0, %v1117
  %v1119 = vpop.f32.mrf.mxu0
  %v1120 = vadd.f32 0.0, %v1119
  %1121 = vmatmul.bf16.gmra.mxu0 %v979
  %v1122 = vpop.f32.mrf.mxu0
  %v1123 = vadd.f32 0.0, %v1122
  %v1124 = vpop.f32.mrf.mxu0
  %v1125 = vadd.f32 0.0, %v1124
  %1126 = vmatmul.bf16.gmra.mxu0 %v978
  %v1127 = vpop.f32.mrf.mxu0
  %v1128 = vadd.f32 0.0, %v1127
  %v1129 = vpop.f32.mrf.mxu0
  %1130 = vdwg.mxu0
  %v1131 = vadd.f32 %v935, %v1075
  %v1132 = vadd.f32 %v936, %v1108
  %v1133 = vadd.f32 %v937, %v1077
  %v1134 = vadd.f32 %v938, %v1110
  %v1135 = vadd.f32 %v939, %v1080
  %v1136 = vadd.f32 %v940, %v1113
  %v1137 = vadd.f32 %v941, %v1082
  %v1138 = vadd.f32 %v942, %v1115
  %v1139 = vadd.f32 %v943, %v1085
  %v1140 = vadd.f32 %v944, %v1118
  %v1141 = vadd.f32 %v945, %v1087
  %v1142 = vadd.f32 %v946, %v1120
  %v1143 = vadd.f32 %v947, %v1090
  %v1144 = vadd.f32 %v948, %v1123
  %v1145 = vadd.f32 %v949, %v1092
  %v1146 = vadd.f32 %v950, %v1125
  %v1147 = vadd.f32 %v951, %v1095
  %v1148 = vadd.f32 %v952, %v1128
  %s1149 = scalar_lea.vmem %s5, 640
  %v1150 = vld [vmem:[%s1149] sm:$0xff]
  %v1151 = vld [vmem:[%s1149 + $0x8] sm:$0xff]
  %v1152 = vld [vmem:[%s1149 + $0x10] sm:$0xff]
  %v1153 = vld [vmem:[%s1149 + $0x18] sm:$0xff]
  %v1154 = vld [vmem:[%s1149 + $0x20] sm:$0xff]
  %v1155 = vld [vmem:[%s1149 + $0x28] sm:$0xff]
  %v1156 = vld [vmem:[%s1149 + $0x30] sm:$0xff]
  %v1157 = vld [vmem:[%s1149 + $0x38] sm:$0xff]
  %v1158 = vld [vmem:[%s1149 + $0x40] sm:$0xff]
  %v1159 = vld [vmem:[%s1149 + $0x48] sm:$0xff]
  %v1160 = vld [vmem:[%s1149 + $0x50] sm:$0xff]
  %v1161 = vld [vmem:[%s1149 + $0x58] sm:$0xff]
  %v1162 = vld [vmem:[%s1149 + $0x60] sm:$0xff]
  %v1163 = vld [vmem:[%s1149 + $0x68] sm:$0xff]
  %v1164 = vld [vmem:[%s1149 + $0x70] sm:$0xff]
  %v1165 = vld [vmem:[%s1149 + $0x78] sm:$0xff]
  %vm1166 = vsmask.f32 5376
  %v1167 = vrot.slane %v211, 2
  %v1168 = vrot.slane %v213, 3
  %v1169 = vor.u32 %v1167, %v1168
  %v1170 = vrot.slane %v222, 2
  %v1171 = vrot.slane %v218, 3
  %v1172 = vor.u32 %v1170, %v1171
  %v1173 = vsel %vm1166, %v1169, %v1172
  %v1174 = vrot.slane %v230, 2
  %v1175 = vrot.slane %v226, 3
  %v1176 = vor.u32 %v1174, %v1175
  %v1177 = vsel %vm1166, %v1172, %v1176
  %v1178 = vrot.slane %v238, 2
  %v1179 = vrot.slane %v234, 3
  %v1180 = vor.u32 %v1178, %v1179
  %v1181 = vsel %vm1166, %v1176, %v1180
  %v1182 = vrot.slane %v246, 2
  %v1183 = vrot.slane %v242, 3
  %v1184 = vor.u32 %v1182, %v1183
  %v1185 = vsel %vm1166, %v1180, %v1184
  %v1207 = vunpack.c.l.b16 %v1150
  %v1208 = vunpack.c.h.b16 %v1150
  %v1209 = vunpack.c.l.b16 %v1151
  %v1210 = vunpack.c.h.b16 %v1151
  %v1211 = vunpack.c.l.b16 %v1152
  %v1212 = vunpack.c.h.b16 %v1152
  %v1213 = vunpack.c.l.b16 %v1153
  %v1214 = vunpack.c.h.b16 %v1153
  %v1215 = vunpack.c.l.b16 %v1154
  %v1216 = vunpack.c.h.b16 %v1154
  %v1217 = vunpack.c.l.b16 %v1155
  %v1218 = vunpack.c.h.b16 %v1155
  %v1219 = vunpack.c.l.b16 %v1156
  %v1220 = vunpack.c.h.b16 %v1156
  %v1221 = vunpack.c.l.b16 %v1157
  %v1222 = vunpack.c.h.b16 %v1157
  %v1223 = vunpack.c.l.b16 %v1158
  %v1224 = vunpack.c.h.b16 %v1158
  %v1225 = vunpack.c.l.b16 %v1159
  %v1226 = vunpack.c.h.b16 %v1159
  %v1227 = vunpack.c.l.b16 %v1160
  %v1228 = vunpack.c.h.b16 %v1160
  %v1229 = vunpack.c.l.b16 %v1161
  %v1230 = vunpack.c.h.b16 %v1161
  %v1231 = vunpack.c.l.b16 %v1162
  %v1232 = vunpack.c.h.b16 %v1162
  %v1233 = vunpack.c.l.b16 %v1163
  %v1234 = vunpack.c.h.b16 %v1163
  %v1235 = vunpack.c.l.b16 %v1164
  %v1236 = vunpack.c.h.b16 %v1164
  %v1237 = vunpack.c.l.b16 %v1165
  %v1238 = vunpack.c.h.b16 %v1165
  %v1239 = vpack.c.b16 %v1209, %v1207
  %v1240 = vpack.c.b16 %v1210, %v1208
  %v1241 = vpack.c.b16 %v1213, %v1211
  %v1242 = vpack.c.b16 %v1214, %v1212
  %v1243 = vpack.c.b16 %v1217, %v1215
  %v1244 = vpack.c.b16 %v1218, %v1216
  %v1245 = vpack.c.b16 %v1221, %v1219
  %v1246 = vpack.c.b16 %v1222, %v1220
  %v1247 = vpack.c.b16 %v1225, %v1223
  %v1248 = vpack.c.b16 %v1226, %v1224
  %v1249 = vpack.c.b16 %v1229, %v1227
  %v1250 = vpack.c.b16 %v1230, %v1228
  %v1251 = vpack.c.b16 %v1233, %v1231
  %v1252 = vpack.c.b16 %v1234, %v1232
  %v1253 = vpack.c.b16 %v1237, %v1235
  %v1254 = vpack.c.b16 %v1238, %v1236
  %1271 = vmatpush.bf16.msra.mxu0 %v1253
  %1272 = vmatpush.bf16.msra.mxu0 %v1251
  %1273 = vmatpush.bf16.msra.mxu0 %v1249
  %1274 = vmatpush.bf16.msra.mxu0 %v1247
  %1275 = vmatpush.bf16.msra.mxu0 %v1245
  %1276 = vmatpush.bf16.msra.mxu0 %v1243
  %1277 = vmatpush.bf16.msra.mxu0 %v1241
  %1278 = vmatpush.bf16.msra.mxu0 %v1239
  %1279 = vmatmul.bf16.gmra.mxu0 %v1173
  %v1280 = vpop.f32.mrf.mxu0
  %v1281 = vadd.f32 0.0, %v1280
  %v1282 = vpop.f32.mrf.mxu0
  %v1283 = vadd.f32 0.0, %v1282
  %1284 = vmatmul.bf16.gmra.mxu0 %v1177
  %v1285 = vpop.f32.mrf.mxu0
  %v1286 = vadd.f32 0.0, %v1285
  %v1287 = vpop.f32.mrf.mxu0
  %v1288 = vadd.f32 0.0, %v1287
  %1289 = vmatmul.bf16.gmra.mxu0 %v1181
  %v1290 = vpop.f32.mrf.mxu0
  %v1291 = vadd.f32 0.0, %v1290
  %v1292 = vpop.f32.mrf.mxu0
  %v1293 = vadd.f32 0.0, %v1292
  %1294 = vmatmul.bf16.gmra.mxu0 %v1185
  %v1295 = vpop.f32.mrf.mxu0
  %v1296 = vadd.f32 0.0, %v1295
  %v1297 = vpop.f32.mrf.mxu0
  %v1298 = vadd.f32 0.0, %v1297
  %1299 = vmatmul.bf16.gmra.mxu0 %v1184
  %v1300 = vpop.f32.mrf.mxu0
  %v1301 = vadd.f32 0.0, %v1300
  %v1302 = vpop.f32.mrf.mxu0
  %1303 = vdwg.mxu0
  %1304 = vmatpush.bf16.msra.mxu0 %v1254
  %1305 = vmatpush.bf16.msra.mxu0 %v1252
  %1306 = vmatpush.bf16.msra.mxu0 %v1250
  %1307 = vmatpush.bf16.msra.mxu0 %v1248
  %1308 = vmatpush.bf16.msra.mxu0 %v1246
  %1309 = vmatpush.bf16.msra.mxu0 %v1244
  %1310 = vmatpush.bf16.msra.mxu0 %v1242
  %1311 = vmatpush.bf16.msra.mxu0 %v1240
  %1312 = vmatmul.bf16.gmra.mxu0 %v1173
  %v1313 = vpop.f32.mrf.mxu0
  %v1314 = vadd.f32 0.0, %v1313
  %v1315 = vpop.f32.mrf.mxu0
  %v1316 = vadd.f32 0.0, %v1315
  %1317 = vmatmul.bf16.gmra.mxu0 %v1177
  %v1318 = vpop.f32.mrf.mxu0
  %v1319 = vadd.f32 0.0, %v1318
  %v1320 = vpop.f32.mrf.mxu0
  %v1321 = vadd.f32 0.0, %v1320
  %1322 = vmatmul.bf16.gmra.mxu0 %v1181
  %v1323 = vpop.f32.mrf.mxu0
  %v1324 = vadd.f32 0.0, %v1323
  %v1325 = vpop.f32.mrf.mxu0
  %v1326 = vadd.f32 0.0, %v1325
  %1327 = vmatmul.bf16.gmra.mxu0 %v1185
  %v1328 = vpop.f32.mrf.mxu0
  %v1329 = vadd.f32 0.0, %v1328
  %v1330 = vpop.f32.mrf.mxu0
  %v1331 = vadd.f32 0.0, %v1330
  %1332 = vmatmul.bf16.gmra.mxu0 %v1184
  %v1333 = vpop.f32.mrf.mxu0
  %v1334 = vadd.f32 0.0, %v1333
  %v1335 = vpop.f32.mrf.mxu0
  %1336 = vdwg.mxu0
  %v1337 = vadd.f32 %v1131, %v1281
  %v1338 = vadd.f32 %v1132, %v1314
  %v1339 = vadd.f32 %v1133, %v1283
  %v1340 = vadd.f32 %v1134, %v1316
  %v1341 = vadd.f32 %v1135, %v1286
  %v1342 = vadd.f32 %v1136, %v1319
  %v1343 = vadd.f32 %v1137, %v1288
  %v1344 = vadd.f32 %v1138, %v1321
  %v1345 = vadd.f32 %v1139, %v1291
  %v1346 = vadd.f32 %v1140, %v1324
  %v1347 = vadd.f32 %v1141, %v1293
  %v1348 = vadd.f32 %v1142, %v1326
  %v1349 = vadd.f32 %v1143, %v1296
  %v1350 = vadd.f32 %v1144, %v1329
  %v1351 = vadd.f32 %v1145, %v1298
  %v1352 = vadd.f32 %v1146, %v1331
  %v1353 = vadd.f32 %v1147, %v1301
  %v1354 = vadd.f32 %v1148, %v1334
  %s1355 = scalar_lea.vmem %s5, 768
  %v1356 = vld [vmem:[%s1355] sm:$0xff]
  %v1357 = vld [vmem:[%s1355 + $0x8] sm:$0xff]
  %v1358 = vld [vmem:[%s1355 + $0x10] sm:$0xff]
  %v1359 = vld [vmem:[%s1355 + $0x18] sm:$0xff]
  %v1360 = vld [vmem:[%s1355 + $0x20] sm:$0xff]
  %v1361 = vld [vmem:[%s1355 + $0x28] sm:$0xff]
  %v1362 = vld [vmem:[%s1355 + $0x30] sm:$0xff]
  %v1363 = vld [vmem:[%s1355 + $0x38] sm:$0xff]
  %v1364 = vld [vmem:[%s1355 + $0x40] sm:$0xff]
  %v1365 = vld [vmem:[%s1355 + $0x48] sm:$0xff]
  %v1366 = vld [vmem:[%s1355 + $0x50] sm:$0xff]
  %v1367 = vld [vmem:[%s1355 + $0x58] sm:$0xff]
  %v1368 = vld [vmem:[%s1355 + $0x60] sm:$0xff]
  %v1369 = vld [vmem:[%s1355 + $0x68] sm:$0xff]
  %v1370 = vld [vmem:[%s1355 + $0x70] sm:$0xff]
  %v1371 = vld [vmem:[%s1355 + $0x78] sm:$0xff]
  %vm1372 = vcmask 1044480
  %v1373 = vrot.slane %v170, 3
  %v1374 = vrot.slane %v171, 3
  %v1375 = vsel %vm1372, %v1373, %v1374
  %v1376 = vrot.slane %v172, 3
  %v1377 = vsel %vm1372, %v1374, %v1376
  %v1378 = vrot.slane %v173, 3
  %v1379 = vsel %vm1372, %v1376, %v1378
  %v1380 = vrot.slane %v191, 3
  %v1381 = vsel %vm1372, %v1378, %v1380
  %v1403 = vunpack.c.l.b16 %v1356
  %v1404 = vunpack.c.h.b16 %v1356
  %v1405 = vunpack.c.l.b16 %v1357
  %v1406 = vunpack.c.h.b16 %v1357
  %v1407 = vunpack.c.l.b16 %v1358
  %v1408 = vunpack.c.h.b16 %v1358
  %v1409 = vunpack.c.l.b16 %v1359
  %v1410 = vunpack.c.h.b16 %v1359
  %v1411 = vunpack.c.l.b16 %v1360
  %v1412 = vunpack.c.h.b16 %v1360
  %v1413 = vunpack.c.l.b16 %v1361
  %v1414 = vunpack.c.h.b16 %v1361
  %v1415 = vunpack.c.l.b16 %v1362
  %v1416 = vunpack.c.h.b16 %v1362
  %v1417 = vunpack.c.l.b16 %v1363
  %v1418 = vunpack.c.h.b16 %v1363
  %v1419 = vunpack.c.l.b16 %v1364
  %v1420 = vunpack.c.h.b16 %v1364
  %v1421 = vunpack.c.l.b16 %v1365
  %v1422 = vunpack.c.h.b16 %v1365
  %v1423 = vunpack.c.l.b16 %v1366
  %v1424 = vunpack.c.h.b16 %v1366
  %v1425 = vunpack.c.l.b16 %v1367
  %v1426 = vunpack.c.h.b16 %v1367
  %v1427 = vunpack.c.l.b16 %v1368
  %v1428 = vunpack.c.h.b16 %v1368
  %v1429 = vunpack.c.l.b16 %v1369
  %v1430 = vunpack.c.h.b16 %v1369
  %v1431 = vunpack.c.l.b16 %v1370
  %v1432 = vunpack.c.h.b16 %v1370
  %v1433 = vunpack.c.l.b16 %v1371
  %v1434 = vunpack.c.h.b16 %v1371
  %v1435 = vpack.c.b16 %v1405, %v1403
  %v1436 = vpack.c.b16 %v1406, %v1404
  %v1437 = vpack.c.b16 %v1409, %v1407
  %v1438 = vpack.c.b16 %v1410, %v1408
  %v1439 = vpack.c.b16 %v1413, %v1411
  %v1440 = vpack.c.b16 %v1414, %v1412
  %v1441 = vpack.c.b16 %v1417, %v1415
  %v1442 = vpack.c.b16 %v1418, %v1416
  %v1443 = vpack.c.b16 %v1421, %v1419
  %v1444 = vpack.c.b16 %v1422, %v1420
  %v1445 = vpack.c.b16 %v1425, %v1423
  %v1446 = vpack.c.b16 %v1426, %v1424
  %v1447 = vpack.c.b16 %v1429, %v1427
  %v1448 = vpack.c.b16 %v1430, %v1428
  %v1449 = vpack.c.b16 %v1433, %v1431
  %v1450 = vpack.c.b16 %v1434, %v1432
  %1467 = vmatpush.bf16.msra.mxu0 %v1449
  %1468 = vmatpush.bf16.msra.mxu0 %v1447
  %1469 = vmatpush.bf16.msra.mxu0 %v1445
  %1470 = vmatpush.bf16.msra.mxu0 %v1443
  %1471 = vmatpush.bf16.msra.mxu0 %v1441
  %1472 = vmatpush.bf16.msra.mxu0 %v1439
  %1473 = vmatpush.bf16.msra.mxu0 %v1437
  %1474 = vmatpush.bf16.msra.mxu0 %v1435
  %1475 = vmatmul.bf16.gmra.mxu0 %v1375
  %v1476 = vpop.f32.mrf.mxu0
  %v1477 = vadd.f32 0.0, %v1476
  %v1478 = vpop.f32.mrf.mxu0
  %v1479 = vadd.f32 0.0, %v1478
  %1480 = vmatmul.bf16.gmra.mxu0 %v1377
  %v1481 = vpop.f32.mrf.mxu0
  %v1482 = vadd.f32 0.0, %v1481
  %v1483 = vpop.f32.mrf.mxu0
  %v1484 = vadd.f32 0.0, %v1483
  %1485 = vmatmul.bf16.gmra.mxu0 %v1379
  %v1486 = vpop.f32.mrf.mxu0
  %v1487 = vadd.f32 0.0, %v1486
  %v1488 = vpop.f32.mrf.mxu0
  %v1489 = vadd.f32 0.0, %v1488
  %1490 = vmatmul.bf16.gmra.mxu0 %v1381
  %v1491 = vpop.f32.mrf.mxu0
  %v1492 = vadd.f32 0.0, %v1491
  %v1493 = vpop.f32.mrf.mxu0
  %v1494 = vadd.f32 0.0, %v1493
  %1495 = vmatmul.bf16.gmra.mxu0 %v1380
  %v1496 = vpop.f32.mrf.mxu0
  %v1497 = vadd.f32 0.0, %v1496
  %v1498 = vpop.f32.mrf.mxu0
  %1499 = vdwg.mxu0
  %1500 = vmatpush.bf16.msra.mxu0 %v1450
  %1501 = vmatpush.bf16.msra.mxu0 %v1448
  %1502 = vmatpush.bf16.msra.mxu0 %v1446
  %1503 = vmatpush.bf16.msra.mxu0 %v1444
  %1504 = vmatpush.bf16.msra.mxu0 %v1442
  %1505 = vmatpush.bf16.msra.mxu0 %v1440
  %1506 = vmatpush.bf16.msra.mxu0 %v1438
  %1507 = vmatpush.bf16.msra.mxu0 %v1436
  %1508 = vmatmul.bf16.gmra.mxu0 %v1375
  %v1509 = vpop.f32.mrf.mxu0
  %v1510 = vadd.f32 0.0, %v1509
  %v1511 = vpop.f32.mrf.mxu0
  %v1512 = vadd.f32 0.0, %v1511
  %1513 = vmatmul.bf16.gmra.mxu0 %v1377
  %v1514 = vpop.f32.mrf.mxu0
  %v1515 = vadd.f32 0.0, %v1514
  %v1516 = vpop.f32.mrf.mxu0
  %v1517 = vadd.f32 0.0, %v1516
  %1518 = vmatmul.bf16.gmra.mxu0 %v1379
  %v1519 = vpop.f32.mrf.mxu0
  %v1520 = vadd.f32 0.0, %v1519
  %v1521 = vpop.f32.mrf.mxu0
  %v1522 = vadd.f32 0.0, %v1521
  %1523 = vmatmul.bf16.gmra.mxu0 %v1381
  %v1524 = vpop.f32.mrf.mxu0
  %v1525 = vadd.f32 0.0, %v1524
  %v1526 = vpop.f32.mrf.mxu0
  %v1527 = vadd.f32 0.0, %v1526
  %1528 = vmatmul.bf16.gmra.mxu0 %v1380
  %v1529 = vpop.f32.mrf.mxu0
  %v1530 = vadd.f32 0.0, %v1529
  %v1531 = vpop.f32.mrf.mxu0
  %1532 = vdwg.mxu0
  %v1533 = vadd.f32 %v1337, %v1477
  %v1534 = vadd.f32 %v1338, %v1510
  %v1535 = vadd.f32 %v1339, %v1479
  %v1536 = vadd.f32 %v1340, %v1512
  %v1537 = vadd.f32 %v1341, %v1482
  %v1538 = vadd.f32 %v1342, %v1515
  %v1539 = vadd.f32 %v1343, %v1484
  %v1540 = vadd.f32 %v1344, %v1517
  %v1541 = vadd.f32 %v1345, %v1487
  %v1542 = vadd.f32 %v1346, %v1520
  %v1543 = vadd.f32 %v1347, %v1489
  %v1544 = vadd.f32 %v1348, %v1522
  %v1545 = vadd.f32 %v1349, %v1492
  %v1546 = vadd.f32 %v1350, %v1525
  %v1547 = vadd.f32 %v1351, %v1494
  %v1548 = vadd.f32 %v1352, %v1527
  %v1549 = vadd.f32 %v1353, %v1497
  %v1550 = vadd.f32 %v1354, %v1530
  %v1551 = vld [vmem:[%s6] sm:$0x3]
  %v1553 = vperm.slane %v1551, 0
  %v1554 = vperm.slane %v1551, 1
  %v1557 = vmul.f32 %v1533, %v1553
  %v1558 = vmul.f32 %v1534, %v1554
  %v1559 = vmul.f32 %v1535, %v1553
  %v1560 = vmul.f32 %v1536, %v1554
  %v1561 = vmul.f32 %v1537, %v1553
  %v1562 = vmul.f32 %v1538, %v1554
  %v1563 = vmul.f32 %v1539, %v1553
  %v1564 = vmul.f32 %v1540, %v1554
  %v1565 = vmul.f32 %v1541, %v1553
  %v1566 = vmul.f32 %v1542, %v1554
  %v1567 = vmul.f32 %v1543, %v1553
  %v1568 = vmul.f32 %v1544, %v1554
  %v1569 = vmul.f32 %v1545, %v1553
  %v1570 = vmul.f32 %v1546, %v1554
  %v1571 = vmul.f32 %v1547, %v1553
  %v1572 = vmul.f32 %v1548, %v1554
  %v1573 = vmul.f32 %v1549, %v1553
  %v1574 = vmul.f32 %v1550, %v1554
  %v1575 = vld [vmem:[%s7] sm:$0x3]
  %v1577 = vperm.slane %v1575, 0
  %v1578 = vperm.slane %v1575, 1
  %v1581 = vadd.f32 %v1557, %v1577
  %v1582 = vadd.f32 %v1558, %v1578
  %v1583 = vadd.f32 %v1559, %v1577
  %v1584 = vadd.f32 %v1560, %v1578
  %v1585 = vadd.f32 %v1561, %v1577
  %v1586 = vadd.f32 %v1562, %v1578
  %v1587 = vadd.f32 %v1563, %v1577
  %v1588 = vadd.f32 %v1564, %v1578
  %v1589 = vadd.f32 %v1565, %v1577
  %v1590 = vadd.f32 %v1566, %v1578
  %v1591 = vadd.f32 %v1567, %v1577
  %v1592 = vadd.f32 %v1568, %v1578
  %v1593 = vadd.f32 %v1569, %v1577
  %v1594 = vadd.f32 %v1570, %v1578
  %v1595 = vadd.f32 %v1571, %v1577
  %v1596 = vadd.f32 %v1572, %v1578
  %v1597 = vadd.f32 %v1573, %v1577
  %v1598 = vadd.f32 %v1574, %v1578
  %v1599 = vmax.f32 %v1581, 0.0
  %v1600 = vmax.f32 %v1582, 0.0
  %v1601 = vmax.f32 %v1583, 0.0
  %v1602 = vmax.f32 %v1584, 0.0
  %v1603 = vmax.f32 %v1585, 0.0
  %v1604 = vmax.f32 %v1586, 0.0
  %v1605 = vmax.f32 %v1587, 0.0
  %v1606 = vmax.f32 %v1588, 0.0
  %v1607 = vmax.f32 %v1589, 0.0
  %v1608 = vmax.f32 %v1590, 0.0
  %v1609 = vmax.f32 %v1591, 0.0
  %v1610 = vmax.f32 %v1592, 0.0
  %v1611 = vmax.f32 %v1593, 0.0
  %v1612 = vmax.f32 %v1594, 0.0
  %v1613 = vmax.f32 %v1595, 0.0
  %v1614 = vmax.f32 %v1596, 0.0
  %v1615 = vmax.f32 %v1597, 0.0
  %v1616 = vmax.f32 %v1598, 0.0
  %v1617 = vld [vmem:[%s2] sm:$0xf]
  %v1618 = vld [vmem:[%s2 + $0x4] sm:$0xf]
  %v1619 = vld [vmem:[%s2 + $0x8] sm:$0xf]
  %v1620 = vld [vmem:[%s2 + $0xc] sm:$0xf]
  %v1621 = vld [vmem:[%s2 + $0x10] sm:$0xf]
  %v1622 = vld [vmem:[%s2 + $0x14] sm:$0xf]
  %v1623 = vld [vmem:[%s2 + $0x18] sm:$0xf]
  %v1624 = vld [vmem:[%s2 + $0x1c] sm:$0xf]
  %v1625 = vld [vmem:[%s2 + $0x20] sm:$0xf]
  %v1626 = vld [vmem:[%s2 + $0x24] sm:$0x7]
  %v1627 = vpack.c.bf16 %v1601, %v1599
  %v1628 = vpack.c.bf16 %v1602, %v1600
  %v1629 = vpack.c.bf16 %v1605, %v1603
  %v1630 = vpack.c.bf16 %v1606, %v1604
  %v1631 = vpack.c.bf16 %v1609, %v1607
  %v1632 = vpack.c.bf16 %v1610, %v1608
  %v1633 = vpack.c.bf16 %v1613, %v1611
  %v1634 = vpack.c.bf16 %v1614, %v1612
  %v1635 = vpack.c.bf16 %v1615, %v1615
  %v1636 = vpack.c.bf16 %v1616, %v1616
  %v1647 = vunpack.c.l.b16 %v1617
  %v1648 = vunpack.c.l.b16 %v1618
  %v1649 = vunpack.c.l.b16 %v1619
  %v1650 = vunpack.c.l.b16 %v1620
  %v1651 = vunpack.c.l.b16 %v1621
  %v1652 = vunpack.c.l.b16 %v1622
  %v1653 = vunpack.c.l.b16 %v1623
  %v1654 = vunpack.c.l.b16 %v1624
  %v1655 = vunpack.c.l.b16 %v1625
  %v1656 = vunpack.c.l.b16 %v1626
  %v1657 = vpack.c.b16 %v1648, %v1647
  %v1658 = vpack.c.b16 %v1650, %v1649
  %v1659 = vpack.c.b16 %v1652, %v1651
  %v1660 = vpack.c.b16 %v1654, %v1653
  %v1661 = vpack.c.b16 %v1656, %v1655
  %vm1662 = vcmask 588800
  %v1664 = vsel %vm1662, %v1657, 0
  %v1667 = vsel %vm1662, %v1658, 0
  %v1670 = vsel %vm1662, %v1659, 0
  %v1673 = vsel %vm1662, %v1660, 0
  %v1676 = vsel %vm1662, %v1661, 0
  %vm1678 = vcmask 1043456
  %v1680 = vsel %vm1678, %v1635, 0
  %v1683 = vsel %vm1678, %v1636, 0
  %1685 = vmatpush.bf16.msra.mxu0 0
  %1686 = vmatpush.bf16.msra.mxu0 0
  %1687 = vmatpush.bf16.msra.mxu0 0
  %1688 = vmatpush.bf16.msra.mxu0 %v1680
  %1689 = vmatpush.bf16.msra.mxu0 %v1633
  %1690 = vmatpush.bf16.msra.mxu0 %v1631
  %1691 = vmatpush.bf16.msra.mxu0 %v1629
  %1692 = vmatpush.bf16.msra.mxu0 %v1627
  %1693 = vmatmul.bf16.gmra.mxu0 %v1664
  %v1694 = vpop.f32.mrf.mxu0
  %v1695 = vadd.f32 0.0, %v1694
  %v1696 = vpop.f32.mrf.mxu0
  %v1697 = vadd.f32 0.0, %v1696
  %1698 = vmatmul.bf16.gmra.mxu0 %v1667
  %v1699 = vpop.f32.mrf.mxu0
  %v1700 = vadd.f32 0.0, %v1699
  %v1701 = vpop.f32.mrf.mxu0
  %v1702 = vadd.f32 0.0, %v1701
  %1703 = vmatmul.bf16.gmra.mxu0 %v1670
  %v1704 = vpop.f32.mrf.mxu0
  %v1705 = vadd.f32 0.0, %v1704
  %v1706 = vpop.f32.mrf.mxu0
  %v1707 = vadd.f32 0.0, %v1706
  %1708 = vmatmul.bf16.gmra.mxu0 %v1673
  %v1709 = vpop.f32.mrf.mxu0
  %v1710 = vadd.f32 0.0, %v1709
  %v1711 = vpop.f32.mrf.mxu0
  %v1712 = vadd.f32 0.0, %v1711
  %1713 = vmatmul.bf16.gmra.mxu0 %v1676
  %v1714 = vpop.f32.mrf.mxu0
  %v1715 = vadd.f32 0.0, %v1714
  %v1716 = vpop.f32.mrf.mxu0
  %v1717 = vadd.f32 0.0, %v1716
  %1718 = vdwg.mxu0
  %1719 = vmatpush.bf16.msra.mxu0 0
  %1720 = vmatpush.bf16.msra.mxu0 0
  %1721 = vmatpush.bf16.msra.mxu0 0
  %1722 = vmatpush.bf16.msra.mxu0 %v1683
  %1723 = vmatpush.bf16.msra.mxu0 %v1634
  %1724 = vmatpush.bf16.msra.mxu0 %v1632
  %1725 = vmatpush.bf16.msra.mxu0 %v1630
  %1726 = vmatpush.bf16.msra.mxu0 %v1628
  %1727 = vmatmul.bf16.gmra.mxu0 %v1664
  %v1728 = vpop.f32.mrf.mxu0
  %v1729 = vadd.f32 0.0, %v1728
  %v1730 = vpop.f32.mrf.mxu0
  %v1731 = vadd.f32 0.0, %v1730
  %1732 = vmatmul.bf16.gmra.mxu0 %v1667
  %v1733 = vpop.f32.mrf.mxu0
  %v1734 = vadd.f32 0.0, %v1733
  %v1735 = vpop.f32.mrf.mxu0
  %v1736 = vadd.f32 0.0, %v1735
  %1737 = vmatmul.bf16.gmra.mxu0 %v1670
  %v1738 = vpop.f32.mrf.mxu0
  %v1739 = vadd.f32 0.0, %v1738
  %v1740 = vpop.f32.mrf.mxu0
  %v1741 = vadd.f32 0.0, %v1740
  %1742 = vmatmul.bf16.gmra.mxu0 %v1673
  %v1743 = vpop.f32.mrf.mxu0
  %v1744 = vadd.f32 0.0, %v1743
  %v1745 = vpop.f32.mrf.mxu0
  %v1746 = vadd.f32 0.0, %v1745
  %1747 = vmatmul.bf16.gmra.mxu0 %v1676
  %v1748 = vpop.f32.mrf.mxu0
  %v1749 = vadd.f32 0.0, %v1748
  %v1750 = vpop.f32.mrf.mxu0
  %v1751 = vadd.f32 0.0, %v1750
  %1752 = vdwg.mxu0
  %v1753 = vpack.c.bf16 %v1697, %v1695
  %v1754 = vpack.c.bf16 %v1731, %v1729
  %v1755 = vpack.c.bf16 %v1702, %v1700
  %v1756 = vpack.c.bf16 %v1736, %v1734
  %v1757 = vpack.c.bf16 %v1707, %v1705
  %v1758 = vpack.c.bf16 %v1741, %v1739
  %v1759 = vpack.c.bf16 %v1712, %v1710
  %v1760 = vpack.c.bf16 %v1746, %v1744
  %v1761 = vpack.c.bf16 %v1715, %v1715
  %v1762 = vpack.c.bf16 %v1749, %v1749
  %v1763 = vld [vmem:[%s8] sm:$0xf]
  %v1764 = vld [vmem:[%s8 + $0x4] sm:$0xf]
  %v1765 = vld [vmem:[%s8 + $0x8] sm:$0xf]
  %v1766 = vld [vmem:[%s8 + $0xc] sm:$0xf]
  %v1767 = vld [vmem:[%s8 + $0x10] sm:$0xf]
  %v1768 = vld [vmem:[%s8 + $0x14] sm:$0xf]
  %v1769 = vld [vmem:[%s8 + $0x18] sm:$0xf]
  %v1770 = vld [vmem:[%s8 + $0x1c] sm:$0xf]
  %v1771 = vld [vmem:[%s8 + $0x20] sm:$0xf]
  %v1772 = vld [vmem:[%s8 + $0x24] sm:$0xf]
  %v1773 = vld [vmem:[%s8 + $0x28] sm:$0xf]
  %v1774 = vld [vmem:[%s8 + $0x2c] sm:$0xf]
  %v1775 = vld [vmem:[%s8 + $0x30] sm:$0xf]
  %v1776 = vld [vmem:[%s8 + $0x34] sm:$0xf]
  %v1777 = vld [vmem:[%s8 + $0x38] sm:$0xf]
  %v1778 = vld [vmem:[%s8 + $0x3c] sm:$0xf]
  %v1779 = vld [vmem:[%s8 + $0x40] sm:$0xf]
  %v1780 = vld [vmem:[%s8 + $0x44] sm:$0xf]
  %v1781 = vld [vmem:[%s8 + $0x48] sm:$0xf]
  %v1782 = vld [vmem:[%s8 + $0x4c] sm:$0xf]
  %v1783 = vld [vmem:[%s8 + $0x50] sm:$0xf]
  %v1784 = vld [vmem:[%s8 + $0x54] sm:$0xf]
  %v1785 = vld [vmem:[%s8 + $0x58] sm:$0xf]
  %v1786 = vld [vmem:[%s8 + $0x5c] sm:$0xf]
  %v1787 = vpack.c.bf16 %v1717, %v1715
  %v1788 = vpack.c.bf16 %v1751, %v1749
  %s1789 = scalar_lea.vmem %s8, 96
  %v1790 = vld [vmem:[%s1789] sm:$0xf]
  %v1791 = vld [vmem:[%s1789 + $0x4] sm:$0xf]
  %v1792 = vld [vmem:[%s1789 + $0x8] sm:$0xf]
  %v1793 = vld [vmem:[%s1789 + $0xc] sm:$0xf]
  %v1794 = vld [vmem:[%s1789 + $0x10] sm:$0xf]
  %v1795 = vld [vmem:[%s1789 + $0x14] sm:$0xf]
  %v1796 = vld [vmem:[%s1789 + $0x18] sm:$0xf]
  %v1797 = vld [vmem:[%s1789 + $0x1c] sm:$0xf]
  %v1798 = vld [vmem:[%s1789 + $0x20] sm:$0xf]
  %v1799 = vld [vmem:[%s1789 + $0x24] sm:$0xf]
  %v1800 = vld [vmem:[%s1789 + $0x28] sm:$0xf]
  %v1801 = vld [vmem:[%s1789 + $0x2c] sm:$0xf]
  %v1802 = vld [vmem:[%s1789 + $0x30] sm:$0xf]
  %v1803 = vld [vmem:[%s1789 + $0x34] sm:$0xf]
  %v1804 = vld [vmem:[%s1789 + $0x38] sm:$0xf]
  %v1805 = vld [vmem:[%s1789 + $0x3c] sm:$0xf]
  %v1806 = vld [vmem:[%s1789 + $0x40] sm:$0xf]
  %v1807 = vld [vmem:[%s1789 + $0x44] sm:$0xf]
  %v1808 = vld [vmem:[%s1789 + $0x48] sm:$0xf]
  %v1809 = vld [vmem:[%s1789 + $0x4c] sm:$0xf]
  %v1810 = vld [vmem:[%s1789 + $0x50] sm:$0xf]
  %v1811 = vld [vmem:[%s1789 + $0x54] sm:$0xf]
  %v1812 = vld [vmem:[%s1789 + $0x58] sm:$0xf]
  %v1813 = vld [vmem:[%s1789 + $0x5c] sm:$0xf]
  %v1815 = vshrl.u32 %v1753, 16
  %v1817 = vshll.u32 %v1753, 16
  %v1819 = vrot.slane %v1817, 1
  %v1820 = vor.u32 %v1815, %v1819
  %v1822 = vshll.u32 %v1755, 16
  %v1824 = vrot.slane %v1822, 1
  %v1825 = vsel %vm209, %v1820, %v1824
  %v1827 = vshrl.u32 %v1754, 16
  %v1829 = vshll.u32 %v1754, 16
  %v1831 = vrot.slane %v1829, 1
  %v1832 = vor.u32 %v1827, %v1831
  %v1834 = vshll.u32 %v1756, 16
  %v1836 = vrot.slane %v1834, 1
  %v1837 = vsel %vm209, %v1832, %v1836
  %v1838 = vshrl.u32 %v1755, 16
  %v1840 = vor.u32 %v1838, %v1824
  %v1842 = vshll.u32 %v1757, 16
  %v1844 = vrot.slane %v1842, 1
  %v1845 = vsel %vm209, %v1840, %v1844
  %v1846 = vshrl.u32 %v1756, 16
  %v1848 = vor.u32 %v1846, %v1836
  %v1850 = vshll.u32 %v1758, 16
  %v1852 = vrot.slane %v1850, 1
  %v1853 = vsel %vm209, %v1848, %v1852
  %v1854 = vshrl.u32 %v1757, 16
  %v1856 = vor.u32 %v1854, %v1844
  %v1858 = vshll.u32 %v1759, 16
  %v1860 = vrot.slane %v1858, 1
  %v1861 = vsel %vm209, %v1856, %v1860
  %v1862 = vshrl.u32 %v1758, 16
  %v1864 = vor.u32 %v1862, %v1852
  %v1866 = vshll.u32 %v1760, 16
  %v1868 = vrot.slane %v1866, 1
  %v1869 = vsel %vm209, %v1864, %v1868
  %v1870 = vshrl.u32 %v1759, 16
  %v1872 = vor.u32 %v1870, %v1860
  %v1874 = vshll.u32 %v1787, 16
  %v1876 = vrot.slane %v1874, 1
  %v1877 = vsel %vm209, %v1872, %v1876
  %v1878 = vshrl.u32 %v1760, 16
  %v1880 = vor.u32 %v1878, %v1868
  %v1882 = vshll.u32 %v1788, 16
  %v1884 = vrot.slane %v1882, 1
  %v1885 = vsel %vm209, %v1880, %v1884
  %v1886 = vshrl.u32 %v1787, 16
  %v1888 = vor.u32 %v1886, %v1876
  %v1889 = vshrl.u32 %v1788, 16
  %v1891 = vor.u32 %v1889, %v1884
  %v1921 = vunpack.c.l.b16 %v1790
  %v1922 = vunpack.c.l.b16 %v1791
  %v1923 = vunpack.c.l.b16 %v1792
  %v1924 = vunpack.c.l.b16 %v1793
  %v1925 = vunpack.c.l.b16 %v1794
  %v1926 = vunpack.c.l.b16 %v1795
  %v1927 = vunpack.c.l.b16 %v1796
  %v1928 = vunpack.c.l.b16 %v1797
  %v1929 = vunpack.c.l.b16 %v1798
  %v1930 = vunpack.c.l.b16 %v1799
  %v1931 = vunpack.c.l.b16 %v1800
  %v1932 = vunpack.c.l.b16 %v1801
  %v1933 = vunpack.c.l.b16 %v1802
  %v1934 = vunpack.c.l.b16 %v1803
  %v1935 = vunpack.c.l.b16 %v1804
  %v1936 = vunpack.c.l.b16 %v1805
  %v1937 = vunpack.c.l.b16 %v1806
  %v1938 = vunpack.c.l.b16 %v1807
  %v1939 = vunpack.c.l.b16 %v1808
  %v1940 = vunpack.c.l.b16 %v1809
  %v1941 = vunpack.c.l.b16 %v1810
  %v1942 = vunpack.c.l.b16 %v1811
  %v1943 = vunpack.c.l.b16 %v1812
  %v1944 = vunpack.c.l.b16 %v1813
  %v1945 = vpack.c.b16 %v1922, %v1921
  %v1946 = vpack.c.b16 %v1924, %v1923
  %v1947 = vpack.c.b16 %v1926, %v1925
  %v1948 = vpack.c.b16 %v1928, %v1927
  %v1949 = vpack.c.b16 %v1930, %v1929
  %v1950 = vpack.c.b16 %v1932, %v1931
  %v1951 = vpack.c.b16 %v1934, %v1933
  %v1952 = vpack.c.b16 %v1936, %v1935
  %v1953 = vpack.c.b16 %v1938, %v1937
  %v1954 = vpack.c.b16 %v1940, %v1939
  %v1955 = vpack.c.b16 %v1942, %v1941
  %v1956 = vpack.c.b16 %v1944, %v1943
  %vm1969 = vcmask 523264
  %v1971 = vsel %vm1969, %v1837, 0
  %v1974 = vsel %vm1969, %v1853, 0
  %v1977 = vsel %vm1969, %v1869, 0
  %v1980 = vsel %vm1969, %v1885, 0
  %v1983 = vsel %vm1969, %v1891, 0
  %1985 = vmatpush.bf16.msra.mxu0 %v1952
  %1986 = vmatpush.bf16.msra.mxu0 %v1951
  %1987 = vmatpush.bf16.msra.mxu0 %v1950
  %1988 = vmatpush.bf16.msra.mxu0 %v1949
  %1989 = vmatpush.bf16.msra.mxu0 %v1948
  %1990 = vmatpush.bf16.msra.mxu0 %v1947
  %1991 = vmatpush.bf16.msra.mxu0 %v1946
  %1992 = vmatpush.bf16.msra.mxu0 %v1945
  %1993 = vmatmul.bf16.gmra.mxu0 %v1825
  %v1994 = vpop.f32.mrf.mxu0
  %v1995 = vadd.f32 0.0, %v1994
  %v1996 = vpop.f32.mrf.mxu0
  %v1997 = vadd.f32 0.0, %v1996
  %1998 = vmatmul.bf16.gmra.mxu0 %v1845
  %v1999 = vpop.f32.mrf.mxu0
  %v2000 = vadd.f32 0.0, %v1999
  %v2001 = vpop.f32.mrf.mxu0
  %v2002 = vadd.f32 0.0, %v2001
  %2003 = vmatmul.bf16.gmra.mxu0 %v1861
  %v2004 = vpop.f32.mrf.mxu0
  %v2005 = vadd.f32 0.0, %v2004
  %v2006 = vpop.f32.mrf.mxu0
  %v2007 = vadd.f32 0.0, %v2006
  %2008 = vmatmul.bf16.gmra.mxu0 %v1877
  %v2009 = vpop.f32.mrf.mxu0
  %v2010 = vadd.f32 0.0, %v2009
  %v2011 = vpop.f32.mrf.mxu0
  %v2012 = vadd.f32 0.0, %v2011
  %2013 = vmatmul.bf16.gmra.mxu0 %v1888
  %v2014 = vpop.f32.mrf.mxu0
  %v2015 = vadd.f32 0.0, %v2014
  %v2016 = vpop.f32.mrf.mxu0
  %2017 = vdwg.mxu0
  %2018 = vmatpush.bf16.msra.mxu0 0
  %2019 = vmatpush.bf16.msra.mxu0 0
  %2020 = vmatpush.bf16.msra.mxu0 0
  %2021 = vmatpush.bf16.msra.mxu0 0
  %2022 = vmatpush.bf16.msra.mxu0 %v1956
  %2023 = vmatpush.bf16.msra.mxu0 %v1955
  %2024 = vmatpush.bf16.msra.mxu0 %v1954
  %2025 = vmatpush.bf16.msra.mxu0 %v1953
  %2026 = vmatmul.bf16.gmra.mxu0 %v1971
  %v2027 = vpop.f32.mrf.mxu0
  %v2028 = vadd.f32 %v1995, %v2027
  %v2029 = vpop.f32.mrf.mxu0
  %v2030 = vadd.f32 %v1997, %v2029
  %2031 = vmatmul.bf16.gmra.mxu0 %v1974
  %v2032 = vpop.f32.mrf.mxu0
  %v2033 = vadd.f32 %v2000, %v2032
  %v2034 = vpop.f32.mrf.mxu0
  %v2035 = vadd.f32 %v2002, %v2034
  %2036 = vmatmul.bf16.gmra.mxu0 %v1977
  %v2037 = vpop.f32.mrf.mxu0
  %v2038 = vadd.f32 %v2005, %v2037
  %v2039 = vpop.f32.mrf.mxu0
  %v2040 = vadd.f32 %v2007, %v2039
  %2041 = vmatmul.bf16.gmra.mxu0 %v1980
  %v2042 = vpop.f32.mrf.mxu0
  %v2043 = vadd.f32 %v2010, %v2042
  %v2044 = vpop.f32.mrf.mxu0
  %v2045 = vadd.f32 %v2012, %v2044
  %2046 = vmatmul.bf16.gmra.mxu0 %v1983
  %v2047 = vpop.f32.mrf.mxu0
  %v2048 = vadd.f32 %v2015, %v2047
  %v2049 = vpop.f32.mrf.mxu0
  %2050 = vdwg.mxu0
  %v2075 = vunpack.c.l.b16 %v1763
  %v2076 = vunpack.c.l.b16 %v1764
  %v2077 = vunpack.c.l.b16 %v1765
  %v2078 = vunpack.c.l.b16 %v1766
  %v2079 = vunpack.c.l.b16 %v1767
  %v2080 = vunpack.c.l.b16 %v1768
  %v2081 = vunpack.c.l.b16 %v1769
  %v2082 = vunpack.c.l.b16 %v1770
  %v2083 = vunpack.c.l.b16 %v1771
  %v2084 = vunpack.c.l.b16 %v1772
  %v2085 = vunpack.c.l.b16 %v1773
  %v2086 = vunpack.c.l.b16 %v1774
  %v2087 = vunpack.c.l.b16 %v1775
  %v2088 = vunpack.c.l.b16 %v1776
  %v2089 = vunpack.c.l.b16 %v1777
  %v2090 = vunpack.c.l.b16 %v1778
  %v2091 = vunpack.c.l.b16 %v1779
  %v2092 = vunpack.c.l.b16 %v1780
  %v2093 = vunpack.c.l.b16 %v1781
  %v2094 = vunpack.c.l.b16 %v1782
  %v2095 = vunpack.c.l.b16 %v1783
  %v2096 = vunpack.c.l.b16 %v1784
  %v2097 = vunpack.c.l.b16 %v1785
  %v2098 = vunpack.c.l.b16 %v1786
  %v2099 = vpack.c.b16 %v2076, %v2075
  %v2100 = vpack.c.b16 %v2078, %v2077
  %v2101 = vpack.c.b16 %v2080, %v2079
  %v2102 = vpack.c.b16 %v2082, %v2081
  %v2103 = vpack.c.b16 %v2084, %v2083
  %v2104 = vpack.c.b16 %v2086, %v2085
  %v2105 = vpack.c.b16 %v2088, %v2087
  %v2106 = vpack.c.b16 %v2090, %v2089
  %v2107 = vpack.c.b16 %v2092, %v2091
  %v2108 = vpack.c.b16 %v2094, %v2093
  %v2109 = vpack.c.b16 %v2096, %v2095
  %v2110 = vpack.c.b16 %v2098, %v2097
  %v2123 = vsel %vm1969, %v1754, 0
  %v2125 = vsel %vm1969, %v1756, 0
  %v2127 = vsel %vm1969, %v1758, 0
  %v2129 = vsel %vm1969, %v1760, 0
  %v2132 = vsel %vm1969, %v1762, 0
  %2134 = vmatpush.bf16.msra.mxu0 %v2106
  %2135 = vmatpush.bf16.msra.mxu0 %v2105
  %2136 = vmatpush.bf16.msra.mxu0 %v2104
  %2137 = vmatpush.bf16.msra.mxu0 %v2103
  %2138 = vmatpush.bf16.msra.mxu0 %v2102
  %2139 = vmatpush.bf16.msra.mxu0 %v2101
  %2140 = vmatpush.bf16.msra.mxu0 %v2100
  %2141 = vmatpush.bf16.msra.mxu0 %v2099
  %2142 = vmatmul.bf16.gmra.mxu0 %v1753
  %v2143 = vpop.f32.mrf.mxu0
  %v2144 = vadd.f32 %v2028, %v2143
  %v2145 = vpop.f32.mrf.mxu0
  %v2146 = vadd.f32 %v2030, %v2145
  %2147 = vmatmul.bf16.gmra.mxu0 %v1755
  %v2148 = vpop.f32.mrf.mxu0
  %v2149 = vadd.f32 %v2033, %v2148
  %v2150 = vpop.f32.mrf.mxu0
  %v2151 = vadd.f32 %v2035, %v2150
  %2152 = vmatmul.bf16.gmra.mxu0 %v1757
  %v2153 = vpop.f32.mrf.mxu0
  %v2154 = vadd.f32 %v2038, %v2153
  %v2155 = vpop.f32.mrf.mxu0
  %v2156 = vadd.f32 %v2040, %v2155
  %2157 = vmatmul.bf16.gmra.mxu0 %v1759
  %v2158 = vpop.f32.mrf.mxu0
  %v2159 = vadd.f32 %v2043, %v2158
  %v2160 = vpop.f32.mrf.mxu0
  %v2161 = vadd.f32 %v2045, %v2160
  %2162 = vmatmul.bf16.gmra.mxu0 %v1761
  %v2163 = vpop.f32.mrf.mxu0
  %v2164 = vadd.f32 %v2048, %v2163
  %v2165 = vpop.f32.mrf.mxu0
  %2166 = vdwg.mxu0
  %2167 = vmatpush.bf16.msra.mxu0 0
  %2168 = vmatpush.bf16.msra.mxu0 0
  %2169 = vmatpush.bf16.msra.mxu0 0
  %2170 = vmatpush.bf16.msra.mxu0 0
  %2171 = vmatpush.bf16.msra.mxu0 %v2110
  %2172 = vmatpush.bf16.msra.mxu0 %v2109
  %2173 = vmatpush.bf16.msra.mxu0 %v2108
  %2174 = vmatpush.bf16.msra.mxu0 %v2107
  %2175 = vmatmul.bf16.gmra.mxu0 %v2123
  %v2176 = vpop.f32.mrf.mxu0
  %v2177 = vadd.f32 %v2144, %v2176
  %v2178 = vpop.f32.mrf.mxu0
  %v2179 = vadd.f32 %v2146, %v2178
  %2180 = vmatmul.bf16.gmra.mxu0 %v2125
  %v2181 = vpop.f32.mrf.mxu0
  %v2182 = vadd.f32 %v2149, %v2181
  %v2183 = vpop.f32.mrf.mxu0
  %v2184 = vadd.f32 %v2151, %v2183
  %2185 = vmatmul.bf16.gmra.mxu0 %v2127
  %v2186 = vpop.f32.mrf.mxu0
  %v2187 = vadd.f32 %v2154, %v2186
  %v2188 = vpop.f32.mrf.mxu0
  %v2189 = vadd.f32 %v2156, %v2188
  %2190 = vmatmul.bf16.gmra.mxu0 %v2129
  %v2191 = vpop.f32.mrf.mxu0
  %v2192 = vadd.f32 %v2159, %v2191
  %v2193 = vpop.f32.mrf.mxu0
  %v2194 = vadd.f32 %v2161, %v2193
  %2195 = vmatmul.bf16.gmra.mxu0 %v2132
  %v2196 = vpop.f32.mrf.mxu0
  %v2197 = vadd.f32 %v2164, %v2196
  %v2198 = vpop.f32.mrf.mxu0
  %2199 = vdwg.mxu0
  %s2200 = scalar_lea.vmem %s8, 192
  %v2201 = vld [vmem:[%s2200] sm:$0xf]
  %v2202 = vld [vmem:[%s2200 + $0x4] sm:$0xf]
  %v2203 = vld [vmem:[%s2200 + $0x8] sm:$0xf]
  %v2204 = vld [vmem:[%s2200 + $0xc] sm:$0xf]
  %v2205 = vld [vmem:[%s2200 + $0x10] sm:$0xf]
  %v2206 = vld [vmem:[%s2200 + $0x14] sm:$0xf]
  %v2207 = vld [vmem:[%s2200 + $0x18] sm:$0xf]
  %v2208 = vld [vmem:[%s2200 + $0x1c] sm:$0xf]
  %v2209 = vld [vmem:[%s2200 + $0x20] sm:$0xf]
  %v2210 = vld [vmem:[%s2200 + $0x24] sm:$0xf]
  %v2211 = vld [vmem:[%s2200 + $0x28] sm:$0xf]
  %v2212 = vld [vmem:[%s2200 + $0x2c] sm:$0xf]
  %v2213 = vld [vmem:[%s2200 + $0x30] sm:$0xf]
  %v2214 = vld [vmem:[%s2200 + $0x34] sm:$0xf]
  %v2215 = vld [vmem:[%s2200 + $0x38] sm:$0xf]
  %v2216 = vld [vmem:[%s2200 + $0x3c] sm:$0xf]
  %v2217 = vld [vmem:[%s2200 + $0x40] sm:$0xf]
  %v2218 = vld [vmem:[%s2200 + $0x44] sm:$0xf]
  %v2219 = vld [vmem:[%s2200 + $0x48] sm:$0xf]
  %v2220 = vld [vmem:[%s2200 + $0x4c] sm:$0xf]
  %v2221 = vld [vmem:[%s2200 + $0x50] sm:$0xf]
  %v2222 = vld [vmem:[%s2200 + $0x54] sm:$0xf]
  %v2223 = vld [vmem:[%s2200 + $0x58] sm:$0xf]
  %v2224 = vld [vmem:[%s2200 + $0x5c] sm:$0xf]
  %v2235 = vrot.slane %v1753, 1
  %v2236 = vrot.slane %v1755, 1
  %v2237 = vsel %vm568, %v2235, %v2236
  %v2238 = vrot.slane %v1754, 1
  %v2239 = vrot.slane %v1756, 1
  %v2240 = vsel %vm568, %v2238, %v2239
  %v2241 = vrot.slane %v1757, 1
  %v2242 = vsel %vm568, %v2236, %v2241
  %v2243 = vrot.slane %v1758, 1
  %v2244 = vsel %vm568, %v2239, %v2243
  %v2245 = vrot.slane %v1759, 1
  %v2246 = vsel %vm568, %v2241, %v2245
  %v2247 = vrot.slane %v1760, 1
  %v2248 = vsel %vm568, %v2243, %v2247
  %v2249 = vrot.slane %v1787, 1
  %v2250 = vsel %vm568, %v2245, %v2249
  %v2251 = vrot.slane %v1788, 1
  %v2252 = vsel %vm568, %v2247, %v2251
  %v2282 = vunpack.c.l.b16 %v2201
  %v2283 = vunpack.c.l.b16 %v2202
  %v2284 = vunpack.c.l.b16 %v2203
  %v2285 = vunpack.c.l.b16 %v2204
  %v2286 = vunpack.c.l.b16 %v2205
  %v2287 = vunpack.c.l.b16 %v2206
  %v2288 = vunpack.c.l.b16 %v2207
  %v2289 = vunpack.c.l.b16 %v2208
  %v2290 = vunpack.c.l.b16 %v2209
  %v2291 = vunpack.c.l.b16 %v2210
  %v2292 = vunpack.c.l.b16 %v2211
  %v2293 = vunpack.c.l.b16 %v2212
  %v2294 = vunpack.c.l.b16 %v2213
  %v2295 = vunpack.c.l.b16 %v2214
  %v2296 = vunpack.c.l.b16 %v2215
  %v2297 = vunpack.c.l.b16 %v2216
  %v2298 = vunpack.c.l.b16 %v2217
  %v2299 = vunpack.c.l.b16 %v2218
  %v2300 = vunpack.c.l.b16 %v2219
  %v2301 = vunpack.c.l.b16 %v2220
  %v2302 = vunpack.c.l.b16 %v2221
  %v2303 = vunpack.c.l.b16 %v2222
  %v2304 = vunpack.c.l.b16 %v2223
  %v2305 = vunpack.c.l.b16 %v2224
  %v2306 = vpack.c.b16 %v2283, %v2282
  %v2307 = vpack.c.b16 %v2285, %v2284
  %v2308 = vpack.c.b16 %v2287, %v2286
  %v2309 = vpack.c.b16 %v2289, %v2288
  %v2310 = vpack.c.b16 %v2291, %v2290
  %v2311 = vpack.c.b16 %v2293, %v2292
  %v2312 = vpack.c.b16 %v2295, %v2294
  %v2313 = vpack.c.b16 %v2297, %v2296
  %v2314 = vpack.c.b16 %v2299, %v2298
  %v2315 = vpack.c.b16 %v2301, %v2300
  %v2316 = vpack.c.b16 %v2303, %v2302
  %v2317 = vpack.c.b16 %v2305, %v2304
  %v2331 = vsel %vm1969, %v2240, 0
  %v2334 = vsel %vm1969, %v2244, 0
  %v2337 = vsel %vm1969, %v2248, 0
  %v2340 = vsel %vm1969, %v2252, 0
  %v2343 = vsel %vm1969, %v2251, 0
  %2345 = vmatpush.bf16.msra.mxu0 %v2313
  %2346 = vmatpush.bf16.msra.mxu0 %v2312
  %2347 = vmatpush.bf16.msra.mxu0 %v2311
  %2348 = vmatpush.bf16.msra.mxu0 %v2310
  %2349 = vmatpush.bf16.msra.mxu0 %v2309
  %2350 = vmatpush.bf16.msra.mxu0 %v2308
  %2351 = vmatpush.bf16.msra.mxu0 %v2307
  %2352 = vmatpush.bf16.msra.mxu0 %v2306
  %2353 = vmatmul.bf16.gmra.mxu0 %v2237
  %v2354 = vpop.f32.mrf.mxu0
  %v2355 = vadd.f32 0.0, %v2354
  %v2356 = vpop.f32.mrf.mxu0
  %v2357 = vadd.f32 0.0, %v2356
  %2358 = vmatmul.bf16.gmra.mxu0 %v2242
  %v2359 = vpop.f32.mrf.mxu0
  %v2360 = vadd.f32 0.0, %v2359
  %v2361 = vpop.f32.mrf.mxu0
  %v2362 = vadd.f32 0.0, %v2361
  %2363 = vmatmul.bf16.gmra.mxu0 %v2246
  %v2364 = vpop.f32.mrf.mxu0
  %v2365 = vadd.f32 0.0, %v2364
  %v2366 = vpop.f32.mrf.mxu0
  %v2367 = vadd.f32 0.0, %v2366
  %2368 = vmatmul.bf16.gmra.mxu0 %v2250
  %v2369 = vpop.f32.mrf.mxu0
  %v2370 = vadd.f32 0.0, %v2369
  %v2371 = vpop.f32.mrf.mxu0
  %v2372 = vadd.f32 0.0, %v2371
  %2373 = vmatmul.bf16.gmra.mxu0 %v2249
  %v2374 = vpop.f32.mrf.mxu0
  %v2375 = vadd.f32 0.0, %v2374
  %v2376 = vpop.f32.mrf.mxu0
  %2377 = vdwg.mxu0
  %2378 = vmatpush.bf16.msra.mxu0 0
  %2379 = vmatpush.bf16.msra.mxu0 0
  %2380 = vmatpush.bf16.msra.mxu0 0
  %2381 = vmatpush.bf16.msra.mxu0 0
  %2382 = vmatpush.bf16.msra.mxu0 %v2317
  %2383 = vmatpush.bf16.msra.mxu0 %v2316
  %2384 = vmatpush.bf16.msra.mxu0 %v2315
  %2385 = vmatpush.bf16.msra.mxu0 %v2314
  %2386 = vmatmul.bf16.gmra.mxu0 %v2331
  %v2387 = vpop.f32.mrf.mxu0
  %v2388 = vadd.f32 %v2355, %v2387
  %v2389 = vpop.f32.mrf.mxu0
  %v2390 = vadd.f32 %v2357, %v2389
  %2391 = vmatmul.bf16.gmra.mxu0 %v2334
  %v2392 = vpop.f32.mrf.mxu0
  %v2393 = vadd.f32 %v2360, %v2392
  %v2394 = vpop.f32.mrf.mxu0
  %v2395 = vadd.f32 %v2362, %v2394
  %2396 = vmatmul.bf16.gmra.mxu0 %v2337
  %v2397 = vpop.f32.mrf.mxu0
  %v2398 = vadd.f32 %v2365, %v2397
  %v2399 = vpop.f32.mrf.mxu0
  %v2400 = vadd.f32 %v2367, %v2399
  %2401 = vmatmul.bf16.gmra.mxu0 %v2340
  %v2402 = vpop.f32.mrf.mxu0
  %v2403 = vadd.f32 %v2370, %v2402
  %v2404 = vpop.f32.mrf.mxu0
  %v2405 = vadd.f32 %v2372, %v2404
  %2406 = vmatmul.bf16.gmra.mxu0 %v2343
  %v2407 = vpop.f32.mrf.mxu0
  %v2408 = vadd.f32 %v2375, %v2407
  %v2409 = vpop.f32.mrf.mxu0
  %2410 = vdwg.mxu0
  %v2411 = vadd.f32 %v2177, %v2388
  %v2412 = vadd.f32 %v2179, %v2390
  %v2413 = vadd.f32 %v2182, %v2393
  %v2414 = vadd.f32 %v2184, %v2395
  %v2415 = vadd.f32 %v2187, %v2398
  %v2416 = vadd.f32 %v2189, %v2400
  %v2417 = vadd.f32 %v2192, %v2403
  %v2418 = vadd.f32 %v2194, %v2405
  %v2419 = vadd.f32 %v2197, %v2408
  %s2420 = scalar_lea.vmem %s8, 288
  %v2421 = vld [vmem:[%s2420] sm:$0xf]
  %v2422 = vld [vmem:[%s2420 + $0x4] sm:$0xf]
  %v2423 = vld [vmem:[%s2420 + $0x8] sm:$0xf]
  %v2424 = vld [vmem:[%s2420 + $0xc] sm:$0xf]
  %v2425 = vld [vmem:[%s2420 + $0x10] sm:$0xf]
  %v2426 = vld [vmem:[%s2420 + $0x14] sm:$0xf]
  %v2427 = vld [vmem:[%s2420 + $0x18] sm:$0xf]
  %v2428 = vld [vmem:[%s2420 + $0x1c] sm:$0xf]
  %v2429 = vld [vmem:[%s2420 + $0x20] sm:$0xf]
  %v2430 = vld [vmem:[%s2420 + $0x24] sm:$0xf]
  %v2431 = vld [vmem:[%s2420 + $0x28] sm:$0xf]
  %v2432 = vld [vmem:[%s2420 + $0x2c] sm:$0xf]
  %v2433 = vld [vmem:[%s2420 + $0x30] sm:$0xf]
  %v2434 = vld [vmem:[%s2420 + $0x34] sm:$0xf]
  %v2435 = vld [vmem:[%s2420 + $0x38] sm:$0xf]
  %v2436 = vld [vmem:[%s2420 + $0x3c] sm:$0xf]
  %v2437 = vld [vmem:[%s2420 + $0x40] sm:$0xf]
  %v2438 = vld [vmem:[%s2420 + $0x44] sm:$0xf]
  %v2439 = vld [vmem:[%s2420 + $0x48] sm:$0xf]
  %v2440 = vld [vmem:[%s2420 + $0x4c] sm:$0xf]
  %v2441 = vld [vmem:[%s2420 + $0x50] sm:$0xf]
  %v2442 = vld [vmem:[%s2420 + $0x54] sm:$0xf]
  %v2443 = vld [vmem:[%s2420 + $0x58] sm:$0xf]
  %v2444 = vld [vmem:[%s2420 + $0x5c] sm:$0xf]
  %v2445 = vrot.slane %v1815, 1
  %v2446 = vrot.slane %v1817, 2
  %v2447 = vor.u32 %v2445, %v2446
  %v2448 = vrot.slane %v1838, 1
  %v2449 = vrot.slane %v1822, 2
  %v2450 = vor.u32 %v2448, %v2449
  %v2451 = vsel %vm764, %v2447, %v2450
  %v2452 = vrot.slane %v1827, 1
  %v2453 = vrot.slane %v1829, 2
  %v2454 = vor.u32 %v2452, %v2453
  %v2455 = vrot.slane %v1846, 1
  %v2456 = vrot.slane %v1834, 2
  %v2457 = vor.u32 %v2455, %v2456
  %v2458 = vsel %vm764, %v2454, %v2457
  %v2459 = vrot.slane %v1854, 1
  %v2460 = vrot.slane %v1842, 2
  %v2461 = vor.u32 %v2459, %v2460
  %v2462 = vsel %vm764, %v2450, %v2461
  %v2463 = vrot.slane %v1862, 1
  %v2464 = vrot.slane %v1850, 2
  %v2465 = vor.u32 %v2463, %v2464
  %v2466 = vsel %vm764, %v2457, %v2465
  %v2467 = vrot.slane %v1870, 1
  %v2468 = vrot.slane %v1858, 2
  %v2469 = vor.u32 %v2467, %v2468
  %v2470 = vsel %vm764, %v2461, %v2469
  %v2471 = vrot.slane %v1878, 1
  %v2472 = vrot.slane %v1866, 2
  %v2473 = vor.u32 %v2471, %v2472
  %v2474 = vsel %vm764, %v2465, %v2473
  %v2475 = vrot.slane %v1886, 1
  %v2476 = vrot.slane %v1874, 2
  %v2477 = vor.u32 %v2475, %v2476
  %v2478 = vsel %vm764, %v2469, %v2477
  %v2479 = vrot.slane %v1889, 1
  %v2480 = vrot.slane %v1882, 2
  %v2481 = vor.u32 %v2479, %v2480
  %v2482 = vsel %vm764, %v2473, %v2481
  %v2512 = vunpack.c.l.b16 %v2421
  %v2513 = vunpack.c.l.b16 %v2422
  %v2514 = vunpack.c.l.b16 %v2423
  %v2515 = vunpack.c.l.b16 %v2424
  %v2516 = vunpack.c.l.b16 %v2425
  %v2517 = vunpack.c.l.b16 %v2426
  %v2518 = vunpack.c.l.b16 %v2427
  %v2519 = vunpack.c.l.b16 %v2428
  %v2520 = vunpack.c.l.b16 %v2429
  %v2521 = vunpack.c.l.b16 %v2430
  %v2522 = vunpack.c.l.b16 %v2431
  %v2523 = vunpack.c.l.b16 %v2432
  %v2524 = vunpack.c.l.b16 %v2433
  %v2525 = vunpack.c.l.b16 %v2434
  %v2526 = vunpack.c.l.b16 %v2435
  %v2527 = vunpack.c.l.b16 %v2436
  %v2528 = vunpack.c.l.b16 %v2437
  %v2529 = vunpack.c.l.b16 %v2438
  %v2530 = vunpack.c.l.b16 %v2439
  %v2531 = vunpack.c.l.b16 %v2440
  %v2532 = vunpack.c.l.b16 %v2441
  %v2533 = vunpack.c.l.b16 %v2442
  %v2534 = vunpack.c.l.b16 %v2443
  %v2535 = vunpack.c.l.b16 %v2444
  %v2536 = vpack.c.b16 %v2513, %v2512
  %v2537 = vpack.c.b16 %v2515, %v2514
  %v2538 = vpack.c.b16 %v2517, %v2516
  %v2539 = vpack.c.b16 %v2519, %v2518
  %v2540 = vpack.c.b16 %v2521, %v2520
  %v2541 = vpack.c.b16 %v2523, %v2522
  %v2542 = vpack.c.b16 %v2525, %v2524
  %v2543 = vpack.c.b16 %v2527, %v2526
  %v2544 = vpack.c.b16 %v2529, %v2528
  %v2545 = vpack.c.b16 %v2531, %v2530
  %v2546 = vpack.c.b16 %v2533, %v2532
  %v2547 = vpack.c.b16 %v2535, %v2534
  %v2561 = vsel %vm1969, %v2458, 0
  %v2564 = vsel %vm1969, %v2466, 0
  %v2567 = vsel %vm1969, %v2474, 0
  %v2570 = vsel %vm1969, %v2482, 0
  %v2573 = vsel %vm1969, %v2481, 0
  %2575 = vmatpush.bf16.msra.mxu0 %v2543
  %2576 = vmatpush.bf16.msra.mxu0 %v2542
  %2577 = vmatpush.bf16.msra.mxu0 %v2541
  %2578 = vmatpush.bf16.msra.mxu0 %v2540
  %2579 = vmatpush.bf16.msra.mxu0 %v2539
  %2580 = vmatpush.bf16.msra.mxu0 %v2538
  %2581 = vmatpush.bf16.msra.mxu0 %v2537
  %2582 = vmatpush.bf16.msra.mxu0 %v2536
  %2583 = vmatmul.bf16.gmra.mxu0 %v2451
  %v2584 = vpop.f32.mrf.mxu0
  %v2585 = vadd.f32 0.0, %v2584
  %v2586 = vpop.f32.mrf.mxu0
  %v2587 = vadd.f32 0.0, %v2586
  %2588 = vmatmul.bf16.gmra.mxu0 %v2462
  %v2589 = vpop.f32.mrf.mxu0
  %v2590 = vadd.f32 0.0, %v2589
  %v2591 = vpop.f32.mrf.mxu0
  %v2592 = vadd.f32 0.0, %v2591
  %2593 = vmatmul.bf16.gmra.mxu0 %v2470
  %v2594 = vpop.f32.mrf.mxu0
  %v2595 = vadd.f32 0.0, %v2594
  %v2596 = vpop.f32.mrf.mxu0
  %v2597 = vadd.f32 0.0, %v2596
  %2598 = vmatmul.bf16.gmra.mxu0 %v2478
  %v2599 = vpop.f32.mrf.mxu0
  %v2600 = vadd.f32 0.0, %v2599
  %v2601 = vpop.f32.mrf.mxu0
  %v2602 = vadd.f32 0.0, %v2601
  %2603 = vmatmul.bf16.gmra.mxu0 %v2477
  %v2604 = vpop.f32.mrf.mxu0
  %v2605 = vadd.f32 0.0, %v2604
  %v2606 = vpop.f32.mrf.mxu0
  %2607 = vdwg.mxu0
  %2608 = vmatpush.bf16.msra.mxu0 0
  %2609 = vmatpush.bf16.msra.mxu0 0
  %2610 = vmatpush.bf16.msra.mxu0 0
  %2611 = vmatpush.bf16.msra.mxu0 0
  %2612 = vmatpush.bf16.msra.mxu0 %v2547
  %2613 = vmatpush.bf16.msra.mxu0 %v2546
  %2614 = vmatpush.bf16.msra.mxu0 %v2545
  %2615 = vmatpush.bf16.msra.mxu0 %v2544
  %2616 = vmatmul.bf16.gmra.mxu0 %v2561
  %v2617 = vpop.f32.mrf.mxu0
  %v2618 = vadd.f32 %v2585, %v2617
  %v2619 = vpop.f32.mrf.mxu0
  %v2620 = vadd.f32 %v2587, %v2619
  %2621 = vmatmul.bf16.gmra.mxu0 %v2564
  %v2622 = vpop.f32.mrf.mxu0
  %v2623 = vadd.f32 %v2590, %v2622
  %v2624 = vpop.f32.mrf.mxu0
  %v2625 = vadd.f32 %v2592, %v2624
  %2626 = vmatmul.bf16.gmra.mxu0 %v2567
  %v2627 = vpop.f32.mrf.mxu0
  %v2628 = vadd.f32 %v2595, %v2627
  %v2629 = vpop.f32.mrf.mxu0
  %v2630 = vadd.f32 %v2597, %v2629
  %2631 = vmatmul.bf16.gmra.mxu0 %v2570
  %v2632 = vpop.f32.mrf.mxu0
  %v2633 = vadd.f32 %v2600, %v2632
  %v2634 = vpop.f32.mrf.mxu0
  %v2635 = vadd.f32 %v2602, %v2634
  %2636 = vmatmul.bf16.gmra.mxu0 %v2573
  %v2637 = vpop.f32.mrf.mxu0
  %v2638 = vadd.f32 %v2605, %v2637
  %v2639 = vpop.f32.mrf.mxu0
  %2640 = vdwg.mxu0
  %v2641 = vadd.f32 %v2411, %v2618
  %v2642 = vadd.f32 %v2412, %v2620
  %v2643 = vadd.f32 %v2413, %v2623
  %v2644 = vadd.f32 %v2414, %v2625
  %v2645 = vadd.f32 %v2415, %v2628
  %v2646 = vadd.f32 %v2416, %v2630
  %v2647 = vadd.f32 %v2417, %v2633
  %v2648 = vadd.f32 %v2418, %v2635
  %v2649 = vadd.f32 %v2419, %v2638
  %s2650 = scalar_lea.vmem %s8, 384
  %v2651 = vld [vmem:[%s2650] sm:$0xf]
  %v2652 = vld [vmem:[%s2650 + $0x4] sm:$0xf]
  %v2653 = vld [vmem:[%s2650 + $0x8] sm:$0xf]
  %v2654 = vld [vmem:[%s2650 + $0xc] sm:$0xf]
  %v2655 = vld [vmem:[%s2650 + $0x10] sm:$0xf]
  %v2656 = vld [vmem:[%s2650 + $0x14] sm:$0xf]
  %v2657 = vld [vmem:[%s2650 + $0x18] sm:$0xf]
  %v2658 = vld [vmem:[%s2650 + $0x1c] sm:$0xf]
  %v2659 = vld [vmem:[%s2650 + $0x20] sm:$0xf]
  %v2660 = vld [vmem:[%s2650 + $0x24] sm:$0xf]
  %v2661 = vld [vmem:[%s2650 + $0x28] sm:$0xf]
  %v2662 = vld [vmem:[%s2650 + $0x2c] sm:$0xf]
  %v2663 = vld [vmem:[%s2650 + $0x30] sm:$0xf]
  %v2664 = vld [vmem:[%s2650 + $0x34] sm:$0xf]
  %v2665 = vld [vmem:[%s2650 + $0x38] sm:$0xf]
  %v2666 = vld [vmem:[%s2650 + $0x3c] sm:$0xf]
  %v2667 = vld [vmem:[%s2650 + $0x40] sm:$0xf]
  %v2668 = vld [vmem:[%s2650 + $0x44] sm:$0xf]
  %v2669 = vld [vmem:[%s2650 + $0x48] sm:$0xf]
  %v2670 = vld [vmem:[%s2650 + $0x4c] sm:$0xf]
  %v2671 = vld [vmem:[%s2650 + $0x50] sm:$0xf]
  %v2672 = vld [vmem:[%s2650 + $0x54] sm:$0xf]
  %v2673 = vld [vmem:[%s2650 + $0x58] sm:$0xf]
  %v2674 = vld [vmem:[%s2650 + $0x5c] sm:$0xf]
  %v2675 = vrot.slane %v1753, 2
  %v2676 = vrot.slane %v1755, 2
  %v2677 = vsel %vm970, %v2675, %v2676
  %v2678 = vrot.slane %v1754, 2
  %v2679 = vrot.slane %v1756, 2
  %v2680 = vsel %vm970, %v2678, %v2679
  %v2681 = vrot.slane %v1757, 2
  %v2682 = vsel %vm970, %v2676, %v2681
  %v2683 = vrot.slane %v1758, 2
  %v2684 = vsel %vm970, %v2679, %v2683
  %v2685 = vrot.slane %v1759, 2
  %v2686 = vsel %vm970, %v2681, %v2685
  %v2687 = vrot.slane %v1760, 2
  %v2688 = vsel %vm970, %v2683, %v2687
  %v2689 = vrot.slane %v1787, 2
  %v2690 = vsel %vm970, %v2685, %v2689
  %v2691 = vrot.slane %v1788, 2
  %v2692 = vsel %vm970, %v2687, %v2691
  %v2722 = vunpack.c.l.b16 %v2651
  %v2723 = vunpack.c.l.b16 %v2652
  %v2724 = vunpack.c.l.b16 %v2653
  %v2725 = vunpack.c.l.b16 %v2654
  %v2726 = vunpack.c.l.b16 %v2655
  %v2727 = vunpack.c.l.b16 %v2656
  %v2728 = vunpack.c.l.b16 %v2657
  %v2729 = vunpack.c.l.b16 %v2658
  %v2730 = vunpack.c.l.b16 %v2659
  %v2731 = vunpack.c.l.b16 %v2660
  %v2732 = vunpack.c.l.b16 %v2661
  %v2733 = vunpack.c.l.b16 %v2662
  %v2734 = vunpack.c.l.b16 %v2663
  %v2735 = vunpack.c.l.b16 %v2664
  %v2736 = vunpack.c.l.b16 %v2665
  %v2737 = vunpack.c.l.b16 %v2666
  %v2738 = vunpack.c.l.b16 %v2667
  %v2739 = vunpack.c.l.b16 %v2668
  %v2740 = vunpack.c.l.b16 %v2669
  %v2741 = vunpack.c.l.b16 %v2670
  %v2742 = vunpack.c.l.b16 %v2671
  %v2743 = vunpack.c.l.b16 %v2672
  %v2744 = vunpack.c.l.b16 %v2673
  %v2745 = vunpack.c.l.b16 %v2674
  %v2746 = vpack.c.b16 %v2723, %v2722
  %v2747 = vpack.c.b16 %v2725, %v2724
  %v2748 = vpack.c.b16 %v2727, %v2726
  %v2749 = vpack.c.b16 %v2729, %v2728
  %v2750 = vpack.c.b16 %v2731, %v2730
  %v2751 = vpack.c.b16 %v2733, %v2732
  %v2752 = vpack.c.b16 %v2735, %v2734
  %v2753 = vpack.c.b16 %v2737, %v2736
  %v2754 = vpack.c.b16 %v2739, %v2738
  %v2755 = vpack.c.b16 %v2741, %v2740
  %v2756 = vpack.c.b16 %v2743, %v2742
  %v2757 = vpack.c.b16 %v2745, %v2744
  %v2771 = vsel %vm1969, %v2680, 0
  %v2774 = vsel %vm1969, %v2684, 0
  %v2777 = vsel %vm1969, %v2688, 0
  %v2780 = vsel %vm1969, %v2692, 0
  %v2783 = vsel %vm1969, %v2691, 0
  %2785 = vmatpush.bf16.msra.mxu0 %v2753
  %2786 = vmatpush.bf16.msra.mxu0 %v2752
  %2787 = vmatpush.bf16.msra.mxu0 %v2751
  %2788 = vmatpush.bf16.msra.mxu0 %v2750
  %2789 = vmatpush.bf16.msra.mxu0 %v2749
  %2790 = vmatpush.bf16.msra.mxu0 %v2748
  %2791 = vmatpush.bf16.msra.mxu0 %v2747
  %2792 = vmatpush.bf16.msra.mxu0 %v2746
  %2793 = vmatmul.bf16.gmra.mxu0 %v2677
  %v2794 = vpop.f32.mrf.mxu0
  %v2795 = vadd.f32 0.0, %v2794
  %v2796 = vpop.f32.mrf.mxu0
  %v2797 = vadd.f32 0.0, %v2796
  %2798 = vmatmul.bf16.gmra.mxu0 %v2682
  %v2799 = vpop.f32.mrf.mxu0
  %v2800 = vadd.f32 0.0, %v2799
  %v2801 = vpop.f32.mrf.mxu0
  %v2802 = vadd.f32 0.0, %v2801
  %2803 = vmatmul.bf16.gmra.mxu0 %v2686
  %v2804 = vpop.f32.mrf.mxu0
  %v2805 = vadd.f32 0.0, %v2804
  %v2806 = vpop.f32.mrf.mxu0
  %v2807 = vadd.f32 0.0, %v2806
  %2808 = vmatmul.bf16.gmra.mxu0 %v2690
  %v2809 = vpop.f32.mrf.mxu0
  %v2810 = vadd.f32 0.0, %v2809
  %v2811 = vpop.f32.mrf.mxu0
  %v2812 = vadd.f32 0.0, %v2811
  %2813 = vmatmul.bf16.gmra.mxu0 %v2689
  %v2814 = vpop.f32.mrf.mxu0
  %v2815 = vadd.f32 0.0, %v2814
  %v2816 = vpop.f32.mrf.mxu0
  %2817 = vdwg.mxu0
  %2818 = vmatpush.bf16.msra.mxu0 0
  %2819 = vmatpush.bf16.msra.mxu0 0
  %2820 = vmatpush.bf16.msra.mxu0 0
  %2821 = vmatpush.bf16.msra.mxu0 0
  %2822 = vmatpush.bf16.msra.mxu0 %v2757
  %2823 = vmatpush.bf16.msra.mxu0 %v2756
  %2824 = vmatpush.bf16.msra.mxu0 %v2755
  %2825 = vmatpush.bf16.msra.mxu0 %v2754
  %2826 = vmatmul.bf16.gmra.mxu0 %v2771
  %v2827 = vpop.f32.mrf.mxu0
  %v2828 = vadd.f32 %v2795, %v2827
  %v2829 = vpop.f32.mrf.mxu0
  %v2830 = vadd.f32 %v2797, %v2829
  %2831 = vmatmul.bf16.gmra.mxu0 %v2774
  %v2832 = vpop.f32.mrf.mxu0
  %v2833 = vadd.f32 %v2800, %v2832
  %v2834 = vpop.f32.mrf.mxu0
  %v2835 = vadd.f32 %v2802, %v2834
  %2836 = vmatmul.bf16.gmra.mxu0 %v2777
  %v2837 = vpop.f32.mrf.mxu0
  %v2838 = vadd.f32 %v2805, %v2837
  %v2839 = vpop.f32.mrf.mxu0
  %v2840 = vadd.f32 %v2807, %v2839
  %2841 = vmatmul.bf16.gmra.mxu0 %v2780
  %v2842 = vpop.f32.mrf.mxu0
  %v2843 = vadd.f32 %v2810, %v2842
  %v2844 = vpop.f32.mrf.mxu0
  %v2845 = vadd.f32 %v2812, %v2844
  %2846 = vmatmul.bf16.gmra.mxu0 %v2783
  %v2847 = vpop.f32.mrf.mxu0
  %v2848 = vadd.f32 %v2815, %v2847
  %v2849 = vpop.f32.mrf.mxu0
  %2850 = vdwg.mxu0
  %v2851 = vadd.f32 %v2641, %v2828
  %v2852 = vadd.f32 %v2642, %v2830
  %v2853 = vadd.f32 %v2643, %v2833
  %v2854 = vadd.f32 %v2644, %v2835
  %v2855 = vadd.f32 %v2645, %v2838
  %v2856 = vadd.f32 %v2646, %v2840
  %v2857 = vadd.f32 %v2647, %v2843
  %v2858 = vadd.f32 %v2648, %v2845
  %v2859 = vadd.f32 %v2649, %v2848
  %s2860 = scalar_lea.vmem %s8, 480
  %v2861 = vld [vmem:[%s2860] sm:$0xf]
  %v2862 = vld [vmem:[%s2860 + $0x4] sm:$0xf]
  %v2863 = vld [vmem:[%s2860 + $0x8] sm:$0xf]
  %v2864 = vld [vmem:[%s2860 + $0xc] sm:$0xf]
  %v2865 = vld [vmem:[%s2860 + $0x10] sm:$0xf]
  %v2866 = vld [vmem:[%s2860 + $0x14] sm:$0xf]
  %v2867 = vld [vmem:[%s2860 + $0x18] sm:$0xf]
  %v2868 = vld [vmem:[%s2860 + $0x1c] sm:$0xf]
  %v2869 = vld [vmem:[%s2860 + $0x20] sm:$0xf]
  %v2870 = vld [vmem:[%s2860 + $0x24] sm:$0xf]
  %v2871 = vld [vmem:[%s2860 + $0x28] sm:$0xf]
  %v2872 = vld [vmem:[%s2860 + $0x2c] sm:$0xf]
  %v2873 = vld [vmem:[%s2860 + $0x30] sm:$0xf]
  %v2874 = vld [vmem:[%s2860 + $0x34] sm:$0xf]
  %v2875 = vld [vmem:[%s2860 + $0x38] sm:$0xf]
  %v2876 = vld [vmem:[%s2860 + $0x3c] sm:$0xf]
  %v2877 = vld [vmem:[%s2860 + $0x40] sm:$0xf]
  %v2878 = vld [vmem:[%s2860 + $0x44] sm:$0xf]
  %v2879 = vld [vmem:[%s2860 + $0x48] sm:$0xf]
  %v2880 = vld [vmem:[%s2860 + $0x4c] sm:$0xf]
  %v2881 = vld [vmem:[%s2860 + $0x50] sm:$0xf]
  %v2882 = vld [vmem:[%s2860 + $0x54] sm:$0xf]
  %v2883 = vld [vmem:[%s2860 + $0x58] sm:$0xf]
  %v2884 = vld [vmem:[%s2860 + $0x5c] sm:$0xf]
  %v2885 = vrot.slane %v1815, 2
  %v2886 = vrot.slane %v1817, 3
  %v2887 = vor.u32 %v2885, %v2886
  %v2888 = vrot.slane %v1838, 2
  %v2889 = vrot.slane %v1822, 3
  %v2890 = vor.u32 %v2888, %v2889
  %v2891 = vsel %vm1166, %v2887, %v2890
  %v2892 = vrot.slane %v1827, 2
  %v2893 = vrot.slane %v1829, 3
  %v2894 = vor.u32 %v2892, %v2893
  %v2895 = vrot.slane %v1846, 2
  %v2896 = vrot.slane %v1834, 3
  %v2897 = vor.u32 %v2895, %v2896
  %v2898 = vsel %vm1166, %v2894, %v2897
  %v2899 = vrot.slane %v1854, 2
  %v2900 = vrot.slane %v1842, 3
  %v2901 = vor.u32 %v2899, %v2900
  %v2902 = vsel %vm1166, %v2890, %v2901
  %v2903 = vrot.slane %v1862, 2
  %v2904 = vrot.slane %v1850, 3
  %v2905 = vor.u32 %v2903, %v2904
  %v2906 = vsel %vm1166, %v2897, %v2905
  %v2907 = vrot.slane %v1870, 2
  %v2908 = vrot.slane %v1858, 3
  %v2909 = vor.u32 %v2907, %v2908
  %v2910 = vsel %vm1166, %v2901, %v2909
  %v2911 = vrot.slane %v1878, 2
  %v2912 = vrot.slane %v1866, 3
  %v2913 = vor.u32 %v2911, %v2912
  %v2914 = vsel %vm1166, %v2905, %v2913
  %v2915 = vrot.slane %v1886, 2
  %v2916 = vrot.slane %v1874, 3
  %v2917 = vor.u32 %v2915, %v2916
  %v2918 = vsel %vm1166, %v2909, %v2917
  %v2919 = vrot.slane %v1889, 2
  %v2920 = vrot.slane %v1882, 3
  %v2921 = vor.u32 %v2919, %v2920
  %v2922 = vsel %vm1166, %v2913, %v2921
  %v2952 = vunpack.c.l.b16 %v2861
  %v2953 = vunpack.c.l.b16 %v2862
  %v2954 = vunpack.c.l.b16 %v2863
  %v2955 = vunpack.c.l.b16 %v2864
  %v2956 = vunpack.c.l.b16 %v2865
  %v2957 = vunpack.c.l.b16 %v2866
  %v2958 = vunpack.c.l.b16 %v2867
  %v2959 = vunpack.c.l.b16 %v2868
  %v2960 = vunpack.c.l.b16 %v2869
  %v2961 = vunpack.c.l.b16 %v2870
  %v2962 = vunpack.c.l.b16 %v2871
  %v2963 = vunpack.c.l.b16 %v2872
  %v2964 = vunpack.c.l.b16 %v2873
  %v2965 = vunpack.c.l.b16 %v2874
  %v2966 = vunpack.c.l.b16 %v2875
  %v2967 = vunpack.c.l.b16 %v2876
  %v2968 = vunpack.c.l.b16 %v2877
  %v2969 = vunpack.c.l.b16 %v2878
  %v2970 = vunpack.c.l.b16 %v2879
  %v2971 = vunpack.c.l.b16 %v2880
  %v2972 = vunpack.c.l.b16 %v2881
  %v2973 = vunpack.c.l.b16 %v2882
  %v2974 = vunpack.c.l.b16 %v2883
  %v2975 = vunpack.c.l.b16 %v2884
  %v2976 = vpack.c.b16 %v2953, %v2952
  %v2977 = vpack.c.b16 %v2955, %v2954
  %v2978 = vpack.c.b16 %v2957, %v2956
  %v2979 = vpack.c.b16 %v2959, %v2958
  %v2980 = vpack.c.b16 %v2961, %v2960
  %v2981 = vpack.c.b16 %v2963, %v2962
  %v2982 = vpack.c.b16 %v2965, %v2964
  %v2983 = vpack.c.b16 %v2967, %v2966
  %v2984 = vpack.c.b16 %v2969, %v2968
  %v2985 = vpack.c.b16 %v2971, %v2970
  %v2986 = vpack.c.b16 %v2973, %v2972
  %v2987 = vpack.c.b16 %v2975, %v2974
  %v3001 = vsel %vm1969, %v2898, 0
  %v3004 = vsel %vm1969, %v2906, 0
  %v3007 = vsel %vm1969, %v2914, 0
  %v3010 = vsel %vm1969, %v2922, 0
  %v3013 = vsel %vm1969, %v2921, 0
  %3015 = vmatpush.bf16.msra.mxu0 %v2983
  %3016 = vmatpush.bf16.msra.mxu0 %v2982
  %3017 = vmatpush.bf16.msra.mxu0 %v2981
  %3018 = vmatpush.bf16.msra.mxu0 %v2980
  %3019 = vmatpush.bf16.msra.mxu0 %v2979
  %3020 = vmatpush.bf16.msra.mxu0 %v2978
  %3021 = vmatpush.bf16.msra.mxu0 %v2977
  %3022 = vmatpush.bf16.msra.mxu0 %v2976
  %3023 = vmatmul.bf16.gmra.mxu0 %v2891
  %v3024 = vpop.f32.mrf.mxu0
  %v3025 = vadd.f32 0.0, %v3024
  %v3026 = vpop.f32.mrf.mxu0
  %v3027 = vadd.f32 0.0, %v3026
  %3028 = vmatmul.bf16.gmra.mxu0 %v2902
  %v3029 = vpop.f32.mrf.mxu0
  %v3030 = vadd.f32 0.0, %v3029
  %v3031 = vpop.f32.mrf.mxu0
  %v3032 = vadd.f32 0.0, %v3031
  %3033 = vmatmul.bf16.gmra.mxu0 %v2910
  %v3034 = vpop.f32.mrf.mxu0
  %v3035 = vadd.f32 0.0, %v3034
  %v3036 = vpop.f32.mrf.mxu0
  %v3037 = vadd.f32 0.0, %v3036
  %3038 = vmatmul.bf16.gmra.mxu0 %v2918
  %v3039 = vpop.f32.mrf.mxu0
  %v3040 = vadd.f32 0.0, %v3039
  %v3041 = vpop.f32.mrf.mxu0
  %v3042 = vadd.f32 0.0, %v3041
  %3043 = vmatmul.bf16.gmra.mxu0 %v2917
  %v3044 = vpop.f32.mrf.mxu0
  %v3045 = vadd.f32 0.0, %v3044
  %v3046 = vpop.f32.mrf.mxu0
  %3047 = vdwg.mxu0
  %3048 = vmatpush.bf16.msra.mxu0 0
  %3049 = vmatpush.bf16.msra.mxu0 0
  %3050 = vmatpush.bf16.msra.mxu0 0
  %3051 = vmatpush.bf16.msra.mxu0 0
  %3052 = vmatpush.bf16.msra.mxu0 %v2987
  %3053 = vmatpush.bf16.msra.mxu0 %v2986
  %3054 = vmatpush.bf16.msra.mxu0 %v2985
  %3055 = vmatpush.bf16.msra.mxu0 %v2984
  %3056 = vmatmul.bf16.gmra.mxu0 %v3001
  %v3057 = vpop.f32.mrf.mxu0
  %v3058 = vadd.f32 %v3025, %v3057
  %v3059 = vpop.f32.mrf.mxu0
  %v3060 = vadd.f32 %v3027, %v3059
  %3061 = vmatmul.bf16.gmra.mxu0 %v3004
  %v3062 = vpop.f32.mrf.mxu0
  %v3063 = vadd.f32 %v3030, %v3062
  %v3064 = vpop.f32.mrf.mxu0
  %v3065 = vadd.f32 %v3032, %v3064
  %3066 = vmatmul.bf16.gmra.mxu0 %v3007
  %v3067 = vpop.f32.mrf.mxu0
  %v3068 = vadd.f32 %v3035, %v3067
  %v3069 = vpop.f32.mrf.mxu0
  %v3070 = vadd.f32 %v3037, %v3069
  %3071 = vmatmul.bf16.gmra.mxu0 %v3010
  %v3072 = vpop.f32.mrf.mxu0
  %v3073 = vadd.f32 %v3040, %v3072
  %v3074 = vpop.f32.mrf.mxu0
  %v3075 = vadd.f32 %v3042, %v3074
  %3076 = vmatmul.bf16.gmra.mxu0 %v3013
  %v3077 = vpop.f32.mrf.mxu0
  %v3078 = vadd.f32 %v3045, %v3077
  %v3079 = vpop.f32.mrf.mxu0
  %3080 = vdwg.mxu0
  %v3081 = vadd.f32 %v2851, %v3058
  %v3082 = vadd.f32 %v2852, %v3060
  %v3083 = vadd.f32 %v2853, %v3063
  %v3084 = vadd.f32 %v2854, %v3065
  %v3085 = vadd.f32 %v2855, %v3068
  %v3086 = vadd.f32 %v2856, %v3070
  %v3087 = vadd.f32 %v2857, %v3073
  %v3088 = vadd.f32 %v2858, %v3075
  %v3089 = vadd.f32 %v2859, %v3078
  %s3090 = scalar_lea.vmem %s8, 576
  %v3091 = vld [vmem:[%s3090] sm:$0xf]
  %v3092 = vld [vmem:[%s3090 + $0x4] sm:$0xf]
  %v3093 = vld [vmem:[%s3090 + $0x8] sm:$0xf]
  %v3094 = vld [vmem:[%s3090 + $0xc] sm:$0xf]
  %v3095 = vld [vmem:[%s3090 + $0x10] sm:$0xf]
  %v3096 = vld [vmem:[%s3090 + $0x14] sm:$0xf]
  %v3097 = vld [vmem:[%s3090 + $0x18] sm:$0xf]
  %v3098 = vld [vmem:[%s3090 + $0x1c] sm:$0xf]
  %v3099 = vld [vmem:[%s3090 + $0x20] sm:$0xf]
  %v3100 = vld [vmem:[%s3090 + $0x24] sm:$0xf]
  %v3101 = vld [vmem:[%s3090 + $0x28] sm:$0xf]
  %v3102 = vld [vmem:[%s3090 + $0x2c] sm:$0xf]
  %v3103 = vld [vmem:[%s3090 + $0x30] sm:$0xf]
  %v3104 = vld [vmem:[%s3090 + $0x34] sm:$0xf]
  %v3105 = vld [vmem:[%s3090 + $0x38] sm:$0xf]
  %v3106 = vld [vmem:[%s3090 + $0x3c] sm:$0xf]
  %v3107 = vld [vmem:[%s3090 + $0x40] sm:$0xf]
  %v3108 = vld [vmem:[%s3090 + $0x44] sm:$0xf]
  %v3109 = vld [vmem:[%s3090 + $0x48] sm:$0xf]
  %v3110 = vld [vmem:[%s3090 + $0x4c] sm:$0xf]
  %v3111 = vld [vmem:[%s3090 + $0x50] sm:$0xf]
  %v3112 = vld [vmem:[%s3090 + $0x54] sm:$0xf]
  %v3113 = vld [vmem:[%s3090 + $0x58] sm:$0xf]
  %v3114 = vld [vmem:[%s3090 + $0x5c] sm:$0xf]
  %v3115 = vrot.slane %v1753, 3
  %v3116 = vrot.slane %v1755, 3
  %v3117 = vsel %vm1372, %v3115, %v3116
  %v3118 = vrot.slane %v1754, 3
  %v3119 = vrot.slane %v1756, 3
  %v3120 = vsel %vm1372, %v3118, %v3119
  %v3121 = vrot.slane %v1757, 3
  %v3122 = vsel %vm1372, %v3116, %v3121
  %v3123 = vrot.slane %v1758, 3
  %v3124 = vsel %vm1372, %v3119, %v3123
  %v3125 = vrot.slane %v1759, 3
  %v3126 = vsel %vm1372, %v3121, %v3125
  %v3127 = vrot.slane %v1760, 3
  %v3128 = vsel %vm1372, %v3123, %v3127
  %v3129 = vrot.slane %v1787, 3
  %v3130 = vsel %vm1372, %v3125, %v3129
  %v3131 = vrot.slane %v1788, 3
  %v3132 = vsel %vm1372, %v3127, %v3131
  %v3162 = vunpack.c.l.b16 %v3091
  %v3163 = vunpack.c.l.b16 %v3092
  %v3164 = vunpack.c.l.b16 %v3093
  %v3165 = vunpack.c.l.b16 %v3094
  %v3166 = vunpack.c.l.b16 %v3095
  %v3167 = vunpack.c.l.b16 %v3096
  %v3168 = vunpack.c.l.b16 %v3097
  %v3169 = vunpack.c.l.b16 %v3098
  %v3170 = vunpack.c.l.b16 %v3099
  %v3171 = vunpack.c.l.b16 %v3100
  %v3172 = vunpack.c.l.b16 %v3101
  %v3173 = vunpack.c.l.b16 %v3102
  %v3174 = vunpack.c.l.b16 %v3103
  %v3175 = vunpack.c.l.b16 %v3104
  %v3176 = vunpack.c.l.b16 %v3105
  %v3177 = vunpack.c.l.b16 %v3106
  %v3178 = vunpack.c.l.b16 %v3107
  %v3179 = vunpack.c.l.b16 %v3108
  %v3180 = vunpack.c.l.b16 %v3109
  %v3181 = vunpack.c.l.b16 %v3110
  %v3182 = vunpack.c.l.b16 %v3111
  %v3183 = vunpack.c.l.b16 %v3112
  %v3184 = vunpack.c.l.b16 %v3113
  %v3185 = vunpack.c.l.b16 %v3114
  %v3186 = vpack.c.b16 %v3163, %v3162
  %v3187 = vpack.c.b16 %v3165, %v3164
  %v3188 = vpack.c.b16 %v3167, %v3166
  %v3189 = vpack.c.b16 %v3169, %v3168
  %v3190 = vpack.c.b16 %v3171, %v3170
  %v3191 = vpack.c.b16 %v3173, %v3172
  %v3192 = vpack.c.b16 %v3175, %v3174
  %v3193 = vpack.c.b16 %v3177, %v3176
  %v3194 = vpack.c.b16 %v3179, %v3178
  %v3195 = vpack.c.b16 %v3181, %v3180
  %v3196 = vpack.c.b16 %v3183, %v3182
  %v3197 = vpack.c.b16 %v3185, %v3184
  %v3211 = vsel %vm1969, %v3120, 0
  %v3214 = vsel %vm1969, %v3124, 0
  %v3217 = vsel %vm1969, %v3128, 0
  %v3220 = vsel %vm1969, %v3132, 0
  %v3223 = vsel %vm1969, %v3131, 0
  %3225 = vmatpush.bf16.msra.mxu0 %v3193
  %3226 = vmatpush.bf16.msra.mxu0 %v3192
  %3227 = vmatpush.bf16.msra.mxu0 %v3191
  %3228 = vmatpush.bf16.msra.mxu0 %v3190
  %3229 = vmatpush.bf16.msra.mxu0 %v3189
  %3230 = vmatpush.bf16.msra.mxu0 %v3188
  %3231 = vmatpush.bf16.msra.mxu0 %v3187
  %3232 = vmatpush.bf16.msra.mxu0 %v3186
  %3233 = vmatmul.bf16.gmra.mxu0 %v3117
  %v3234 = vpop.f32.mrf.mxu0
  %v3235 = vadd.f32 0.0, %v3234
  %v3236 = vpop.f32.mrf.mxu0
  %v3237 = vadd.f32 0.0, %v3236
  %3238 = vmatmul.bf16.gmra.mxu0 %v3122
  %v3239 = vpop.f32.mrf.mxu0
  %v3240 = vadd.f32 0.0, %v3239
  %v3241 = vpop.f32.mrf.mxu0
  %v3242 = vadd.f32 0.0, %v3241
  %3243 = vmatmul.bf16.gmra.mxu0 %v3126
  %v3244 = vpop.f32.mrf.mxu0
  %v3245 = vadd.f32 0.0, %v3244
  %v3246 = vpop.f32.mrf.mxu0
  %v3247 = vadd.f32 0.0, %v3246
  %3248 = vmatmul.bf16.gmra.mxu0 %v3130
  %v3249 = vpop.f32.mrf.mxu0
  %v3250 = vadd.f32 0.0, %v3249
  %v3251 = vpop.f32.mrf.mxu0
  %v3252 = vadd.f32 0.0, %v3251
  %3253 = vmatmul.bf16.gmra.mxu0 %v3129
  %v3254 = vpop.f32.mrf.mxu0
  %v3255 = vadd.f32 0.0, %v3254
  %v3256 = vpop.f32.mrf.mxu0
  %3257 = vdwg.mxu0
  %3258 = vmatpush.bf16.msra.mxu0 0
  %3259 = vmatpush.bf16.msra.mxu0 0
  %3260 = vmatpush.bf16.msra.mxu0 0
  %3261 = vmatpush.bf16.msra.mxu0 0
  %3262 = vmatpush.bf16.msra.mxu0 %v3197
  %3263 = vmatpush.bf16.msra.mxu0 %v3196
  %3264 = vmatpush.bf16.msra.mxu0 %v3195
  %3265 = vmatpush.bf16.msra.mxu0 %v3194
  %3266 = vmatmul.bf16.gmra.mxu0 %v3211
  %v3267 = vpop.f32.mrf.mxu0
  %v3268 = vadd.f32 %v3235, %v3267
  %v3269 = vpop.f32.mrf.mxu0
  %v3270 = vadd.f32 %v3237, %v3269
  %3271 = vmatmul.bf16.gmra.mxu0 %v3214
  %v3272 = vpop.f32.mrf.mxu0
  %v3273 = vadd.f32 %v3240, %v3272
  %v3274 = vpop.f32.mrf.mxu0
  %v3275 = vadd.f32 %v3242, %v3274
  %3276 = vmatmul.bf16.gmra.mxu0 %v3217
  %v3277 = vpop.f32.mrf.mxu0
  %v3278 = vadd.f32 %v3245, %v3277
  %v3279 = vpop.f32.mrf.mxu0
  %v3280 = vadd.f32 %v3247, %v3279
  %3281 = vmatmul.bf16.gmra.mxu0 %v3220
  %v3282 = vpop.f32.mrf.mxu0
  %v3283 = vadd.f32 %v3250, %v3282
  %v3284 = vpop.f32.mrf.mxu0
  %v3285 = vadd.f32 %v3252, %v3284
  %3286 = vmatmul.bf16.gmra.mxu0 %v3223
  %v3287 = vpop.f32.mrf.mxu0
  %v3288 = vadd.f32 %v3255, %v3287
  %v3289 = vpop.f32.mrf.mxu0
  %3290 = vdwg.mxu0
  %v3291 = vadd.f32 %v3081, %v3268
  %v3292 = vadd.f32 %v3082, %v3270
  %v3293 = vadd.f32 %v3083, %v3273
  %v3294 = vadd.f32 %v3084, %v3275
  %v3295 = vadd.f32 %v3085, %v3278
  %v3296 = vadd.f32 %v3086, %v3280
  %v3297 = vadd.f32 %v3087, %v3283
  %v3298 = vadd.f32 %v3088, %v3285
  %v3299 = vadd.f32 %v3089, %v3288
  %v3300 = vld [vmem:[%s9] sm:$0x1]
  %v3302 = vperm.slane %v3300, 0
  %v3304 = vmul.f32 %v3291, %v3302
  %v3305 = vmul.f32 %v3292, %v3302
  %v3306 = vmul.f32 %v3293, %v3302
  %v3307 = vmul.f32 %v3294, %v3302
  %v3308 = vmul.f32 %v3295, %v3302
  %v3309 = vmul.f32 %v3296, %v3302
  %v3310 = vmul.f32 %v3297, %v3302
  %v3311 = vmul.f32 %v3298, %v3302
  %v3312 = vmul.f32 %v3299, %v3302
  %v3313 = vld [vmem:[%s10] sm:$0x1]
  %v3315 = vperm.slane %v3313, 0
  %v3317 = vadd.f32 %v3304, %v3315
  %v3318 = vadd.f32 %v3305, %v3315
  %v3319 = vadd.f32 %v3306, %v3315
  %v3320 = vadd.f32 %v3307, %v3315
  %v3321 = vadd.f32 %v3308, %v3315
  %v3322 = vadd.f32 %v3309, %v3315
  %v3323 = vadd.f32 %v3310, %v3315
  %v3324 = vadd.f32 %v3311, %v3315
  %v3325 = vadd.f32 %v3312, %v3315
  %vm3335 = vcmask 1046528
  %v3336 = vrot.slane %v3317, 1
  %v3337 = vrot.slane %v3318, 1
  %v3338 = vsel %vm3335, %v3336, %v3337
  %v3339 = vrot.slane %v3319, 1
  %v3340 = vsel %vm3335, %v3337, %v3339
  %v3341 = vrot.slane %v3320, 1
  %v3342 = vsel %vm3335, %v3339, %v3341
  %v3343 = vrot.slane %v3321, 1
  %v3344 = vsel %vm3335, %v3341, %v3343
  %v3345 = vrot.slane %v3322, 1
  %v3346 = vsel %vm3335, %v3343, %v3345
  %v3347 = vrot.slane %v3323, 1
  %v3348 = vsel %vm3335, %v3345, %v3347
  %v3349 = vrot.slane %v3324, 1
  %v3350 = vsel %vm3335, %v3347, %v3349
  %v3351 = vrot.slane %v3325, 1
  %v3352 = vsel %vm3335, %v3349, %v3351
  %v3362 = vmax.f32 %v3317, %v3338
  %v3363 = vmax.f32 %v3318, %v3340
  %v3364 = vmax.f32 %v3319, %v3342
  %v3365 = vmax.f32 %v3320, %v3344
  %v3366 = vmax.f32 %v3321, %v3346
  %v3367 = vmax.f32 %v3322, %v3348
  %v3368 = vmax.f32 %v3323, %v3350
  %v3369 = vmax.f32 %v3324, %v3352
  %v3370 = vmax.f32 %v3325, %v3351
  %vm3371 = vcmask 1045504
  %v3372 = vrot.slane %v3317, 2
  %v3373 = vrot.slane %v3318, 2
  %v3374 = vsel %vm3371, %v3372, %v3373
  %v3375 = vrot.slane %v3319, 2
  %v3376 = vsel %vm3371, %v3373, %v3375
  %v3377 = vrot.slane %v3320, 2
  %v3378 = vsel %vm3371, %v3375, %v3377
  %v3379 = vrot.slane %v3321, 2
  %v3380 = vsel %vm3371, %v3377, %v3379
  %v3381 = vrot.slane %v3322, 2
  %v3382 = vsel %vm3371, %v3379, %v3381
  %v3383 = vrot.slane %v3323, 2
  %v3384 = vsel %vm3371, %v3381, %v3383
  %v3385 = vrot.slane %v3324, 2
  %v3386 = vsel %vm3371, %v3383, %v3385
  %v3387 = vrot.slane %v3325, 2
  %v3388 = vsel %vm3371, %v3385, %v3387
  %v3398 = vmax.f32 %v3362, %v3374
  %v3399 = vmax.f32 %v3363, %v3376
  %v3400 = vmax.f32 %v3364, %v3378
  %v3401 = vmax.f32 %v3365, %v3380
  %v3402 = vmax.f32 %v3366, %v3382
  %v3403 = vmax.f32 %v3367, %v3384
  %v3404 = vmax.f32 %v3368, %v3386
  %v3405 = vmax.f32 %v3369, %v3388
  %v3406 = vmax.f32 %v3370, %v3387
  %v3407 = vld [vmem:[%s3] sm:$0xf]
  %v3408 = vld [vmem:[%s3 + $0x4] sm:$0xf]
  %v3409 = vld [vmem:[%s3 + $0x8] sm:$0xf]
  %v3410 = vld [vmem:[%s3 + $0xc] sm:$0xf]
  %v3411 = vld [vmem:[%s3 + $0x10] sm:$0xf]
  %v3412 = vld [vmem:[%s3 + $0x14] sm:$0x3]
  %v3413 = vpack.c.bf16 %v3399, %v3398
  %v3414 = vpack.c.bf16 %v3401, %v3400
  %v3415 = vpack.c.bf16 %v3403, %v3402
  %v3416 = vpack.c.bf16 %v3405, %v3404
  %v3417 = vpack.c.bf16 %v3406, %v3406
  %v3424 = vunpack.c.l.b16 %v3407
  %v3425 = vunpack.c.l.b16 %v3408
  %v3426 = vunpack.c.l.b16 %v3409
  %v3427 = vunpack.c.l.b16 %v3410
  %v3428 = vunpack.c.l.b16 %v3411
  %v3429 = vunpack.c.l.b16 %v3412
  %v3430 = vpack.c.b16 %v3425, %v3424
  %v3431 = vpack.c.b16 %v3427, %v3426
  %v3432 = vpack.c.b16 %v3429, %v3428
  %vm3433 = vcmask 572416
  %v3435 = vsel %vm3433, %v3430, 0
  %v3438 = vsel %vm3433, %v3431, 0
  %v3441 = vsel %vm3433, %v3432, 0
  %vm3443 = vcmask 1042432
  %v3445 = vsel %vm3443, %v3417, 0
  %3447 = vmatpush.bf16.msra.mxu0 0
  %3448 = vmatpush.bf16.msra.mxu0 0
  %3449 = vmatpush.bf16.msra.mxu0 0
  %3450 = vmatpush.bf16.msra.mxu0 %v3445
  %3451 = vmatpush.bf16.msra.mxu0 %v3416
  %3452 = vmatpush.bf16.msra.mxu0 %v3415
  %3453 = vmatpush.bf16.msra.mxu0 %v3414
  %3454 = vmatpush.bf16.msra.mxu0 %v3413
  %3455 = vmatmul.bf16.gmra.mxu0 %v3435
  %v3456 = vpop.f32.mrf.mxu0
  %v3457 = vadd.f32 0.0, %v3456
  %v3458 = vpop.f32.mrf.mxu0
  %v3459 = vadd.f32 0.0, %v3458
  %3460 = vmatmul.bf16.gmra.mxu0 %v3438
  %v3461 = vpop.f32.mrf.mxu0
  %v3462 = vadd.f32 0.0, %v3461
  %v3463 = vpop.f32.mrf.mxu0
  %v3464 = vadd.f32 0.0, %v3463
  %3465 = vmatmul.bf16.gmra.mxu0 %v3441
  %v3466 = vpop.f32.mrf.mxu0
  %v3467 = vadd.f32 0.0, %v3466
  %v3468 = vpop.f32.mrf.mxu0
  %v3469 = vadd.f32 0.0, %v3468
  %3470 = vdwg.mxu0
  %v3471 = vmax.f32 %v3457, 0.0
  %v3472 = vmax.f32 %v3459, 0.0
  %v3473 = vmax.f32 %v3462, 0.0
  %v3474 = vmax.f32 %v3464, 0.0
  %v3475 = vmax.f32 %v3467, 0.0
  %v3476 = vmax.f32 %v3469, 0.0
  %v3477 = vpack.c.bf16 %v3472, %v3471
  %v3478 = vpack.c.bf16 %v3474, %v3473
  %v3479 = vpack.c.bf16 %v3475, %v3475
  %v3480 = vld [vmem:[%s11] sm:$0xf]
  %v3481 = vld [vmem:[%s11 + $0x4] sm:$0xf]
  %v3482 = vld [vmem:[%s11 + $0x8] sm:$0xf]
  %v3483 = vld [vmem:[%s11 + $0xc] sm:$0xf]
  %v3484 = vld [vmem:[%s11 + $0x10] sm:$0xf]
  %v3485 = vld [vmem:[%s11 + $0x14] sm:$0xf]
  %v3486 = vld [vmem:[%s11 + $0x18] sm:$0xf]
  %v3487 = vld [vmem:[%s11 + $0x1c] sm:$0xf]
  %v3488 = vld [vmem:[%s11 + $0x20] sm:$0xf]
  %v3489 = vld [vmem:[%s11 + $0x24] sm:$0xf]
  %v3490 = vld [vmem:[%s11 + $0x28] sm:$0xf]
  %v3491 = vld [vmem:[%s11 + $0x2c] sm:$0xf]
  %s3492 = scalar_lea.vmem %s11, 48
  %v3493 = vld [vmem:[%s3492] sm:$0xf]
  %v3494 = vld [vmem:[%s3492 + $0x4] sm:$0xf]
  %v3495 = vld [vmem:[%s3492 + $0x8] sm:$0xf]
  %v3496 = vld [vmem:[%s3492 + $0xc] sm:$0xf]
  %v3497 = vld [vmem:[%s3492 + $0x10] sm:$0xf]
  %v3498 = vld [vmem:[%s3492 + $0x14] sm:$0xf]
  %v3499 = vld [vmem:[%s3492 + $0x18] sm:$0xf]
  %v3500 = vld [vmem:[%s3492 + $0x1c] sm:$0xf]
  %v3501 = vld [vmem:[%s3492 + $0x20] sm:$0xf]
  %v3502 = vld [vmem:[%s3492 + $0x24] sm:$0xf]
  %v3503 = vld [vmem:[%s3492 + $0x28] sm:$0xf]
  %v3504 = vld [vmem:[%s3492 + $0x2c] sm:$0xf]
  %v3506 = vshrl.u32 %v3477, 16
  %v3508 = vshll.u32 %v3477, 16
  %v3510 = vrot.slane %v3508, 1
  %v3511 = vor.u32 %v3506, %v3510
  %v3513 = vshll.u32 %v3478, 16
  %v3515 = vrot.slane %v3513, 1
  %v3516 = vsel %vm209, %v3511, %v3515
  %v3517 = vshrl.u32 %v3478, 16
  %v3519 = vor.u32 %v3517, %v3515
  %v3521 = vshll.u32 %v3479, 16
  %v3523 = vrot.slane %v3521, 1
  %v3524 = vsel %vm209, %v3519, %v3523
  %v3525 = vshrl.u32 %v3479, 16
  %v3527 = vor.u32 %v3525, %v3523
  %v3540 = vunpack.c.l.b16 %v3493
  %v3541 = vunpack.c.l.b16 %v3494
  %v3542 = vunpack.c.l.b16 %v3495
  %v3543 = vunpack.c.l.b16 %v3496
  %v3544 = vunpack.c.l.b16 %v3497
  %v3545 = vunpack.c.l.b16 %v3498
  %v3546 = vunpack.c.l.b16 %v3499
  %v3547 = vunpack.c.l.b16 %v3500
  %v3548 = vunpack.c.l.b16 %v3501
  %v3549 = vunpack.c.l.b16 %v3502
  %v3550 = vunpack.c.l.b16 %v3503
  %v3551 = vunpack.c.l.b16 %v3504
  %v3552 = vpack.c.b16 %v3541, %v3540
  %v3553 = vpack.c.b16 %v3543, %v3542
  %v3554 = vpack.c.b16 %v3545, %v3544
  %v3555 = vpack.c.b16 %v3547, %v3546
  %v3556 = vpack.c.b16 %v3549, %v3548
  %v3557 = vpack.c.b16 %v3551, %v3550
  %vm3564 = vcmask 785408
  %v3566 = vsel %vm3564, %v3516, 0
  %v3569 = vsel %vm3564, %v3524, 0
  %v3572 = vsel %vm3564, %v3527, 0
  %3574 = vmatpush.bf16.msra.mxu0 0
  %3575 = vmatpush.bf16.msra.mxu0 0
  %3576 = vmatpush.bf16.msra.mxu0 %v3557
  %3577 = vmatpush.bf16.msra.mxu0 %v3556
  %3578 = vmatpush.bf16.msra.mxu0 %v3555
  %3579 = vmatpush.bf16.msra.mxu0 %v3554
  %3580 = vmatpush.bf16.msra.mxu0 %v3553
  %3581 = vmatpush.bf16.msra.mxu0 %v3552
  %3582 = vmatmul.bf16.gmra.mxu0 %v3566
  %v3583 = vpop.f32.mrf.mxu0
  %v3584 = vadd.f32 0.0, %v3583
  %v3585 = vpop.f32.mrf.mxu0
  %v3586 = vadd.f32 0.0, %v3585
  %3587 = vmatmul.bf16.gmra.mxu0 %v3569
  %v3588 = vpop.f32.mrf.mxu0
  %v3589 = vadd.f32 0.0, %v3588
  %v3590 = vpop.f32.mrf.mxu0
  %v3591 = vadd.f32 0.0, %v3590
  %3592 = vmatmul.bf16.gmra.mxu0 %v3572
  %v3593 = vpop.f32.mrf.mxu0
  %v3594 = vadd.f32 0.0, %v3593
  %v3595 = vpop.f32.mrf.mxu0
  %3596 = vdwg.mxu0
  %v3609 = vunpack.c.l.b16 %v3480
  %v3610 = vunpack.c.l.b16 %v3481
  %v3611 = vunpack.c.l.b16 %v3482
  %v3612 = vunpack.c.l.b16 %v3483
  %v3613 = vunpack.c.l.b16 %v3484
  %v3614 = vunpack.c.l.b16 %v3485
  %v3615 = vunpack.c.l.b16 %v3486
  %v3616 = vunpack.c.l.b16 %v3487
  %v3617 = vunpack.c.l.b16 %v3488
  %v3618 = vunpack.c.l.b16 %v3489
  %v3619 = vunpack.c.l.b16 %v3490
  %v3620 = vunpack.c.l.b16 %v3491
  %v3621 = vpack.c.b16 %v3610, %v3609
  %v3622 = vpack.c.b16 %v3612, %v3611
  %v3623 = vpack.c.b16 %v3614, %v3613
  %v3624 = vpack.c.b16 %v3616, %v3615
  %v3625 = vpack.c.b16 %v3618, %v3617
  %v3626 = vpack.c.b16 %v3620, %v3619
  %v3633 = vsel %vm3564, %v3477, 0
  %v3635 = vsel %vm3564, %v3478, 0
  %v3637 = vsel %vm3564, %v3479, 0
  %3639 = vmatpush.bf16.msra.mxu0 0
  %3640 = vmatpush.bf16.msra.mxu0 0
  %3641 = vmatpush.bf16.msra.mxu0 %v3626
  %3642 = vmatpush.bf16.msra.mxu0 %v3625
  %3643 = vmatpush.bf16.msra.mxu0 %v3624
  %3644 = vmatpush.bf16.msra.mxu0 %v3623
  %3645 = vmatpush.bf16.msra.mxu0 %v3622
  %3646 = vmatpush.bf16.msra.mxu0 %v3621
  %3647 = vmatmul.bf16.gmra.mxu0 %v3633
  %v3648 = vpop.f32.mrf.mxu0
  %v3649 = vadd.f32 %v3584, %v3648
  %v3650 = vpop.f32.mrf.mxu0
  %v3651 = vadd.f32 %v3586, %v3650
  %3652 = vmatmul.bf16.gmra.mxu0 %v3635
  %v3653 = vpop.f32.mrf.mxu0
  %v3654 = vadd.f32 %v3589, %v3653
  %v3655 = vpop.f32.mrf.mxu0
  %v3656 = vadd.f32 %v3591, %v3655
  %3657 = vmatmul.bf16.gmra.mxu0 %v3637
  %v3658 = vpop.f32.mrf.mxu0
  %v3659 = vadd.f32 %v3594, %v3658
  %v3660 = vpop.f32.mrf.mxu0
  %3661 = vdwg.mxu0
  %s3662 = scalar_lea.vmem %s11, 96
  %v3663 = vld [vmem:[%s3662] sm:$0xf]
  %v3664 = vld [vmem:[%s3662 + $0x4] sm:$0xf]
  %v3665 = vld [vmem:[%s3662 + $0x8] sm:$0xf]
  %v3666 = vld [vmem:[%s3662 + $0xc] sm:$0xf]
  %v3667 = vld [vmem:[%s3662 + $0x10] sm:$0xf]
  %v3668 = vld [vmem:[%s3662 + $0x14] sm:$0xf]
  %v3669 = vld [vmem:[%s3662 + $0x18] sm:$0xf]
  %v3670 = vld [vmem:[%s3662 + $0x1c] sm:$0xf]
  %v3671 = vld [vmem:[%s3662 + $0x20] sm:$0xf]
  %v3672 = vld [vmem:[%s3662 + $0x24] sm:$0xf]
  %v3673 = vld [vmem:[%s3662 + $0x28] sm:$0xf]
  %v3674 = vld [vmem:[%s3662 + $0x2c] sm:$0xf]
  %v3678 = vrot.slane %v3477, 1
  %v3679 = vrot.slane %v3478, 1
  %v3680 = vsel %vm568, %v3678, %v3679
  %v3681 = vrot.slane %v3479, 1
  %v3682 = vsel %vm568, %v3679, %v3681
  %v3695 = vunpack.c.l.b16 %v3663
  %v3696 = vunpack.c.l.b16 %v3664
  %v3697 = vunpack.c.l.b16 %v3665
  %v3698 = vunpack.c.l.b16 %v3666
  %v3699 = vunpack.c.l.b16 %v3667
  %v3700 = vunpack.c.l.b16 %v3668
  %v3701 = vunpack.c.l.b16 %v3669
  %v3702 = vunpack.c.l.b16 %v3670
  %v3703 = vunpack.c.l.b16 %v3671
  %v3704 = vunpack.c.l.b16 %v3672
  %v3705 = vunpack.c.l.b16 %v3673
  %v3706 = vunpack.c.l.b16 %v3674
  %v3707 = vpack.c.b16 %v3696, %v3695
  %v3708 = vpack.c.b16 %v3698, %v3697
  %v3709 = vpack.c.b16 %v3700, %v3699
  %v3710 = vpack.c.b16 %v3702, %v3701
  %v3711 = vpack.c.b16 %v3704, %v3703
  %v3712 = vpack.c.b16 %v3706, %v3705
  %v3720 = vsel %vm3564, %v3680, 0
  %v3723 = vsel %vm3564, %v3682, 0
  %v3726 = vsel %vm3564, %v3681, 0
  %3728 = vmatpush.bf16.msra.mxu0 0
  %3729 = vmatpush.bf16.msra.mxu0 0
  %3730 = vmatpush.bf16.msra.mxu0 %v3712
  %3731 = vmatpush.bf16.msra.mxu0 %v3711
  %3732 = vmatpush.bf16.msra.mxu0 %v3710
  %3733 = vmatpush.bf16.msra.mxu0 %v3709
  %3734 = vmatpush.bf16.msra.mxu0 %v3708
  %3735 = vmatpush.bf16.msra.mxu0 %v3707
  %3736 = vmatmul.bf16.gmra.mxu0 %v3720
  %v3737 = vpop.f32.mrf.mxu0
  %v3738 = vadd.f32 0.0, %v3737
  %v3739 = vpop.f32.mrf.mxu0
  %v3740 = vadd.f32 0.0, %v3739
  %3741 = vmatmul.bf16.gmra.mxu0 %v3723
  %v3742 = vpop.f32.mrf.mxu0
  %v3743 = vadd.f32 0.0, %v3742
  %v3744 = vpop.f32.mrf.mxu0
  %v3745 = vadd.f32 0.0, %v3744
  %3746 = vmatmul.bf16.gmra.mxu0 %v3726
  %v3747 = vpop.f32.mrf.mxu0
  %v3748 = vadd.f32 0.0, %v3747
  %v3749 = vpop.f32.mrf.mxu0
  %3750 = vdwg.mxu0
  %v3751 = vadd.f32 %v3649, %v3738
  %v3752 = vadd.f32 %v3651, %v3740
  %v3753 = vadd.f32 %v3654, %v3743
  %v3754 = vadd.f32 %v3656, %v3745
  %v3755 = vadd.f32 %v3659, %v3748
  %v3756 = vpack.c.bf16 %v3476, %v3475
  %s3757 = scalar_lea.vmem %s11, 144
  %v3758 = vld [vmem:[%s3757] sm:$0xf]
  %v3759 = vld [vmem:[%s3757 + $0x4] sm:$0xf]
  %v3760 = vld [vmem:[%s3757 + $0x8] sm:$0xf]
  %v3761 = vld [vmem:[%s3757 + $0xc] sm:$0xf]
  %v3762 = vld [vmem:[%s3757 + $0x10] sm:$0xf]
  %v3763 = vld [vmem:[%s3757 + $0x14] sm:$0xf]
  %v3764 = vld [vmem:[%s3757 + $0x18] sm:$0xf]
  %v3765 = vld [vmem:[%s3757 + $0x1c] sm:$0xf]
  %v3766 = vld [vmem:[%s3757 + $0x20] sm:$0xf]
  %v3767 = vld [vmem:[%s3757 + $0x24] sm:$0xf]
  %v3768 = vld [vmem:[%s3757 + $0x28] sm:$0xf]
  %v3769 = vld [vmem:[%s3757 + $0x2c] sm:$0xf]
  %v3770 = vrot.slane %v3506, 1
  %v3771 = vrot.slane %v3508, 2
  %v3772 = vor.u32 %v3770, %v3771
  %v3773 = vrot.slane %v3517, 1
  %v3774 = vrot.slane %v3513, 2
  %v3775 = vor.u32 %v3773, %v3774
  %v3776 = vsel %vm764, %v3772, %v3775
  %v3778 = vshrl.u32 %v3756, 16
  %v3780 = vrot.slane %v3778, 1
  %v3781 = vshll.u32 %v3756, 16
  %v3783 = vrot.slane %v3781, 2
  %v3784 = vor.u32 %v3780, %v3783
  %v3785 = vsel %vm764, %v3775, %v3784
  %v3798 = vunpack.c.l.b16 %v3758
  %v3799 = vunpack.c.l.b16 %v3759
  %v3800 = vunpack.c.l.b16 %v3760
  %v3801 = vunpack.c.l.b16 %v3761
  %v3802 = vunpack.c.l.b16 %v3762
  %v3803 = vunpack.c.l.b16 %v3763
  %v3804 = vunpack.c.l.b16 %v3764
  %v3805 = vunpack.c.l.b16 %v3765
  %v3806 = vunpack.c.l.b16 %v3766
  %v3807 = vunpack.c.l.b16 %v3767
  %v3808 = vunpack.c.l.b16 %v3768
  %v3809 = vunpack.c.l.b16 %v3769
  %v3810 = vpack.c.b16 %v3799, %v3798
  %v3811 = vpack.c.b16 %v3801, %v3800
  %v3812 = vpack.c.b16 %v3803, %v3802
  %v3813 = vpack.c.b16 %v3805, %v3804
  %v3814 = vpack.c.b16 %v3807, %v3806
  %v3815 = vpack.c.b16 %v3809, %v3808
  %v3823 = vsel %vm3564, %v3776, 0
  %v3826 = vsel %vm3564, %v3785, 0
  %v3829 = vsel %vm3564, %v3784, 0
  %3831 = vmatpush.bf16.msra.mxu0 0
  %3832 = vmatpush.bf16.msra.mxu0 0
  %3833 = vmatpush.bf16.msra.mxu0 %v3815
  %3834 = vmatpush.bf16.msra.mxu0 %v3814
  %3835 = vmatpush.bf16.msra.mxu0 %v3813
  %3836 = vmatpush.bf16.msra.mxu0 %v3812
  %3837 = vmatpush.bf16.msra.mxu0 %v3811
  %3838 = vmatpush.bf16.msra.mxu0 %v3810
  %3839 = vmatmul.bf16.gmra.mxu0 %v3823
  %v3840 = vpop.f32.mrf.mxu0
  %v3841 = vadd.f32 0.0, %v3840
  %v3842 = vpop.f32.mrf.mxu0
  %v3843 = vadd.f32 0.0, %v3842
  %3844 = vmatmul.bf16.gmra.mxu0 %v3826
  %v3845 = vpop.f32.mrf.mxu0
  %v3846 = vadd.f32 0.0, %v3845
  %v3847 = vpop.f32.mrf.mxu0
  %v3848 = vadd.f32 0.0, %v3847
  %3849 = vmatmul.bf16.gmra.mxu0 %v3829
  %v3850 = vpop.f32.mrf.mxu0
  %v3851 = vadd.f32 0.0, %v3850
  %v3852 = vpop.f32.mrf.mxu0
  %3853 = vdwg.mxu0
  %v3854 = vadd.f32 %v3751, %v3841
  %v3855 = vadd.f32 %v3752, %v3843
  %v3856 = vadd.f32 %v3753, %v3846
  %v3857 = vadd.f32 %v3754, %v3848
  %v3858 = vadd.f32 %v3755, %v3851
  %s3859 = scalar_lea.vmem %s11, 192
  %v3860 = vld [vmem:[%s3859] sm:$0xf]
  %v3861 = vld [vmem:[%s3859 + $0x4] sm:$0xf]
  %v3862 = vld [vmem:[%s3859 + $0x8] sm:$0xf]
  %v3863 = vld [vmem:[%s3859 + $0xc] sm:$0xf]
  %v3864 = vld [vmem:[%s3859 + $0x10] sm:$0xf]
  %v3865 = vld [vmem:[%s3859 + $0x14] sm:$0xf]
  %v3866 = vld [vmem:[%s3859 + $0x18] sm:$0xf]
  %v3867 = vld [vmem:[%s3859 + $0x1c] sm:$0xf]
  %v3868 = vld [vmem:[%s3859 + $0x20] sm:$0xf]
  %v3869 = vld [vmem:[%s3859 + $0x24] sm:$0xf]
  %v3870 = vld [vmem:[%s3859 + $0x28] sm:$0xf]
  %v3871 = vld [vmem:[%s3859 + $0x2c] sm:$0xf]
  %v3873 = vrot.slane %v3477, 2
  %v3874 = vrot.slane %v3478, 2
  %v3875 = vsel %vm970, %v3873, %v3874
  %v3876 = vrot.slane %v3756, 2
  %v3877 = vsel %vm970, %v3874, %v3876
  %v3890 = vunpack.c.l.b16 %v3860
  %v3891 = vunpack.c.l.b16 %v3861
  %v3892 = vunpack.c.l.b16 %v3862
  %v3893 = vunpack.c.l.b16 %v3863
  %v3894 = vunpack.c.l.b16 %v3864
  %v3895 = vunpack.c.l.b16 %v3865
  %v3896 = vunpack.c.l.b16 %v3866
  %v3897 = vunpack.c.l.b16 %v3867
  %v3898 = vunpack.c.l.b16 %v3868
  %v3899 = vunpack.c.l.b16 %v3869
  %v3900 = vunpack.c.l.b16 %v3870
  %v3901 = vunpack.c.l.b16 %v3871
  %v3902 = vpack.c.b16 %v3891, %v3890
  %v3903 = vpack.c.b16 %v3893, %v3892
  %v3904 = vpack.c.b16 %v3895, %v3894
  %v3905 = vpack.c.b16 %v3897, %v3896
  %v3906 = vpack.c.b16 %v3899, %v3898
  %v3907 = vpack.c.b16 %v3901, %v3900
  %v3915 = vsel %vm3564, %v3875, 0
  %v3918 = vsel %vm3564, %v3877, 0
  %v3921 = vsel %vm3564, %v3876, 0
  %3923 = vmatpush.bf16.msra.mxu0 0
  %3924 = vmatpush.bf16.msra.mxu0 0
  %3925 = vmatpush.bf16.msra.mxu0 %v3907
  %3926 = vmatpush.bf16.msra.mxu0 %v3906
  %3927 = vmatpush.bf16.msra.mxu0 %v3905
  %3928 = vmatpush.bf16.msra.mxu0 %v3904
  %3929 = vmatpush.bf16.msra.mxu0 %v3903
  %3930 = vmatpush.bf16.msra.mxu0 %v3902
  %3931 = vmatmul.bf16.gmra.mxu0 %v3915
  %v3932 = vpop.f32.mrf.mxu0
  %v3933 = vadd.f32 0.0, %v3932
  %v3934 = vpop.f32.mrf.mxu0
  %v3935 = vadd.f32 0.0, %v3934
  %3936 = vmatmul.bf16.gmra.mxu0 %v3918
  %v3937 = vpop.f32.mrf.mxu0
  %v3938 = vadd.f32 0.0, %v3937
  %v3939 = vpop.f32.mrf.mxu0
  %v3940 = vadd.f32 0.0, %v3939
  %3941 = vmatmul.bf16.gmra.mxu0 %v3921
  %v3942 = vpop.f32.mrf.mxu0
  %v3943 = vadd.f32 0.0, %v3942
  %v3944 = vpop.f32.mrf.mxu0
  %3945 = vdwg.mxu0
  %v3946 = vadd.f32 %v3854, %v3933
  %v3947 = vadd.f32 %v3855, %v3935
  %v3948 = vadd.f32 %v3856, %v3938
  %v3949 = vadd.f32 %v3857, %v3940
  %v3950 = vadd.f32 %v3858, %v3943
  %s3951 = scalar_lea.vmem %s11, 240
  %v3952 = vld [vmem:[%s3951] sm:$0xf]
  %v3953 = vld [vmem:[%s3951 + $0x4] sm:$0xf]
  %v3954 = vld [vmem:[%s3951 + $0x8] sm:$0xf]
  %v3955 = vld [vmem:[%s3951 + $0xc] sm:$0xf]
  %v3956 = vld [vmem:[%s3951 + $0x10] sm:$0xf]
  %v3957 = vld [vmem:[%s3951 + $0x14] sm:$0xf]
  %v3958 = vld [vmem:[%s3951 + $0x18] sm:$0xf]
  %v3959 = vld [vmem:[%s3951 + $0x1c] sm:$0xf]
  %v3960 = vld [vmem:[%s3951 + $0x20] sm:$0xf]
  %v3961 = vld [vmem:[%s3951 + $0x24] sm:$0xf]
  %v3962 = vld [vmem:[%s3951 + $0x28] sm:$0xf]
  %v3963 = vld [vmem:[%s3951 + $0x2c] sm:$0xf]
  %v3964 = vrot.slane %v3506, 2
  %v3965 = vrot.slane %v3508, 3
  %v3966 = vor.u32 %v3964, %v3965
  %v3967 = vrot.slane %v3517, 2
  %v3968 = vrot.slane %v3513, 3
  %v3969 = vor.u32 %v3967, %v3968
  %v3970 = vsel %vm1166, %v3966, %v3969
  %v3971 = vrot.slane %v3778, 2
  %v3972 = vrot.slane %v3781, 3
  %v3973 = vor.u32 %v3971, %v3972
  %v3974 = vsel %vm1166, %v3969, %v3973
  %v3987 = vunpack.c.l.b16 %v3952
  %v3988 = vunpack.c.l.b16 %v3953
  %v3989 = vunpack.c.l.b16 %v3954
  %v3990 = vunpack.c.l.b16 %v3955
  %v3991 = vunpack.c.l.b16 %v3956
  %v3992 = vunpack.c.l.b16 %v3957
  %v3993 = vunpack.c.l.b16 %v3958
  %v3994 = vunpack.c.l.b16 %v3959
  %v3995 = vunpack.c.l.b16 %v3960
  %v3996 = vunpack.c.l.b16 %v3961
  %v3997 = vunpack.c.l.b16 %v3962
  %v3998 = vunpack.c.l.b16 %v3963
  %v3999 = vpack.c.b16 %v3988, %v3987
  %v4000 = vpack.c.b16 %v3990, %v3989
  %v4001 = vpack.c.b16 %v3992, %v3991
  %v4002 = vpack.c.b16 %v3994, %v3993
  %v4003 = vpack.c.b16 %v3996, %v3995
  %v4004 = vpack.c.b16 %v3998, %v3997
  %v4012 = vsel %vm3564, %v3970, 0
  %v4015 = vsel %vm3564, %v3974, 0
  %v4018 = vsel %vm3564, %v3973, 0
  %4020 = vmatpush.bf16.msra.mxu0 0
  %4021 = vmatpush.bf16.msra.mxu0 0
  %4022 = vmatpush.bf16.msra.mxu0 %v4004
  %4023 = vmatpush.bf16.msra.mxu0 %v4003
  %4024 = vmatpush.bf16.msra.mxu0 %v4002
  %4025 = vmatpush.bf16.msra.mxu0 %v4001
  %4026 = vmatpush.bf16.msra.mxu0 %v4000
  %4027 = vmatpush.bf16.msra.mxu0 %v3999
  %4028 = vmatmul.bf16.gmra.mxu0 %v4012
  %v4029 = vpop.f32.mrf.mxu0
  %v4030 = vadd.f32 0.0, %v4029
  %v4031 = vpop.f32.mrf.mxu0
  %v4032 = vadd.f32 0.0, %v4031
  %4033 = vmatmul.bf16.gmra.mxu0 %v4015
  %v4034 = vpop.f32.mrf.mxu0
  %v4035 = vadd.f32 0.0, %v4034
  %v4036 = vpop.f32.mrf.mxu0
  %v4037 = vadd.f32 0.0, %v4036
  %4038 = vmatmul.bf16.gmra.mxu0 %v4018
  %v4039 = vpop.f32.mrf.mxu0
  %v4040 = vadd.f32 0.0, %v4039
  %v4041 = vpop.f32.mrf.mxu0
  %4042 = vdwg.mxu0
  %v4043 = vadd.f32 %v3946, %v4030
  %v4044 = vadd.f32 %v3947, %v4032
  %v4045 = vadd.f32 %v3948, %v4035
  %v4046 = vadd.f32 %v3949, %v4037
  %v4047 = vadd.f32 %v3950, %v4040
  %s4048 = scalar_lea.vmem %s11, 288
  %v4049 = vld [vmem:[%s4048] sm:$0xf]
  %v4050 = vld [vmem:[%s4048 + $0x4] sm:$0xf]
  %v4051 = vld [vmem:[%s4048 + $0x8] sm:$0xf]
  %v4052 = vld [vmem:[%s4048 + $0xc] sm:$0xf]
  %v4053 = vld [vmem:[%s4048 + $0x10] sm:$0xf]
  %v4054 = vld [vmem:[%s4048 + $0x14] sm:$0xf]
  %v4055 = vld [vmem:[%s4048 + $0x18] sm:$0xf]
  %v4056 = vld [vmem:[%s4048 + $0x1c] sm:$0xf]
  %v4057 = vld [vmem:[%s4048 + $0x20] sm:$0xf]
  %v4058 = vld [vmem:[%s4048 + $0x24] sm:$0xf]
  %v4059 = vld [vmem:[%s4048 + $0x28] sm:$0xf]
  %v4060 = vld [vmem:[%s4048 + $0x2c] sm:$0xf]
  %v4061 = vrot.slane %v3477, 3
  %v4062 = vrot.slane %v3478, 3
  %v4063 = vsel %vm1372, %v4061, %v4062
  %v4064 = vrot.slane %v3756, 3
  %v4065 = vsel %vm1372, %v4062, %v4064
  %v4078 = vunpack.c.l.b16 %v4049
  %v4079 = vunpack.c.l.b16 %v4050
  %v4080 = vunpack.c.l.b16 %v4051
  %v4081 = vunpack.c.l.b16 %v4052
  %v4082 = vunpack.c.l.b16 %v4053
  %v4083 = vunpack.c.l.b16 %v4054
  %v4084 = vunpack.c.l.b16 %v4055
  %v4085 = vunpack.c.l.b16 %v4056
  %v4086 = vunpack.c.l.b16 %v4057
  %v4087 = vunpack.c.l.b16 %v4058
  %v4088 = vunpack.c.l.b16 %v4059
  %v4089 = vunpack.c.l.b16 %v4060
  %v4090 = vpack.c.b16 %v4079, %v4078
  %v4091 = vpack.c.b16 %v4081, %v4080
  %v4092 = vpack.c.b16 %v4083, %v4082
  %v4093 = vpack.c.b16 %v4085, %v4084
  %v4094 = vpack.c.b16 %v4087, %v4086
  %v4095 = vpack.c.b16 %v4089, %v4088
  %v4103 = vsel %vm3564, %v4063, 0
  %v4106 = vsel %vm3564, %v4065, 0
  %v4109 = vsel %vm3564, %v4064, 0
  %4111 = vmatpush.bf16.msra.mxu0 0
  %4112 = vmatpush.bf16.msra.mxu0 0
  %4113 = vmatpush.bf16.msra.mxu0 %v4095
  %4114 = vmatpush.bf16.msra.mxu0 %v4094
  %4115 = vmatpush.bf16.msra.mxu0 %v4093
  %4116 = vmatpush.bf16.msra.mxu0 %v4092
  %4117 = vmatpush.bf16.msra.mxu0 %v4091
  %4118 = vmatpush.bf16.msra.mxu0 %v4090
  %4119 = vmatmul.bf16.gmra.mxu0 %v4103
  %v4120 = vpop.f32.mrf.mxu0
  %v4121 = vadd.f32 0.0, %v4120
  %v4122 = vpop.f32.mrf.mxu0
  %v4123 = vadd.f32 0.0, %v4122
  %4124 = vmatmul.bf16.gmra.mxu0 %v4106
  %v4125 = vpop.f32.mrf.mxu0
  %v4126 = vadd.f32 0.0, %v4125
  %v4127 = vpop.f32.mrf.mxu0
  %v4128 = vadd.f32 0.0, %v4127
  %4129 = vmatmul.bf16.gmra.mxu0 %v4109
  %v4130 = vpop.f32.mrf.mxu0
  %v4131 = vadd.f32 0.0, %v4130
  %v4132 = vpop.f32.mrf.mxu0
  %4133 = vdwg.mxu0
  %v4134 = vadd.f32 %v4043, %v4121
  %v4135 = vadd.f32 %v4044, %v4123
  %v4136 = vadd.f32 %v4045, %v4126
  %v4137 = vadd.f32 %v4046, %v4128
  %v4138 = vadd.f32 %v4047, %v4131
  %v4139 = vld [vmem:[%s12] sm:$0x1]
  %v4141 = vperm.slane %v4139, 0
  %v4143 = vmul.f32 %v4134, %v4141
  %v4144 = vmul.f32 %v4135, %v4141
  %v4145 = vmul.f32 %v4136, %v4141
  %v4146 = vmul.f32 %v4137, %v4141
  %v4147 = vmul.f32 %v4138, %v4141
  %v4148 = vld [vmem:[%s13] sm:$0x1]
  %v4150 = vperm.slane %v4148, 0
  %v4152 = vadd.f32 %v4143, %v4150
  %v4153 = vadd.f32 %v4144, %v4150
  %v4154 = vadd.f32 %v4145, %v4150
  %v4155 = vadd.f32 %v4146, %v4150
  %v4156 = vadd.f32 %v4147, %v4150
  %v4162 = vrot.slane %v4152, 1
  %v4163 = vrot.slane %v4153, 1
  %v4164 = vsel %vm3335, %v4162, %v4163
  %v4165 = vrot.slane %v4154, 1
  %v4166 = vsel %vm3335, %v4163, %v4165
  %v4167 = vrot.slane %v4155, 1
  %v4168 = vsel %vm3335, %v4165, %v4167
  %v4169 = vrot.slane %v4156, 1
  %v4170 = vsel %vm3335, %v4167, %v4169
  %v4176 = vmax.f32 %v4152, %v4164
  %v4177 = vmax.f32 %v4153, %v4166
  %v4178 = vmax.f32 %v4154, %v4168
  %v4179 = vmax.f32 %v4155, %v4170
  %v4180 = vmax.f32 %v4156, %v4169
  %v4181 = vrot.slane %v4152, 2
  %v4182 = vrot.slane %v4153, 2
  %v4183 = vsel %vm3371, %v4181, %v4182
  %v4184 = vrot.slane %v4154, 2
  %v4185 = vsel %vm3371, %v4182, %v4184
  %v4186 = vrot.slane %v4155, 2
  %v4187 = vsel %vm3371, %v4184, %v4186
  %v4188 = vrot.slane %v4156, 2
  %v4189 = vsel %vm3371, %v4186, %v4188
  %v4195 = vmax.f32 %v4176, %v4183
  %v4196 = vmax.f32 %v4177, %v4185
  %v4197 = vmax.f32 %v4178, %v4187
  %v4198 = vmax.f32 %v4179, %v4189
  %v4199 = vmax.f32 %v4180, %v4188
  %v4200 = vld [vmem:[%s4] sm:$0xf]
  %v4201 = vld [vmem:[%s4 + $0x4] sm:$0x7]
  %v4202 = vpack.c.bf16 %v4196, %v4195
  %v4203 = vpack.c.bf16 %v4198, %v4197
  %v4204 = vpack.c.bf16 %v4199, %v4199
  %v4207 = vunpack.c.l.b16 %v4200
  %v4208 = vunpack.c.l.b16 %v4201
  %v4209 = vpack.c.b16 %v4208, %v4207
  %vm4210 = vcmask 293888
  %v4212 = vsel %vm4210, %v4209, 0
  %v4215 = vsel %vm132, %v4204, 0
  %4217 = vmatpush.bf16.msra.mxu0 0
  %4218 = vmatpush.bf16.msra.mxu0 0
  %4219 = vmatpush.bf16.msra.mxu0 0
  %4220 = vmatpush.bf16.msra.mxu0 0
  %4221 = vmatpush.bf16.msra.mxu0 0
  %4222 = vmatpush.bf16.msra.mxu0 %v4215
  %4223 = vmatpush.bf16.msra.mxu0 %v4203
  %4224 = vmatpush.bf16.msra.mxu0 %v4202
  %4225 = vmatmul.bf16.gmra.mxu0 %v4212
  %v4226 = vpop.f32.mrf.mxu0
  %v4227 = vadd.f32 0.0, %v4226
  %v4228 = vpop.f32.mrf.mxu0
  %v4229 = vadd.f32 0.0, %v4228
  %4230 = vdwg.mxu0
  %v4231 = vmax.f32 %v4227, 0.0
  %v4232 = vmax.f32 %v4229, 0.0
  %v4233 = vld [vmem:[%s18] sm:$0x3]
  %vm4234 = vcmp.gt.f32.partialorder %v4233, 0.5
  %v4235 = vpack.c.bf16 %v4232, %v4231
  %v4236 = vld [vmem:[%s14] sm:$0xff]
  %v4237 = vld [vmem:[%s14 + $0x8] sm:$0xff]
  %v4238 = vld [vmem:[%s14 + $0x10] sm:$0xff]
  %v4239 = vld [vmem:[%s14 + $0x18] sm:$0xff]
  %v4240 = vld [vmem:[%s14 + $0x20] sm:$0xff]
  %v4241 = vld [vmem:[%s14 + $0x28] sm:$0xff]
  %v4242 = vld [vmem:[%s16] sm:$0x3]
  %v4244 = vperm.slane %v4242, 0
  %v4245 = vperm.slane %v4242, 1
  %v4254 = vunpack.c.l.b16 %v4236
  %v4255 = vunpack.c.h.b16 %v4236
  %v4256 = vunpack.c.l.b16 %v4237
  %v4257 = vunpack.c.h.b16 %v4237
  %v4258 = vunpack.c.l.b16 %v4238
  %v4259 = vunpack.c.h.b16 %v4238
  %v4260 = vunpack.c.l.b16 %v4239
  %v4261 = vunpack.c.h.b16 %v4239
  %v4262 = vunpack.c.l.b16 %v4240
  %v4263 = vunpack.c.h.b16 %v4240
  %v4264 = vunpack.c.l.b16 %v4241
  %v4265 = vunpack.c.h.b16 %v4241
  %v4266 = vpack.c.b16 %v4256, %v4254
  %v4267 = vpack.c.b16 %v4257, %v4255
  %v4268 = vpack.c.b16 %v4260, %v4258
  %v4269 = vpack.c.b16 %v4261, %v4259
  %v4270 = vpack.c.b16 %v4264, %v4262
  %v4271 = vpack.c.b16 %v4265, %v4263
  %vm4278 = vcmask 392192
  %v4280 = vsel %vm4278, %v4235, 0
  %4282 = vmatpush.bf16.msra.mxu0 0
  %4283 = vmatpush.bf16.msra.mxu0 0
  %4284 = vmatpush.bf16.msra.mxu0 0
  %4285 = vmatpush.bf16.msra.mxu0 0
  %4286 = vmatpush.bf16.msra.mxu0 0
  %4287 = vmatpush.bf16.msra.mxu0 %v4270
  %4288 = vmatpush.bf16.msra.mxu0 %v4268
  %4289 = vmatpush.bf16.msra.mxu0 %v4266
  %4290 = vmatmul.bf16.gmra.mxu0 %v4280
  %v4291 = vpop.f32.mrf.mxu0
  %v4292 = vadd.f32 %v4244, %v4291
  %v4293 = vpop.f32.mrf.mxu0
  %v4294 = vadd.f32 %v4244, %v4293
  %4295 = vdwg.mxu0
  %4296 = vmatpush.bf16.msra.mxu0 0
  %4297 = vmatpush.bf16.msra.mxu0 0
  %4298 = vmatpush.bf16.msra.mxu0 0
  %4299 = vmatpush.bf16.msra.mxu0 0
  %4300 = vmatpush.bf16.msra.mxu0 0
  %4301 = vmatpush.bf16.msra.mxu0 %v4271
  %4302 = vmatpush.bf16.msra.mxu0 %v4269
  %4303 = vmatpush.bf16.msra.mxu0 %v4267
  %4304 = vmatmul.bf16.gmra.mxu0 %v4280
  %v4305 = vpop.f32.mrf.mxu0
  %v4306 = vadd.f32 %v4245, %v4305
  %v4307 = vpop.f32.mrf.mxu0
  %v4308 = vadd.f32 %v4245, %v4307
  %4309 = vdwg.mxu0
  %v4310 = vld [vmem:[%s17] sm:$0x3]
  %v4311 = vsel %vm4234, 1, 0
  %v4312 = vperm.slane %v4311, 0
  %v4313 = vperm.slane %v4311, 1
  %vm4314 = vcmp.eq.s32.totalorder %v4312, 1
  %vm4315 = vcmp.eq.s32.totalorder %v4313, 1
  %vm4320 = vcmask 1040384
  %v4321 = vrot.slane %v4292, 7
  %v4322 = vrot.slane %v4294, 7
  %v4323 = vsel %vm4320, %v4321, %v4322
  %v4324 = vrot.slane %v4306, 7
  %v4325 = vrot.slane %v4308, 7
  %v4326 = vsel %vm4320, %v4324, %v4325
  %v4329 = vsel %vm4314, %v4292, %v4323
  %v4330 = vsel %vm4315, %v4306, %v4326
  %v4331 = vld [vmem:[%s15] sm:$0xff]
  %v4332 = vld [vmem:[%s15 + $0x8] sm:$0xff]
  %v4333 = vld [vmem:[%s15 + $0x10] sm:$0xff]
  %v4334 = vld [vmem:[%s15 + $0x18] sm:$0xff]
  %v4335 = vld [vmem:[%s15 + $0x20] sm:$0xff]
  %v4336 = vld [vmem:[%s15 + $0x28] sm:$0xff]
  %v4338 = vperm.slane %v4310, 0
  %v4339 = vperm.slane %v4310, 1
  %v4348 = vunpack.c.l.b16 %v4331
  %v4349 = vunpack.c.h.b16 %v4331
  %v4350 = vunpack.c.l.b16 %v4332
  %v4351 = vunpack.c.h.b16 %v4332
  %v4352 = vunpack.c.l.b16 %v4333
  %v4353 = vunpack.c.h.b16 %v4333
  %v4354 = vunpack.c.l.b16 %v4334
  %v4355 = vunpack.c.h.b16 %v4334
  %v4356 = vunpack.c.l.b16 %v4335
  %v4357 = vunpack.c.h.b16 %v4335
  %v4358 = vunpack.c.l.b16 %v4336
  %v4359 = vunpack.c.h.b16 %v4336
  %v4360 = vpack.c.b16 %v4350, %v4348
  %v4361 = vpack.c.b16 %v4351, %v4349
  %v4362 = vpack.c.b16 %v4354, %v4352
  %v4363 = vpack.c.b16 %v4355, %v4353
  %v4364 = vpack.c.b16 %v4358, %v4356
  %v4365 = vpack.c.b16 %v4359, %v4357
  %v4373 = vsel %vm4278, 0, 0
  %4375 = vmatpush.bf16.msra.mxu0 0
  %4376 = vmatpush.bf16.msra.mxu0 0
  %4377 = vmatpush.bf16.msra.mxu0 0
  %4378 = vmatpush.bf16.msra.mxu0 0
  %4379 = vmatpush.bf16.msra.mxu0 0
  %4380 = vmatpush.bf16.msra.mxu0 %v4364
  %4381 = vmatpush.bf16.msra.mxu0 %v4362
  %4382 = vmatpush.bf16.msra.mxu0 %v4360
  %4383 = vmatmul.bf16.gmra.mxu0 %v4373
  %v4384 = vpop.f32.mrf.mxu0
  %v4385 = vadd.f32 %v4338, %v4384
  %v4386 = vpop.f32.mrf.mxu0
  %4387 = vdwg.mxu0
  %4388 = vmatpush.bf16.msra.mxu0 0
  %4389 = vmatpush.bf16.msra.mxu0 0
  %4390 = vmatpush.bf16.msra.mxu0 0
  %4391 = vmatpush.bf16.msra.mxu0 0
  %4392 = vmatpush.bf16.msra.mxu0 0
  %4393 = vmatpush.bf16.msra.mxu0 %v4365
  %4394 = vmatpush.bf16.msra.mxu0 %v4363
  %4395 = vmatpush.bf16.msra.mxu0 %v4361
  %4396 = vmatmul.bf16.gmra.mxu0 %v4373
  %v4397 = vpop.f32.mrf.mxu0
  %v4398 = vadd.f32 %v4339, %v4397
  %v4399 = vpop.f32.mrf.mxu0
  %4400 = vdwg.mxu0
  %v4401 = vadd.f32 %v4329, %v4385
  %v4402 = vxor.u32 %v4401, 2147483648
  %v4403 = vmul.f32 %v4402, 1.442695
  %v4404 = vpow.pop %v4403
  %v4405 = vadd.f32 %v4404, 1.0
  %v4406 = vrcp.pop %v4405
  %v4407 = vmul.f32 %v4405, %v4406
  %v4408 = vsub.f32 1.0, %v4407
  %v4409 = vmul.f32 %v4406, %v4408
  %v4410 = vadd.f32 %v4406, %v4409
  %vm4411 = vweird.f32 %v4405
  %vm4412 = vweird.f32 %v4406
  %vm4413 = vmor %vm4411, %vm4412
  %v4414 = vsel %vm4413, %v4406, %v4410
  %v4415 = vand.u32 2147483647, %v4405
  %vm4416 = vcmp.eq.f32.partialorder %v4415, 8.507059e+37
  %v4417 = vand.u32 %v4405, 2147483648
  %v4418 = vor.u32 1.1754944e-38, %v4417
  %v4419 = vsel %vm4416, %v4418, %v4414
  %v4420 = vmul.f32 1.0, %v4419
  %4423 = vrot.lane.b32.xlu0 %v4385, 32
  %v4424 = vpop.permute.xlu0 %4423
  %4425 = vrot.lane.b32.xlu0 %v4398, 32
  %v4426 = vpop.permute.xlu0 %4425
  %vm4427 = vcmask 261120
  %v4428 = vsel %vm4427, %v4424, %v4426
  %v4430 = vmul.f32 %v4420, %v4428
  %4432 = vrot.lane.b32.xlu0 %v4430, 96
  %v4433 = vpop.permute.xlu0 %4432
  %v4435 = vadd.f32 %v4329, %v4433
  %v4436 = vadd.f32 %v4330, %v4433
  %v4437 = vtanh.pop %v4435
  %v4438 = vtanh.pop %v4436
  %v4439 = vsub.f32 1.0, %v4420
  %4442 = vrot.lane.b32.xlu0 %v4437, 80
  %v4443 = vpop.permute.xlu0 %4442
  %4444 = vrot.lane.b32.xlu0 %v4438, 80
  %v4445 = vpop.permute.xlu0 %4444
  %vm4446 = vcmask 654336
  %v4447 = vsel %vm4446, %v4443, %v4445
  %v4449 = vmul.f32 %v4439, %v4447
  %v4450 = vmul.f32 %v4420, 0.0
  %v4451 = vadd.f32 %v4449, %v4450
  %v4452 = vrot.slane %v4292, 1
  %v4453 = vrot.slane %v4306, 1
  %v4456 = vsel %vm4314, %v4292, %v4452
  %v4457 = vsel %vm4315, %v4306, %v4453
  %v4458 = vsel %vm4314, %v4294, %v4452
  %v4459 = vsel %vm4315, %v4308, %v4453
  %v4460 = vpack.c.bf16 %v4451, %v4451
  %4462 = vrot.lane.b32.xlu0 %v4460, 80
  %v4463 = vpop.permute.xlu0 %4462
  %v4465 = vsel %vm4278, %v4463, 0
  %4467 = vmatpush.bf16.msra.mxu0 0
  %4468 = vmatpush.bf16.msra.mxu0 0
  %4469 = vmatpush.bf16.msra.mxu0 0
  %4470 = vmatpush.bf16.msra.mxu0 0
  %4471 = vmatpush.bf16.msra.mxu0 0
  %4472 = vmatpush.bf16.msra.mxu0 %v4364
  %4473 = vmatpush.bf16.msra.mxu0 %v4362
  %4474 = vmatpush.bf16.msra.mxu0 %v4360
  %4475 = vmatmul.bf16.gmra.mxu0 %v4465
  %v4476 = vpop.f32.mrf.mxu0
  %v4477 = vadd.f32 %v4338, %v4476
  %v4478 = vpop.f32.mrf.mxu0
  %4479 = vdwg.mxu0
  %4480 = vmatpush.bf16.msra.mxu0 0
  %4481 = vmatpush.bf16.msra.mxu0 0
  %4482 = vmatpush.bf16.msra.mxu0 0
  %4483 = vmatpush.bf16.msra.mxu0 0
  %4484 = vmatpush.bf16.msra.mxu0 0
  %4485 = vmatpush.bf16.msra.mxu0 %v4365
  %4486 = vmatpush.bf16.msra.mxu0 %v4363
  %4487 = vmatpush.bf16.msra.mxu0 %v4361
  %4488 = vmatmul.bf16.gmra.mxu0 %v4465
  %v4489 = vpop.f32.mrf.mxu0
  %v4490 = vadd.f32 %v4339, %v4489
  %v4491 = vpop.f32.mrf.mxu0
  %4492 = vdwg.mxu0
  %v4494 = vrot.slane %v4477, 1
  %v4496 = vadd.f32 %v4456, %v4494
  %v4497 = vadd.f32 %v4458, %v4494
  %v4498 = vxor.u32 %v4496, 2147483648
  %v4499 = vxor.u32 %v4497, 2147483648
  %v4500 = vmul.f32 %v4498, 1.442695
  %v4501 = vpow.pop %v4500
  %v4502 = vmul.f32 %v4499, 1.442695
  %v4503 = vpow.pop %v4502
  %v4504 = vadd.f32 %v4501, 1.0
  %v4505 = vadd.f32 %v4503, 1.0
  %v4506 = vrcp.pop %v4504
  %v4507 = vmul.f32 %v4504, %v4506
  %v4508 = vsub.f32 1.0, %v4507
  %v4509 = vmul.f32 %v4506, %v4508
  %v4510 = vadd.f32 %v4506, %v4509
  %vm4511 = vweird.f32 %v4504
  %vm4512 = vweird.f32 %v4506
  %vm4513 = vmor %vm4511, %vm4512
  %v4514 = vsel %vm4513, %v4506, %v4510
  %v4515 = vand.u32 2147483647, %v4504
  %vm4516 = vcmp.eq.f32.partialorder %v4515, 8.507059e+37
  %v4517 = vand.u32 %v4504, 2147483648
  %v4518 = vor.u32 1.1754944e-38, %v4517
  %v4519 = vsel %vm4516, %v4518, %v4514
  %v4520 = vmul.f32 1.0, %v4519
  %v4521 = vrcp.pop %v4505
  %v4522 = vmul.f32 %v4505, %v4521
  %v4523 = vsub.f32 1.0, %v4522
  %v4524 = vmul.f32 %v4521, %v4523
  %v4525 = vadd.f32 %v4521, %v4524
  %vm4526 = vweird.f32 %v4505
  %vm4527 = vweird.f32 %v4521
  %vm4528 = vmor %vm4526, %vm4527
  %v4529 = vsel %vm4528, %v4521, %v4525
  %v4530 = vand.u32 2147483647, %v4505
  %vm4531 = vcmp.eq.f32.partialorder %v4530, 8.507059e+37
  %v4532 = vand.u32 %v4505, 2147483648
  %v4533 = vor.u32 1.1754944e-38, %v4532
  %v4534 = vsel %vm4531, %v4533, %v4529
  %v4535 = vmul.f32 1.0, %v4534
  %v4537 = vrot.slane %v4490, 1
  %4538 = vrot.lane.b32.xlu0 %v4494, 32
  %v4539 = vpop.permute.xlu0 %4538
  %4540 = vrot.lane.b32.xlu0 %v4537, 32
  %v4541 = vpop.permute.xlu0 %4540
  %v4542 = vsel %vm4427, %v4539, %v4541
  %v4544 = vmul.f32 %v4520, %v4542
  %v4545 = vmul.f32 %v4535, %v4542
  %4548 = vrot.lane.b32.xlu0 %v4544, 96
  %v4549 = vpop.permute.xlu0 %4548
  %4550 = vrot.lane.b32.xlu0 %v4545, 96
  %v4551 = vpop.permute.xlu0 %4550
  %v4554 = vadd.f32 %v4456, %v4549
  %v4555 = vadd.f32 %v4457, %v4549
  %v4556 = vadd.f32 %v4458, %v4551
  %v4557 = vadd.f32 %v4459, %v4551
  %v4558 = vtanh.pop %v4554
  %v4559 = vtanh.pop %v4555
  %v4560 = vtanh.pop %v4556
  %v4561 = vtanh.pop %v4557
  %v4562 = vsub.f32 1.0, %v4520
  %v4563 = vsub.f32 1.0, %v4535
  %4568 = vrot.lane.b32.xlu0 %v4558, 80
  %v4569 = vpop.permute.xlu0 %4568
  %4570 = vrot.lane.b32.xlu0 %v4559, 80
  %v4571 = vpop.permute.xlu0 %4570
  %4572 = vrot.lane.b32.xlu0 %v4560, 80
  %v4573 = vpop.permute.xlu0 %4572
  %4574 = vrot.lane.b32.xlu0 %v4561, 80
  %v4575 = vpop.permute.xlu0 %4574
  %v4576 = vsel %vm4446, %v4569, %v4571
  %v4577 = vsel %vm4446, %v4573, %v4575
  %v4580 = vmul.f32 %v4562, %v4576
  %v4581 = vmul.f32 %v4563, %v4577
  %v4583 = vrot.slane %v4451, 1
  %v4585 = vmul.f32 %v4520, %v4583
  %v4586 = vmul.f32 %v4535, %v4583
  %v4587 = vadd.f32 %v4580, %v4585
  %v4588 = vadd.f32 %v4581, %v4586
  %4589 = vrot.lane.b32.xlu0 %v4451, 80
  %v4590 = vpop.permute.xlu0 %4589
  %v4594 = vrot.slane %v4587, 7
  %v4595 = vrot.slane %v4588, 7
  %v4596 = vsel %vm4320, %v4594, %v4595
  %4597 = vrot.lane.b32.xlu0 %v4596, 80
  %v4598 = vpop.permute.xlu0 %4597
  %vm4600 = vcmask 195584
  %v4601 = vsel %vm4600, %v4590, %v4598
  %4602 = vrot.lane.b32.xlu0 %v4587, 80
  %v4603 = vpop.permute.xlu0 %4602
  %4604 = vrot.lane.b32.xlu0 %v4588, 80
  %v4605 = vpop.permute.xlu0 %4604
  %4608 = vrot.lane.b32.xlu0 %v4583, 80
  %v4609 = vpop.permute.xlu0 %4608
  %v4611 = vsel %vm4600, %v4603, %v4609
  %v4612 = vsel %vm4600, %v4605, %v4609
  %v4613 = vsel %vm3335, %v4601, %v4611
  %v4614 = vpack.c.bf16 %v4612, %v4613
  %s4615 = scalar_lea.vmem %s14, 48
  %v4616 = vld [vmem:[%s4615] sm:$0xff]
  %v4617 = vld [vmem:[%s4615 + $0x8] sm:$0xff]
  %v4618 = vld [vmem:[%s4615 + $0x10] sm:$0xff]
  %v4619 = vld [vmem:[%s4615 + $0x18] sm:$0xff]
  %v4620 = vld [vmem:[%s4615 + $0x20] sm:$0xff]
  %v4621 = vld [vmem:[%s4615 + $0x28] sm:$0xff]
  %s4622 = scalar_lea.vmem %s16, 2
  %v4623 = vld [vmem:[%s4622] sm:$0x3]
  %v4625 = vperm.slane %v4623, 0
  %v4626 = vperm.slane %v4623, 1
  %v4635 = vunpack.c.l.b16 %v4616
  %v4636 = vunpack.c.h.b16 %v4616
  %v4637 = vunpack.c.l.b16 %v4617
  %v4638 = vunpack.c.h.b16 %v4617
  %v4639 = vunpack.c.l.b16 %v4618
  %v4640 = vunpack.c.h.b16 %v4618
  %v4641 = vunpack.c.l.b16 %v4619
  %v4642 = vunpack.c.h.b16 %v4619
  %v4643 = vunpack.c.l.b16 %v4620
  %v4644 = vunpack.c.h.b16 %v4620
  %v4645 = vunpack.c.l.b16 %v4621
  %v4646 = vunpack.c.h.b16 %v4621
  %v4647 = vpack.c.b16 %v4637, %v4635
  %v4648 = vpack.c.b16 %v4638, %v4636
  %v4649 = vpack.c.b16 %v4641, %v4639
  %v4650 = vpack.c.b16 %v4642, %v4640
  %v4651 = vpack.c.b16 %v4645, %v4643
  %v4652 = vpack.c.b16 %v4646, %v4644
  %v4660 = vsel %vm4278, %v4614, 0
  %4662 = vmatpush.bf16.msra.mxu0 0
  %4663 = vmatpush.bf16.msra.mxu0 0
  %4664 = vmatpush.bf16.msra.mxu0 0
  %4665 = vmatpush.bf16.msra.mxu0 0
  %4666 = vmatpush.bf16.msra.mxu0 0
  %4667 = vmatpush.bf16.msra.mxu0 %v4651
  %4668 = vmatpush.bf16.msra.mxu0 %v4649
  %4669 = vmatpush.bf16.msra.mxu0 %v4647
  %4670 = vmatmul.bf16.gmra.mxu0 %v4660
  %v4671 = vpop.f32.mrf.mxu0
  %v4672 = vadd.f32 %v4625, %v4671
  %v4673 = vpop.f32.mrf.mxu0
  %v4674 = vadd.f32 %v4625, %v4673
  %4675 = vdwg.mxu0
  %4676 = vmatpush.bf16.msra.mxu0 0
  %4677 = vmatpush.bf16.msra.mxu0 0
  %4678 = vmatpush.bf16.msra.mxu0 0
  %4679 = vmatpush.bf16.msra.mxu0 0
  %4680 = vmatpush.bf16.msra.mxu0 0
  %4681 = vmatpush.bf16.msra.mxu0 %v4652
  %4682 = vmatpush.bf16.msra.mxu0 %v4650
  %4683 = vmatpush.bf16.msra.mxu0 %v4648
  %4684 = vmatmul.bf16.gmra.mxu0 %v4660
  %v4685 = vpop.f32.mrf.mxu0
  %v4686 = vadd.f32 %v4626, %v4685
  %v4687 = vpop.f32.mrf.mxu0
  %v4688 = vadd.f32 %v4626, %v4687
  %4689 = vdwg.mxu0
  %s4690 = scalar_lea.vmem %s17, 2
  %v4691 = vld [vmem:[%s4690] sm:$0x3]
  %v4696 = vrot.slane %v4672, 7
  %v4697 = vrot.slane %v4674, 7
  %v4698 = vsel %vm4320, %v4696, %v4697
  %v4699 = vrot.slane %v4686, 7
  %v4700 = vrot.slane %v4688, 7
  %v4701 = vsel %vm4320, %v4699, %v4700
  %v4704 = vsel %vm4314, %v4672, %v4698
  %v4705 = vsel %vm4315, %v4686, %v4701
  %s4706 = scalar_lea.vmem %s15, 48
  %v4707 = vld [vmem:[%s4706] sm:$0xff]
  %v4708 = vld [vmem:[%s4706 + $0x8] sm:$0xff]
  %v4709 = vld [vmem:[%s4706 + $0x10] sm:$0xff]
  %v4710 = vld [vmem:[%s4706 + $0x18] sm:$0xff]
  %v4711 = vld [vmem:[%s4706 + $0x20] sm:$0xff]
  %v4712 = vld [vmem:[%s4706 + $0x28] sm:$0xff]
  %v4714 = vperm.slane %v4691, 0
  %v4715 = vperm.slane %v4691, 1
  %v4724 = vunpack.c.l.b16 %v4707
  %v4725 = vunpack.c.h.b16 %v4707
  %v4726 = vunpack.c.l.b16 %v4708
  %v4727 = vunpack.c.h.b16 %v4708
  %v4728 = vunpack.c.l.b16 %v4709
  %v4729 = vunpack.c.h.b16 %v4709
  %v4730 = vunpack.c.l.b16 %v4710
  %v4731 = vunpack.c.h.b16 %v4710
  %v4732 = vunpack.c.l.b16 %v4711
  %v4733 = vunpack.c.h.b16 %v4711
  %v4734 = vunpack.c.l.b16 %v4712
  %v4735 = vunpack.c.h.b16 %v4712
  %v4736 = vpack.c.b16 %v4726, %v4724
  %v4737 = vpack.c.b16 %v4727, %v4725
  %v4738 = vpack.c.b16 %v4730, %v4728
  %v4739 = vpack.c.b16 %v4731, %v4729
  %v4740 = vpack.c.b16 %v4734, %v4732
  %v4741 = vpack.c.b16 %v4735, %v4733
  %4748 = vmatpush.bf16.msra.mxu0 0
  %4749 = vmatpush.bf16.msra.mxu0 0
  %4750 = vmatpush.bf16.msra.mxu0 0
  %4751 = vmatpush.bf16.msra.mxu0 0
  %4752 = vmatpush.bf16.msra.mxu0 0
  %4753 = vmatpush.bf16.msra.mxu0 %v4740
  %4754 = vmatpush.bf16.msra.mxu0 %v4738
  %4755 = vmatpush.bf16.msra.mxu0 %v4736
  %4756 = vmatmul.bf16.gmra.mxu0 %v4373
  %v4757 = vpop.f32.mrf.mxu0
  %v4758 = vadd.f32 %v4714, %v4757
  %v4759 = vpop.f32.mrf.mxu0
  %4760 = vdwg.mxu0
  %4761 = vmatpush.bf16.msra.mxu0 0
  %4762 = vmatpush.bf16.msra.mxu0 0
  %4763 = vmatpush.bf16.msra.mxu0 0
  %4764 = vmatpush.bf16.msra.mxu0 0
  %4765 = vmatpush.bf16.msra.mxu0 0
  %4766 = vmatpush.bf16.msra.mxu0 %v4741
  %4767 = vmatpush.bf16.msra.mxu0 %v4739
  %4768 = vmatpush.bf16.msra.mxu0 %v4737
  %4769 = vmatmul.bf16.gmra.mxu0 %v4373
  %v4770 = vpop.f32.mrf.mxu0
  %v4771 = vadd.f32 %v4715, %v4770
  %v4772 = vpop.f32.mrf.mxu0
  %4773 = vdwg.mxu0
  %v4774 = vadd.f32 %v4704, %v4758
  %v4775 = vxor.u32 %v4774, 2147483648
  %v4776 = vmul.f32 %v4775, 1.442695
  %v4777 = vpow.pop %v4776
  %v4778 = vadd.f32 %v4777, 1.0
  %v4779 = vrcp.pop %v4778
  %v4780 = vmul.f32 %v4778, %v4779
  %v4781 = vsub.f32 1.0, %v4780
  %v4782 = vmul.f32 %v4779, %v4781
  %v4783 = vadd.f32 %v4779, %v4782
  %vm4784 = vweird.f32 %v4778
  %vm4785 = vweird.f32 %v4779
  %vm4786 = vmor %vm4784, %vm4785
  %v4787 = vsel %vm4786, %v4779, %v4783
  %v4788 = vand.u32 2147483647, %v4778
  %vm4789 = vcmp.eq.f32.partialorder %v4788, 8.507059e+37
  %v4790 = vand.u32 %v4778, 2147483648
  %v4791 = vor.u32 1.1754944e-38, %v4790
  %v4792 = vsel %vm4789, %v4791, %v4787
  %v4793 = vmul.f32 1.0, %v4792
  %4796 = vrot.lane.b32.xlu0 %v4758, 32
  %v4797 = vpop.permute.xlu0 %4796
  %4798 = vrot.lane.b32.xlu0 %v4771, 32
  %v4799 = vpop.permute.xlu0 %4798
  %v4800 = vsel %vm4427, %v4797, %v4799
  %v4802 = vmul.f32 %v4793, %v4800
  %4804 = vrot.lane.b32.xlu0 %v4802, 96
  %v4805 = vpop.permute.xlu0 %4804
  %v4807 = vadd.f32 %v4704, %v4805
  %v4808 = vadd.f32 %v4705, %v4805
  %v4809 = vtanh.pop %v4807
  %v4810 = vtanh.pop %v4808
  %v4811 = vsub.f32 1.0, %v4793
  %4814 = vrot.lane.b32.xlu0 %v4809, 80
  %v4815 = vpop.permute.xlu0 %4814
  %4816 = vrot.lane.b32.xlu0 %v4810, 80
  %v4817 = vpop.permute.xlu0 %4816
  %v4818 = vsel %vm4446, %v4815, %v4817
  %v4820 = vmul.f32 %v4811, %v4818
  %v4821 = vmul.f32 %v4793, 0.0
  %v4822 = vadd.f32 %v4820, %v4821
  %v4823 = vrot.slane %v4672, 1
  %v4824 = vrot.slane %v4686, 1
  %v4827 = vsel %vm4314, %v4672, %v4823
  %v4828 = vsel %vm4315, %v4686, %v4824
  %v4829 = vsel %vm4314, %v4674, %v4823
  %v4830 = vsel %vm4315, %v4688, %v4824
  %v4831 = vpack.c.bf16 %v4822, %v4822
  %4833 = vrot.lane.b32.xlu0 %v4831, 80
  %v4834 = vpop.permute.xlu0 %4833
  %v4836 = vsel %vm4278, %v4834, 0
  %4838 = vmatpush.bf16.msra.mxu0 0
  %4839 = vmatpush.bf16.msra.mxu0 0
  %4840 = vmatpush.bf16.msra.mxu0 0
  %4841 = vmatpush.bf16.msra.mxu0 0
  %4842 = vmatpush.bf16.msra.mxu0 0
  %4843 = vmatpush.bf16.msra.mxu0 %v4740
  %4844 = vmatpush.bf16.msra.mxu0 %v4738
  %4845 = vmatpush.bf16.msra.mxu0 %v4736
  %4846 = vmatmul.bf16.gmra.mxu0 %v4836
  %v4847 = vpop.f32.mrf.mxu0
  %v4848 = vadd.f32 %v4714, %v4847
  %v4849 = vpop.f32.mrf.mxu0
  %4850 = vdwg.mxu0
  %4851 = vmatpush.bf16.msra.mxu0 0
  %4852 = vmatpush.bf16.msra.mxu0 0
  %4853 = vmatpush.bf16.msra.mxu0 0
  %4854 = vmatpush.bf16.msra.mxu0 0
  %4855 = vmatpush.bf16.msra.mxu0 0
  %4856 = vmatpush.bf16.msra.mxu0 %v4741
  %4857 = vmatpush.bf16.msra.mxu0 %v4739
  %4858 = vmatpush.bf16.msra.mxu0 %v4737
  %4859 = vmatmul.bf16.gmra.mxu0 %v4836
  %v4860 = vpop.f32.mrf.mxu0
  %v4861 = vadd.f32 %v4715, %v4860
  %v4862 = vpop.f32.mrf.mxu0
  %4863 = vdwg.mxu0
  %v4865 = vrot.slane %v4848, 1
  %v4867 = vadd.f32 %v4827, %v4865
  %v4868 = vadd.f32 %v4829, %v4865
  %v4869 = vxor.u32 %v4867, 2147483648
  %v4870 = vxor.u32 %v4868, 2147483648
  %v4871 = vmul.f32 %v4869, 1.442695
  %v4872 = vpow.pop %v4871
  %v4873 = vmul.f32 %v4870, 1.442695
  %v4874 = vpow.pop %v4873
  %v4875 = vadd.f32 %v4872, 1.0
  %v4876 = vadd.f32 %v4874, 1.0
  %v4877 = vrcp.pop %v4875
  %v4878 = vmul.f32 %v4875, %v4877
  %v4879 = vsub.f32 1.0, %v4878
  %v4880 = vmul.f32 %v4877, %v4879
  %v4881 = vadd.f32 %v4877, %v4880
  %vm4882 = vweird.f32 %v4875
  %vm4883 = vweird.f32 %v4877
  %vm4884 = vmor %vm4882, %vm4883
  %v4885 = vsel %vm4884, %v4877, %v4881
  %v4886 = vand.u32 2147483647, %v4875
  %vm4887 = vcmp.eq.f32.partialorder %v4886, 8.507059e+37
  %v4888 = vand.u32 %v4875, 2147483648
  %v4889 = vor.u32 1.1754944e-38, %v4888
  %v4890 = vsel %vm4887, %v4889, %v4885
  %v4891 = vmul.f32 1.0, %v4890
  %v4892 = vrcp.pop %v4876
  %v4893 = vmul.f32 %v4876, %v4892
  %v4894 = vsub.f32 1.0, %v4893
  %v4895 = vmul.f32 %v4892, %v4894
  %v4896 = vadd.f32 %v4892, %v4895
  %vm4897 = vweird.f32 %v4876
  %vm4898 = vweird.f32 %v4892
  %vm4899 = vmor %vm4897, %vm4898
  %v4900 = vsel %vm4899, %v4892, %v4896
  %v4901 = vand.u32 2147483647, %v4876
  %vm4902 = vcmp.eq.f32.partialorder %v4901, 8.507059e+37
  %v4903 = vand.u32 %v4876, 2147483648
  %v4904 = vor.u32 1.1754944e-38, %v4903
  %v4905 = vsel %vm4902, %v4904, %v4900
  %v4906 = vmul.f32 1.0, %v4905
  %v4908 = vrot.slane %v4861, 1
  %4909 = vrot.lane.b32.xlu0 %v4865, 32
  %v4910 = vpop.permute.xlu0 %4909
  %4911 = vrot.lane.b32.xlu0 %v4908, 32
  %v4912 = vpop.permute.xlu0 %4911
  %v4913 = vsel %vm4427, %v4910, %v4912
  %v4915 = vmul.f32 %v4891, %v4913
  %v4916 = vmul.f32 %v4906, %v4913
  %4919 = vrot.lane.b32.xlu0 %v4915, 96
  %v4920 = vpop.permute.xlu0 %4919
  %4921 = vrot.lane.b32.xlu0 %v4916, 96
  %v4922 = vpop.permute.xlu0 %4921
  %v4925 = vadd.f32 %v4827, %v4920
  %v4926 = vadd.f32 %v4828, %v4920
  %v4927 = vadd.f32 %v4829, %v4922
  %v4928 = vadd.f32 %v4830, %v4922
  %v4929 = vtanh.pop %v4925
  %v4930 = vtanh.pop %v4926
  %v4931 = vtanh.pop %v4927
  %v4932 = vtanh.pop %v4928
  %v4933 = vsub.f32 1.0, %v4891
  %v4934 = vsub.f32 1.0, %v4906
  %4939 = vrot.lane.b32.xlu0 %v4929, 80
  %v4940 = vpop.permute.xlu0 %4939
  %4941 = vrot.lane.b32.xlu0 %v4930, 80
  %v4942 = vpop.permute.xlu0 %4941
  %4943 = vrot.lane.b32.xlu0 %v4931, 80
  %v4944 = vpop.permute.xlu0 %4943
  %4945 = vrot.lane.b32.xlu0 %v4932, 80
  %v4946 = vpop.permute.xlu0 %4945
  %v4947 = vsel %vm4446, %v4940, %v4942
  %v4948 = vsel %vm4446, %v4944, %v4946
  %v4951 = vmul.f32 %v4933, %v4947
  %v4952 = vmul.f32 %v4934, %v4948
  %v4954 = vrot.slane %v4822, 1
  %v4956 = vmul.f32 %v4891, %v4954
  %v4957 = vmul.f32 %v4906, %v4954
  %v4958 = vadd.f32 %v4951, %v4956
  %v4959 = vadd.f32 %v4952, %v4957
  %4960 = vrot.lane.b32.xlu0 %v4822, 80
  %v4961 = vpop.permute.xlu0 %4960
  %v4965 = vrot.slane %v4958, 7
  %v4966 = vrot.slane %v4959, 7
  %v4967 = vsel %vm4320, %v4965, %v4966
  %4968 = vrot.lane.b32.xlu0 %v4967, 80
  %v4969 = vpop.permute.xlu0 %4968
  %v4971 = vsel %vm4600, %v4961, %v4969
  %4972 = vrot.lane.b32.xlu0 %v4958, 80
  %v4973 = vpop.permute.xlu0 %4972
  %4974 = vrot.lane.b32.xlu0 %v4959, 80
  %v4975 = vpop.permute.xlu0 %4974
  %4978 = vrot.lane.b32.xlu0 %v4954, 80
  %v4979 = vpop.permute.xlu0 %4978
  %v4981 = vsel %vm4600, %v4973, %v4979
  %v4982 = vsel %vm4600, %v4975, %v4979
  %v4983 = vsel %vm3335, %v4971, %v4981
  %v4985 = vrot.slane %v4983, 6
  %v4987 = vsel %vm4320, %v4983, %v4985
  %v4988 = vrot.slane %v4983, 1
  %v4991 = vrot.slane %v4982, 7
  %v4993 = vsel %vm4320, %v4988, %v4991
  %v4994 = vrot.slane %v4983, 2
  %v4996 = vsel %vm4320, %v4994, %v4982
  %v4997 = vrot.slane %v4983, 3
  %v4999 = vrot.slane %v4982, 1
  %v5001 = vsel %vm4320, %v4997, %v4999
  %v5002 = vrot.slane %v4983, 4
  %v5004 = vrot.slane %v4982, 2
  %v5006 = vsel %vm4320, %v5002, %v5004
  %v5007 = vrot.slane %v4983, 5
  %v5009 = vrot.slane %v4982, 3
  %v5011 = vsel %vm4320, %v5007, %v5009
  %v5012 = vrot.slane %v4982, 4
  %v5014 = vsel %vm4320, %v4985, %v5012
  %5016 = vrot.lane.b32.xlu0 %v4993, 48
  %v5017 = vpop.permute.xlu0 %5016
  %5020 = vrot.lane.b32.xlu0 %v4996, 96
  %v5021 = vpop.permute.xlu0 %5020
  %5024 = vrot.lane.b32.xlu0 %v5001, 16
  %v5025 = vpop.permute.xlu0 %5024
  %5028 = vrot.lane.b32.xlu0 %v5006, 64
  %v5029 = vpop.permute.xlu0 %5028
  %5032 = vrot.lane.b32.xlu0 %v5011, 112
  %v5033 = vpop.permute.xlu0 %5032
  %5036 = vrot.lane.b32.xlu0 %v5014, 32
  %v5037 = vpop.permute.xlu0 %5036
  %v5039 = vsel %vm4278, %v4987, %v5017
  %v5040 = vsel %vm3564, %v5039, %v5021
  %vm5041 = vcmask 130048
  %v5042 = vsel %vm5041, %v5021, %v5025
  %v5043 = vsel %vm1969, %v5042, %v5029
  %vm5044 = vcmask 916480
  %v5045 = vsel %vm5044, %v5043, %v5033
  %v5046 = vsel %vm4427, %v5033, %v5037
  %v5047 = vpack.c.bf16 %v5040, %v5040
  %v5048 = vpack.c.bf16 %v5045, %v5045
  %v5049 = vpack.c.bf16 %v5046, %v5046
  %v5050 = vld [vmem:[%s19] sm:$0xf]
  %v5051 = vld [vmem:[%s19 + $0x4] sm:$0xf]
  %v5052 = vld [vmem:[%s19 + $0x8] sm:$0xf]
  %v5053 = vld [vmem:[%s19 + $0xc] sm:$0xf]
  %v5054 = vld [vmem:[%s19 + $0x10] sm:$0xf]
  %v5055 = vld [vmem:[%s19 + $0x14] sm:$0xf]
  %v5056 = vld [vmem:[%s19 + $0x18] sm:$0xf]
  %v5057 = vld [vmem:[%s19 + $0x1c] sm:$0xf]
  %v5058 = vld [vmem:[%s19 + $0x20] sm:$0xf]
  %v5059 = vld [vmem:[%s19 + $0x24] sm:$0xf]
  %v5060 = vld [vmem:[%s19 + $0x28] sm:$0xf]
  %v5061 = vld [vmem:[%s19 + $0x2c] sm:$0xf]
  %v5062 = vld [vmem:[%s19 + $0x30] sm:$0xf]
  %v5063 = vld [vmem:[%s19 + $0x34] sm:$0xf]
  %v5064 = vld [vmem:[%s19 + $0x38] sm:$0xf]
  %v5065 = vld [vmem:[%s19 + $0x3c] sm:$0xf]
  %v5066 = vld [vmem:[%s19 + $0x40] sm:$0xf]
  %v5067 = vld [vmem:[%s19 + $0x44] sm:$0xf]
  %v5068 = vld [vmem:[%s19 + $0x48] sm:$0xf]
  %v5069 = vld [vmem:[%s19 + $0x4c] sm:$0xf]
  %v5070 = vld [vmem:[%s19 + $0x50] sm:$0xf]
  %v5071 = vld [vmem:[%s19 + $0x54] sm:$0xf]
  %v5072 = vld [vmem:[%s19 + $0x58] sm:$0xf]
  %v5073 = vld [vmem:[%s19 + $0x5c] sm:$0xf]
  %v5074 = vld [vmem:[%s19 + $0x60] sm:$0xf]
  %v5075 = vld [vmem:[%s19 + $0x64] sm:$0xf]
  %v5076 = vld [vmem:[%s19 + $0x68] sm:$0xf]
  %v5077 = vld [vmem:[%s19 + $0x6c] sm:$0xf]
  %v5078 = vld [vmem:[%s19 + $0x70] sm:$0xf]
  %v5079 = vld [vmem:[%s19 + $0x74] sm:$0xf]
  %v5080 = vld [vmem:[%s19 + $0x78] sm:$0xf]
  %v5081 = vld [vmem:[%s19 + $0x7c] sm:$0xf]
  %v5082 = vld [vmem:[%s19 + $0x80] sm:$0xf]
  %v5083 = vld [vmem:[%s19 + $0x84] sm:$0xf]
  %v5084 = vld [vmem:[%s19 + $0x88] sm:$0xf]
  %v5085 = vld [vmem:[%s19 + $0x8c] sm:$0xf]
  %v5086 = vld [vmem:[%s19 + $0x90] sm:$0xf]
  %v5087 = vld [vmem:[%s19 + $0x94] sm:$0xf]
  %v5088 = vld [vmem:[%s19 + $0x98] sm:$0xf]
  %v5089 = vld [vmem:[%s19 + $0x9c] sm:$0xf]
  %v5090 = vld [vmem:[%s19 + $0xa0] sm:$0xf]
  %v5091 = vld [vmem:[%s19 + $0xa4] sm:$0xf]
  %v5134 = vunpack.c.l.b16 %v5050
  %v5135 = vunpack.c.l.b16 %v5051
  %v5136 = vunpack.c.l.b16 %v5052
  %v5137 = vunpack.c.l.b16 %v5053
  %v5138 = vunpack.c.l.b16 %v5054
  %v5139 = vunpack.c.l.b16 %v5055
  %v5140 = vunpack.c.l.b16 %v5056
  %v5141 = vunpack.c.l.b16 %v5057
  %v5142 = vunpack.c.l.b16 %v5058
  %v5143 = vunpack.c.l.b16 %v5059
  %v5144 = vunpack.c.l.b16 %v5060
  %v5145 = vunpack.c.l.b16 %v5061
  %v5146 = vunpack.c.l.b16 %v5062
  %v5147 = vunpack.c.l.b16 %v5063
  %v5148 = vunpack.c.l.b16 %v5064
  %v5149 = vunpack.c.l.b16 %v5065
  %v5150 = vunpack.c.l.b16 %v5066
  %v5151 = vunpack.c.l.b16 %v5067
  %v5152 = vunpack.c.l.b16 %v5068
  %v5153 = vunpack.c.l.b16 %v5069
  %v5154 = vunpack.c.l.b16 %v5070
  %v5155 = vunpack.c.l.b16 %v5071
  %v5156 = vunpack.c.l.b16 %v5072
  %v5157 = vunpack.c.l.b16 %v5073
  %v5158 = vunpack.c.l.b16 %v5074
  %v5159 = vunpack.c.l.b16 %v5075
  %v5160 = vunpack.c.l.b16 %v5076
  %v5161 = vunpack.c.l.b16 %v5077
  %v5162 = vunpack.c.l.b16 %v5078
  %v5163 = vunpack.c.l.b16 %v5079
  %v5164 = vunpack.c.l.b16 %v5080
  %v5165 = vunpack.c.l.b16 %v5081
  %v5166 = vunpack.c.l.b16 %v5082
  %v5167 = vunpack.c.l.b16 %v5083
  %v5168 = vunpack.c.l.b16 %v5084
  %v5169 = vunpack.c.l.b16 %v5085
  %v5170 = vunpack.c.l.b16 %v5086
  %v5171 = vunpack.c.l.b16 %v5087
  %v5172 = vunpack.c.l.b16 %v5088
  %v5173 = vunpack.c.l.b16 %v5089
  %v5174 = vunpack.c.l.b16 %v5090
  %v5175 = vunpack.c.l.b16 %v5091
  %v5176 = vpack.c.b16 %v5135, %v5134
  %v5177 = vpack.c.b16 %v5137, %v5136
  %v5178 = vpack.c.b16 %v5139, %v5138
  %v5179 = vpack.c.b16 %v5141, %v5140
  %v5180 = vpack.c.b16 %v5143, %v5142
  %v5181 = vpack.c.b16 %v5145, %v5144
  %v5182 = vpack.c.b16 %v5147, %v5146
  %v5183 = vpack.c.b16 %v5149, %v5148
  %v5184 = vpack.c.b16 %v5151, %v5150
  %v5185 = vpack.c.b16 %v5153, %v5152
  %v5186 = vpack.c.b16 %v5155, %v5154
  %v5187 = vpack.c.b16 %v5157, %v5156
  %v5188 = vpack.c.b16 %v5159, %v5158
  %v5189 = vpack.c.b16 %v5161, %v5160
  %v5190 = vpack.c.b16 %v5163, %v5162
  %v5191 = vpack.c.b16 %v5165, %v5164
  %v5192 = vpack.c.b16 %v5167, %v5166
  %v5193 = vpack.c.b16 %v5169, %v5168
  %v5194 = vpack.c.b16 %v5171, %v5170
  %v5195 = vpack.c.b16 %v5173, %v5172
  %v5196 = vpack.c.b16 %v5175, %v5174
  %v5219 = vsel %vm4446, %v5049, 0
  %5221 = vmatpush.bf16.msra.mxu0 %v5183
  %5222 = vmatpush.bf16.msra.mxu0 %v5182
  %5223 = vmatpush.bf16.msra.mxu0 %v5181
  %5224 = vmatpush.bf16.msra.mxu0 %v5180
  %5225 = vmatpush.bf16.msra.mxu0 %v5179
  %5226 = vmatpush.bf16.msra.mxu0 %v5178
  %5227 = vmatpush.bf16.msra.mxu0 %v5177
  %5228 = vmatpush.bf16.msra.mxu0 %v5176
  %5229 = vmatmul.bf16.gmra.mxu0 %v5047
  %v5230 = vpop.f32.mrf.mxu0
  %v5231 = vadd.f32 0.0, %v5230
  %v5232 = vpop.f32.mrf.mxu0
  %5233 = vdwg.mxu0
  %5234 = vmatpush.bf16.msra.mxu0 %v5191
  %5235 = vmatpush.bf16.msra.mxu0 %v5190
  %5236 = vmatpush.bf16.msra.mxu0 %v5189
  %5237 = vmatpush.bf16.msra.mxu0 %v5188
  %5238 = vmatpush.bf16.msra.mxu0 %v5187
  %5239 = vmatpush.bf16.msra.mxu0 %v5186
  %5240 = vmatpush.bf16.msra.mxu0 %v5185
  %5241 = vmatpush.bf16.msra.mxu0 %v5184
  %5242 = vmatmul.bf16.gmra.mxu0 %v5048
  %v5243 = vpop.f32.mrf.mxu0
  %v5244 = vadd.f32 %v5231, %v5243
  %v5245 = vpop.f32.mrf.mxu0
  %5246 = vdwg.mxu0
  %5247 = vmatpush.bf16.msra.mxu0 0
  %5248 = vmatpush.bf16.msra.mxu0 0
  %5249 = vmatpush.bf16.msra.mxu0 0
  %5250 = vmatpush.bf16.msra.mxu0 %v5196
  %5251 = vmatpush.bf16.msra.mxu0 %v5195
  %5252 = vmatpush.bf16.msra.mxu0 %v5194
  %5253 = vmatpush.bf16.msra.mxu0 %v5193
  %5254 = vmatpush.bf16.msra.mxu0 %v5192
  %5255 = vmatmul.bf16.gmra.mxu0 %v5219
  %v5256 = vpop.f32.mrf.mxu0
  %v5257 = vadd.f32 %v5244, %v5256
  %v5258 = vpop.f32.mrf.mxu0
  %5259 = vdwg.mxu0
  %v5260 = vld [vmem:[%s20] sm:$0x1]
  %v5262 = vperm.slane %v5260, 0
  %v5264 = vmul.f32 %v5257, %v5262
  %v5265 = vld [vmem:[%s21] sm:$0x1]
  %v5267 = vperm.slane %v5265, 0
  %v5269 = vadd.f32 %v5264, %v5267
  %v5270 = vmax.f32 %v5269, 0.0
  %v5271 = vpack.c.bf16 %v5270, %v5270
  %v5272 = vld [vmem:[%s22] sm:$0xf]
  %v5273 = vld [vmem:[%s22 + $0x4] sm:$0xf]
  %v5274 = vld [vmem:[%s22 + $0x8] sm:$0xf]
  %v5275 = vld [vmem:[%s22 + $0xc] sm:$0xf]
  %v5276 = vld [vmem:[#allocation2] sm:$0x1]
  %v5278 = vperm.slane %v5276, 0
  %v5284 = vunpack.c.l.b16 %v5272
  %v5285 = vunpack.c.l.b16 %v5273
  %v5286 = vunpack.c.l.b16 %v5274
  %v5287 = vunpack.c.l.b16 %v5275
  %v5288 = vpack.c.b16 %v5285, %v5284
  %v5289 = vpack.c.b16 %v5287, %v5286
  %v5293 = vsel %vm4427, %v5271, 0
  %5295 = vmatpush.bf16.msra.mxu0 0
  %5296 = vmatpush.bf16.msra.mxu0 0
  %5297 = vmatpush.bf16.msra.mxu0 0
  %5298 = vmatpush.bf16.msra.mxu0 0
  %5299 = vmatpush.bf16.msra.mxu0 0
  %5300 = vmatpush.bf16.msra.mxu0 0
  %5301 = vmatpush.bf16.msra.mxu0 %v5289
  %5302 = vmatpush.bf16.msra.mxu0 %v5288
  %5303 = vmatmul.bf16.gmra.mxu0 %v5293
  %v5304 = vpop.f32.mrf.mxu0
  %v5305 = vadd.f32 %v5278, %v5304
  %v5306 = vpop.f32.mrf.mxu0
  %5307 = vdwg.mxu0
  %vm5308 = vcmask 1024
  %5309 = vst.msk [vmem:[%s24] sm:$0x3] %vm5308, %v5305
  // Predicated region
  $region98: #{embd_mhsa_forward.1} parent=0 // pred_check
    _
  $region99: #{embd_mhsa_forward.1} parent=0 // pred_check_branch
    %5311 = sbr.rel (0) target = $region101
  $region100: #{embd_mhsa_forward.1} parent=0 // pred_region
    _
  $region101: #{embd_mhsa_forward.1} parent=0 // pred_fallthru
    _
  // Predicated region
  $region102: #{embd_mhsa_forward.1} parent=0 // pred_check
    _
  $region103: #{embd_mhsa_forward.1} parent=0 // pred_check_branch
    %5313 = sbr.rel (0) target = $region105
  $region104: #{embd_mhsa_forward.1} parent=0 // pred_region
    _
  $region105: #{embd_mhsa_forward.1} parent=0 // pred_fallthru
    _

</llo_original>
